<compile_context>
chip_gen: v7x
topology: tpu7x:2x2x1
jax: 0.10.0
libtpu: 0.0.40
codegen_flags: <defaults>
</compile_context>

<pallas_src>
import functools

import jax
import jax.numpy as jnp
from jax.experimental import pallas as pl
from jax.experimental.pallas import tpu as pltpu

EPS = 1e-5                      # torch BatchNorm2d default eps
LANE = 128
MAX_TILE_M = 512                # review: 512-1024; sweep per generation (>=85% HBM roofline)
VMEM_LIMIT = 48 * 1024 * 1024   # safe on v7x (64 MiB physical); raise to ~96 MiB on v5e/v6e


# ----------------------------- Pallas kernels ------------------------------

def conv3x3_stats_kernel(pt_ref, w1t_ref, xt_ref, stats_ref):
    """3x3 conv as GEMM (channel-major) + per-tile BN1 batch-stat partials.

    pt_ref   : (K, tm)       im2col patches tile, K = 9*Cin, bf16, lanes = M
    w1t_ref  : (Cmid, K)     3x3 conv weight (VMEM-resident across M grid), bf16
    xt_ref   : (Cmid, tm)    pre-BN conv output tile (bf16, lane-dense store)
    stats_ref: (1, Cmid, 2)  per-tile partials: [...,0]=sum(x), [...,1]=sum(x^2)

    Zero-padded lanes of pt produce x == 0, i.e. contribute nothing to the stats.
    """
    x = jnp.dot(w1t_ref[...], pt_ref[...], preferred_element_type=jnp.float32)
    xt_ref[...] = x.astype(xt_ref.dtype)
    s = jnp.sum(x, axis=1, keepdims=True)
    ss = jnp.sum(x * x, axis=1, keepdims=True)
    stats_ref[...] = jnp.concatenate([s, ss], axis=1)[None]       # single store


def bn_relu_conv1x1_stats_kernel(xt_ref, a1_ref, c1_ref, w2t_ref, yt_ref, stats_ref,
                                 *, valid_m, tile_m):
    """BN1-apply + ReLU + 1x1 conv GEMM + per-tile BN2 batch-stat partials.

    xt_ref   : (Cmid, tm)    pre-BN 3x3 conv output tile (bf16)
    a1_ref   : (Cmid, 1)     folded BN1 scale  (gamma * rsqrt(var+eps))
    c1_ref   : (Cmid, 1)     folded BN1 shift  (beta - mean*scale)
    w2t_ref  : (Cout, Cmid)  1x1 conv weight (VMEM-resident), bf16
    yt_ref   : (Cout, tm)    pre-BN2 output tile (bf16, lane-dense store)
    stats_ref: (1, Cout, 2)  per-tile partials of y / y^2 (f32)

    valid_m / tile_m are static; when the lane axis was zero-padded, padded lanes
    are masked after BN1 (the shift would otherwise pollute y and the stats).
    """
    x = xt_ref[...].astype(jnp.float32)
    xr = jnp.maximum(x * a1_ref[...] + c1_ref[...], 0.0)           # BN1 + ReLU (f32)
    if valid_m is not None:
        lane = (jax.lax.broadcasted_iota(jnp.int32, xr.shape, 1)
                + pl.program_id(0) * tile_m)
        xr = jnp.where(lane < valid_m, xr, 0.0)
    y = jnp.dot(w2t_ref[...], xr.astype(w2t_ref.dtype),
                preferred_element_type=jnp.float32)                # 1x1 conv
    yt_ref[...] = y.astype(yt_ref.dtype)                           # bf16 writeback
    s = jnp.sum(y, axis=1, keepdims=True)
    ss = jnp.sum(y * y, axis=1, keepdims=True)
    stats_ref[...] = jnp.concatenate([s, ss], axis=1)[None]        # single store


def bn_apply_final_conv_kernel(yt_ref, a2_ref, c2_ref, wf_ref, bf_ref, o_ref):
    """Fused epilogue of the last conv_block: BN2-apply + final 1x1 conv + bias.

    yt_ref: (Cf, tm) bf16 pre-BN2 output of the last conv_block
    a2/c2 : (Cf, 1)  folded BN2 scale / shift (f32)
    wf_ref: (ncls, Cf) bf16 final conv weight, bf_ref: (ncls, 1) f32 bias
    o_ref : (ncls, tm) logits tile (lane-dense, f32)
    """
    y = yt_ref[...].astype(jnp.float32) * a2_ref[...] + c2_ref[...]
    o_ref[...] = (jnp.dot(wf_ref[...], y.astype(wf_ref.dtype),
                          preferred_element_type=jnp.float32)
                  + bf_ref[...])


# ----------------------------- kernel drivers -------------------------------

def _mosaic(sem):
    return pltpu.CompilerParams(dimension_semantics=sem,
                                vmem_limit_bytes=VMEM_LIMIT)


def _tile_and_pad(m):
    """Lane tile (multiple of 128, <= MAX_TILE_M) and the zero-padded M it divides."""
    m128 = ((m + LANE - 1) // LANE) * LANE
    tm = min(MAX_TILE_M, m128)
    mp = ((m + tm - 1) // tm) * tm
    return tm, mp


def _pad_lanes(a, mp):
    m = a.shape[-1]
    if mp == m:
        return a
    return jnp.pad(a, ((0, 0), (0, mp - m)))


def _conv3x3_bn_stats(pt, w1t, tm):
    """pt: (K, Mp) bf16, w1t: (Cmid, K) bf16 -> (Cmid, Mp) bf16, (nt, Cmid, 2) stats."""
    k, mp = pt.shape
    cmid = w1t.shape[0]
    nt = mp // tm
    return pl.pallas_call(
        conv3x3_stats_kernel,
        grid_spec=pltpu.PrefetchScalarGridSpec(
            num_scalar_prefetch=0,
            grid=(nt,),
            in_specs=[
                pl.BlockSpec((k, tm), lambda i: (0, i)),        # patch tile (lane-dense)
                pl.BlockSpec((cmid, k), lambda i: (0, 0)),      # weight, VMEM-resident
            ],
            out_specs=[
                pl.BlockSpec((cmid, tm), lambda i: (0, i)),     # lane-dense output tile
                pl.BlockSpec((1, cmid, 2), lambda i: (i, 0, 0)),  # per-tile stat partials
            ],
        ),
        out_shape=(
            jax.ShapeDtypeStruct((cmid, mp), jnp.bfloat16),
            jax.ShapeDtypeStruct((nt, cmid, 2), jnp.float32),
        ),
        compiler_params=_mosaic(("parallel",)),                 # no carry -> megacore OK
        cost_estimate=pl.CostEstimate(
            flops=2 * mp * k * cmid, transcendentals=0,
            bytes_accessed=2 * mp * k + 2 * k * cmid + 2 * mp * cmid + 8 * nt * cmid),
    )(pt, w1t)


def _bn_relu_conv1x1_stats(xt, a1, c1, w2t, tm, true_m):
    """xt: (Cmid, Mp) bf16 -> (Cout, Mp) bf16 pre-BN2 y, (nt, Cout, 2) stats."""
    cmid, mp = xt.shape
    cout = w2t.shape[0]
    nt = mp // tm
    kernel = functools.partial(bn_relu_conv1x1_stats_kernel,
                               valid_m=None if true_m == mp else true_m,
                               tile_m=tm)
    return pl.pallas_call(
        kernel,
        grid_spec=pltpu.PrefetchScalarGridSpec(
            num_scalar_prefetch=0,
            grid=(nt,),
            in_specs=[
                pl.BlockSpec((cmid, tm), lambda i: (0, i)),
                pl.BlockSpec((cmid, 1), lambda i: (0, 0)),
                pl.BlockSpec((cmid, 1), lambda i: (0, 0)),
                pl.BlockSpec((cout, cmid), lambda i: (0, 0)),
            ],
            out_specs=[
                pl.BlockSpec((cout, tm), lambda i: (0, i)),
                pl.BlockSpec((1, cout, 2), lambda i: (i, 0, 0)),
            ],
        ),
        out_shape=(
            jax.ShapeDtypeStruct((cout, mp), jnp.bfloat16),     # bf16 writeback (review)
            jax.ShapeDtypeStruct((nt, cout, 2), jnp.float32),
        ),
        compiler_params=_mosaic(("parallel",)),
        cost_estimate=pl.CostEstimate(
            flops=2 * mp * cmid * cout + 4 * mp * cmid, transcendentals=0,
            bytes_accessed=2 * mp * cmid + 2 * mp * cout + 2 * cmid * cout
                           + 8 * nt * cout + 8 * cmid),
    )(xt, a1, c1, w2t)


def _bn_apply_final_conv(yt, a2, c2, wf, bf):
    """Fused BN2-apply + final 1x1 conv (+bias). yt: (Cf, M) bf16 -> (ncls, M) f32."""
    cf, m = yt.shape
    ncls = wf.shape[0]
    tm, mp = _tile_and_pad(m)
    nt = mp // tm
    yt = _pad_lanes(yt, mp)
    out = pl.pallas_call(
        bn_apply_final_conv_kernel,
        grid_spec=pltpu.PrefetchScalarGridSpec(
            num_scalar_prefetch=0,
            grid=(nt,),
            in_specs=[
                pl.BlockSpec((cf, tm), lambda i: (0, i)),
                pl.BlockSpec((cf, 1), lambda i: (0, 0)),
                pl.BlockSpec((cf, 1), lambda i: (0, 0)),
                pl.BlockSpec((ncls, cf), lambda i: (0, 0)),
                pl.BlockSpec((ncls, 1), lambda i: (0, 0)),
            ],
            out_specs=pl.BlockSpec((ncls, tm), lambda i: (0, i)),
        ),
        out_shape=jax.ShapeDtypeStruct((ncls, mp), jnp.float32),
        compiler_params=_mosaic(("parallel",)),
        cost_estimate=pl.CostEstimate(
            flops=2 * mp * cf * ncls + 2 * mp * cf, transcendentals=0,
            bytes_accessed=2 * mp * cf + 4 * mp * ncls + 2 * cf * ncls),
    )(yt, a2, c2, wf.astype(jnp.bfloat16), bf)
    return out[:, :m] if mp != m else out


# ----------------------------- JAX glue (layout only) -----------------------

def im2col_3x3(x, stride):
    """x: (C, N, H, W) bf16 -> patches (9*C, N*Ho*Wo) bf16 for 3x3, pad=1 conv.

    K axis is tap-major / channel-minor (tap = dh*3+dw); weights use the same order.
    """
    c, n, h, w = x.shape
    xp = jnp.pad(x, ((0, 0), (0, 0), (1, 1), (1, 1)))
    ho = (h - 1) // stride + 1
    wo = (w - 1) // stride + 1
    taps = []
    for dh in range(3):
        for dw in range(3):
            taps.append(
                xp[:, :, dh:dh + stride * (ho - 1) + 1:stride,
                         dw:dw + stride * (wo - 1) + 1:stride])
    p = jnp.stack(taps, axis=0)                      # (9, C, N, Ho, Wo)
    return p.reshape(9 * c, n * ho * wo), (n, ho, wo)


def upsample_bilinear_2x(x):
    """nn.Upsample(scale_factor=2, mode='bilinear', align_corners=False); x: (C,N,H,W) bf16."""
    c, n, h, w = x.shape

    def idx_w(n_in):
        src = (jnp.arange(2 * n_in, dtype=jnp.float32) + 0.5) / 2.0 - 0.5
        i0 = jnp.floor(src).astype(jnp.int32)
        frac = src - i0.astype(jnp.float32)
        return jnp.clip(i0, 0, n_in - 1), jnp.clip(i0 + 1, 0, n_in - 1), frac

    h0, h1, fh = idx_w(h)
    w0, w1, fw = idx_w(w)
    fh = fh.astype(x.dtype)      # 0.25 / 0.75 -> exact in bf16
    fw = fw.astype(x.dtype)
    one = jnp.ones((), x.dtype)
    top = jnp.take(x, h0, axis=2)
    bot = jnp.take(x, h1, axis=2)
    xh = top * (one - fh)[None, None, :, None] + bot * fh[None, None, :, None]
    left = jnp.take(xh, w0, axis=3)
    right = jnp.take(xh, w1, axis=3)
    return left * (one - fw)[None, None, None, :] + right * fw[None, None, None, :]


def _bn_fold(stats, m, gamma, beta):
    """Per-tile partial sum/sumsq (nt,C,2) -> affine scale/shift (training-mode, biased var)."""
    s = jnp.sum(stats, axis=0)                       # reduce tile partials -> (C, 2)
    mean = s[:, 0] / m
    var = jnp.maximum(s[:, 1] / m - mean * mean, 0.0)
    scale = gamma * jax.lax.rsqrt(var + EPS)
    shift = beta - mean * scale
    return scale[:, None].astype(jnp.float32), shift[:, None].astype(jnp.float32)


def conv_block_core(x, in_scale, p, stride):
    """One conv_block (3x3 conv -> BN -> ReLU -> 1x1 conv -> BN), fused in 2 Pallas passes.

    x        : (Cin, N, H, W) bf16 — BN-SHIFTED activation (shift already added)
    in_scale : (Cin,) f32      — the pending per-channel BN scale of x; folded into
                                  this block's 3x3 weights (exact under zero padding).
    Returns the lazy BN2 output: (yt_bf16 (Cout, M), a2 (Cout,1), c2 (Cout,1), dims).
    """
    w1t_eff = (p["w1t"] * jnp.tile(in_scale, 9)[None, :]).astype(jnp.bfloat16)
    pt, (n, ho, wo) = im2col_3x3(x, stride)          # bf16 patches (review item 4)
    m = n * ho * wo
    tm, mp = _tile_and_pad(m)
    pt = _pad_lanes(pt, mp)
    xt, s1 = _conv3x3_bn_stats(pt, w1t_eff, tm)
    a1, c1 = _bn_fold(s1, m, p["g1"], p["b1"])
    yt, s2 = _bn_relu_conv1x1_stats(xt, a1, c1, p["w2t"].astype(jnp.bfloat16), tm, m)
    a2, c2 = _bn_fold(s2, m, p["g2"], p["b2"])
    if mp != m:
        yt = yt[:, :m]
    return yt, a2, c2, (n, ho, wo)


def _materialize(yt, a2, c2, dims):
    """Lazy BN2 output -> BN-shifted spatial activation (bf16) + pending per-channel scale.

    z = a2*yt + c2 = a2*(yt + c2/a2); the scale a2 is folded into the consumer's 3x3
    weights, so only u = yt + c2/a2 is materialized.  (Exact for BN gamma != 0.)
    """
    n, h, w = dims
    u = (yt.astype(jnp.float32) + c2 / a2).astype(jnp.bfloat16)
    return u.reshape(-1, n, h, w), a2[:, 0]


# ----------------------------- parameters ----------------------------------

def init_conv_block(key, cin, cout):
    k1, k2 = jax.random.split(key)
    # 3x3 weight stored channel-major-out, K = tap-major/cin-minor (matches im2col_3x3).
    # NOTE: importing torch weights (cout,cin,kh,kw) needs transpose to (cout,kh,kw,cin).
    w1t = jax.random.normal(k1, (cout, 9 * cin), jnp.float32) / jnp.sqrt(9.0 * cin)
    w2t = jax.random.normal(k2, (cout, cout), jnp.float32) / jnp.sqrt(float(cout))
    return {
        "w1t": w1t,
        "g1": jnp.ones((cout,), jnp.float32),
        "b1": jnp.zeros((cout,), jnp.float32),
        "w2t": w2t,
        "g2": jnp.ones((cout,), jnp.float32),
        "b2": jnp.zeros((cout,), jnp.float32),
    }


def init_unet(key, in_channels, down_features, num_classes):
    keys = jax.random.split(key, 2 + 2 * len(down_features))
    ki = iter(keys)
    params = {"expand": init_conv_block(next(ki), in_channels, down_features[0])}
    params["downs"] = [init_conv_block(next(ki), cin, cout)
                       for cin, cout in zip(down_features, down_features[1:])]
    up_features = down_features[::-1]
    params["ups"] = [init_conv_block(next(ki), cin + cout, cout)
                     for cin, cout in zip(up_features, up_features[1:])]
    kf = next(ki)
    params["final_w"] = jax.random.normal(
        kf, (num_classes, down_features[0]), jnp.float32
    ) / jnp.sqrt(float(down_features[0]))
    params["final_b"] = jnp.zeros((num_classes, 1), jnp.float32)
    return params


# ----------------------------- forward pass --------------------------------

def unet_forward(params, x_nchw, pooling=False):
    # NCHW -> internal channel-major (C, N, H, W), bf16 activations throughout.
    x = jnp.transpose(x_nchw, (1, 0, 2, 3)).astype(jnp.bfloat16)
    in_scale = jnp.ones((x.shape[0],), jnp.float32)
    down_stride = 1 if pooling else 2
    downs, ups = params["downs"], params["ups"]

    lazy = conv_block_core(x, in_scale, params["expand"], stride=1)

    if not downs:
        yt, a2, c2, dims = lazy
        out = _bn_apply_final_conv(yt, a2, c2, params["final_w"], params["final_b"])
        n, h, w = dims
        return jnp.transpose(out.reshape(-1, n, h, w), (1, 0, 2, 3))

    skips = []
    for p in downs:
        skips.append(lazy)
        u, s = _materialize(*lazy)
        lazy = conv_block_core(u, s, p, stride=down_stride)
        if pooling:
            # TODO(synk): F.max_pool2d(2) path (pooling=True) not implemented.
            pass

    out = None
    dims = None
    for i, (p, skip_lazy) in enumerate(zip(ups, reversed(skips))):
        u_prev, s_prev = _materialize(*lazy)
        u_skip, s_skip = _materialize(*skip_lazy)
        u_cat = jnp.concatenate([upsample_bilinear_2x(u_prev), u_skip], axis=0)
        s_cat = jnp.concatenate([s_prev, s_skip], axis=0)
        lazy = conv_block_core(u_cat, s_cat, p, stride=1)
        if i == len(ups) - 1:
            # last block: fuse its BN2-apply with the final 1x1 conv in one kernel
            yt, a2, c2, dims = lazy
            out = _bn_apply_final_conv(yt, a2, c2,
                                       params["final_w"], params["final_b"])

    n, h, w = dims
    return jnp.transpose(out.reshape(-1, n, h, w), (1, 0, 2, 3))   # -> NCHW


# ----------------------------- main -----------------------------------------

if __name__ == "__main__":
    key = jax.random.PRNGKey(0)
    k_params, k_x = jax.random.split(key)

    in_channels = 4
    down_features = [8, 16, 32]
    num_classes = 3

    params = init_unet(k_params, in_channels, down_features, num_classes)
    x = jax.random.normal(k_x, (2, in_channels, 16, 16), jnp.float32)  # NCHW

    fwd = jax.jit(functools.partial(unet_forward, pooling=False))
    out = jax.block_until_ready(fwd(params, x))

    assert out.shape == (2, num_classes, 16, 16), out.shape
    assert bool(jnp.all(jnp.isfinite(out)))
    print("KERNEL_OK")
</pallas_src>

<mosaic_0001>
module attributes {stable_mosaic.version = 11 : i64} {
  func.func @conv3x3_stats_kernel(%arg0: i32, %arg1: memref<36x512xbf16, #tpu.memory_space<vmem>>, %arg2: memref<8x36xbf16, #tpu.memory_space<vmem>>, %arg3: memref<8x512xbf16, #tpu.memory_space<vmem>>, %arg4: memref<1x8x2xf32, #tpu.memory_space<vmem>>) attributes {dimension_semantics = [#tpu.dimension_semantics<parallel>], iteration_bounds = array<i64: 1>, scalar_prefetch = 0 : i64, scratch_operands = 0 : i64, tpu.core_type = #tpu.core_type<tc>, window_params = [{transform_indices = @transform_0, window_bounds = array<i64: 36, 512>}, {pipeline_mode = #tpu.pipeline_mode<synchronous>, transform_indices = @transform_1, window_bounds = array<i64: 8, 36>}, {transform_indices = @transform_2, window_bounds = array<i64: 8, 512>}, {transform_indices = @transform_3, window_bounds = array<i64: 1, 8, 2>}]} {
    %c0 = arith.constant 0 : index
    %c0_0 = arith.constant 0 : index
    %0 = vector.load %arg2[%c0, %c0_0] : memref<8x36xbf16, #tpu.memory_space<vmem>>, vector<8x36xbf16>
    %c0_1 = arith.constant 0 : index
    %c0_2 = arith.constant 0 : index
    %1 = vector.load %arg1[%c0_1, %c0_2] : memref<36x512xbf16, #tpu.memory_space<vmem>>, vector<36x512xbf16>
    %cst = arith.constant dense<0.000000e+00> : vector<8x512xf32>
    %2 = tpu.matmul %0, %1, %cst {dimension_numbers = #tpu.dot_dimension_numbers<[1], [0], [0], [1], [0, 0, 1, 1], [], []>} : vector<8x36xbf16>, vector<36x512xbf16>, vector<8x512xf32> -> vector<8x512xf32>
    %3 = arith.truncf %2 : vector<8x512xf32> to vector<8x512xbf16>
    %c0_3 = arith.constant 0 : index
    %c0_4 = arith.constant 0 : index
    %4 = vector.load %arg3[%c0_3, %c0_4] : memref<8x512xbf16, #tpu.memory_space<vmem>>, vector<8x512xbf16>
    tpu.vector_store %arg3[%c0_3, %c0_4], %3 {strides = array<i32>} : memref<8x512xbf16, #tpu.memory_space<vmem>>, vector<8x512xbf16>,
    %cst_5 = arith.constant dense<0.000000e+00> : vector<8xf32>
    %5 = vector.multi_reduction <add>, %2, %cst_5 [1] : vector<8x512xf32> to vector<8xf32>
    %6 = vector.shape_cast %5 : vector<8xf32> to vector<8x1xf32>
    %7 = arith.mulf %2, %2 : vector<8x512xf32>
    %cst_6 = arith.constant dense<0.000000e+00> : vector<8xf32>
    %8 = vector.multi_reduction <add>, %7, %cst_6 [1] : vector<8x512xf32> to vector<8xf32>
    %9 = vector.shape_cast %8 : vector<8xf32> to vector<8x1xf32>
    %10 = tpu.concatenate %6, %9 in 1 : vector<8x1xf32>, vector<8x1xf32> -> vector<8x2xf32>
    %11 = vector.shape_cast %10 : vector<8x2xf32> to vector<1x8x2xf32>
    %c0_7 = arith.constant 0 : index
    %c0_8 = arith.constant 0 : index
    %c0_9 = arith.constant 0 : index
    %12 = vector.load %arg4[%c0_7, %c0_8, %c0_9] : memref<1x8x2xf32, #tpu.memory_space<vmem>>, vector<1x8x2xf32>
    tpu.vector_store %arg4[%c0_7, %c0_8, %c0_9], %11 {strides = array<i32>} : memref<1x8x2xf32, #tpu.memory_space<vmem>>, vector<1x8x2xf32>,
    return
  }
  func.func @transform_0(%arg0: i32) -> (i32, i32) {
    %c0_i32 = arith.constant 0 : i32
    %c0_i32_0 = arith.constant 0 : i32
    return %c0_i32, %arg0 : i32, i32
  }
  func.func @transform_1(%arg0: i32) -> (i32, i32) {
    %c0_i32 = arith.constant 0 : i32
    %c0_i32_0 = arith.constant 0 : i32
    %c0_i32_1 = arith.constant 0 : i32
    return %c0_i32, %c0_i32_0 : i32, i32
  }
  func.func @transform_2(%arg0: i32) -> (i32, i32) {
    %c0_i32 = arith.constant 0 : i32
    %c0_i32_0 = arith.constant 0 : i32
    return %c0_i32, %arg0 : i32, i32
  }
  func.func @transform_3(%arg0: i32) -> (i32, i32, i32) {
    %c0_i32 = arith.constant 0 : i32
    %c0_i32_0 = arith.constant 0 : i32
    %c0_i32_1 = arith.constant 0 : i32
    return %arg0, %c0_i32, %c0_i32_0 : i32, i32, i32
  }
}

module attributes {stable_mosaic.version = 11 : i64} {
  func.func @bn_relu_conv1x1_stats_kernel(%arg0: i32, %arg1: memref<8x512xbf16, #tpu.memory_space<vmem>>, %arg2: memref<8x1xf32, #tpu.memory_space<vmem>>, %arg3: memref<8x1xf32, #tpu.memory_space<vmem>>, %arg4: memref<8x8xbf16, #tpu.memory_space<vmem>>, %arg5: memref<8x512xbf16, #tpu.memory_space<vmem>>, %arg6: memref<1x8x2xf32, #tpu.memory_space<vmem>>) attributes {dimension_semantics = [#tpu.dimension_semantics<parallel>], iteration_bounds = array<i64: 1>, scalar_prefetch = 0 : i64, scratch_operands = 0 : i64, tpu.core_type = #tpu.core_type<tc>, window_params = [{transform_indices = @transform_0, window_bounds = array<i64: 8, 512>}, {pipeline_mode = #tpu.pipeline_mode<synchronous>, transform_indices = @transform_1, window_bounds = array<i64: 8, 1>}, {pipeline_mode = #tpu.pipeline_mode<synchronous>, transform_indices = @transform_2, window_bounds = array<i64: 8, 1>}, {pipeline_mode = #tpu.pipeline_mode<synchronous>, transform_indices = @transform_3, window_bounds = array<i64: 8, 8>}, {transform_indices = @transform_4, window_bounds = array<i64: 8, 512>}, {transform_indices = @transform_5, window_bounds = array<i64: 1, 8, 2>}]} {
    %c0 = arith.constant 0 : index
    %c0_0 = arith.constant 0 : index
    %0 = vector.load %arg1[%c0, %c0_0] : memref<8x512xbf16, #tpu.memory_space<vmem>>, vector<8x512xbf16>
    %1 = arith.extf %0 : vector<8x512xbf16> to vector<8x512xf32>
    %c0_1 = arith.constant 0 : index
    %c0_2 = arith.constant 0 : index
    %2 = vector.load %arg2[%c0_1, %c0_2] : memref<8x1xf32, #tpu.memory_space<vmem>>, vector<8x1xf32>
    %3 = vector.broadcast %2 : vector<8x1xf32> to vector<8x512xf32>
    %4 = arith.mulf %1, %3 : vector<8x512xf32>
    %c0_3 = arith.constant 0 : index
    %c0_4 = arith.constant 0 : index
    %5 = vector.load %arg3[%c0_3, %c0_4] : memref<8x1xf32, #tpu.memory_space<vmem>>, vector<8x1xf32>
    %6 = vector.broadcast %5 : vector<8x1xf32> to vector<8x512xf32>
    %7 = arith.addf %4, %6 : vector<8x512xf32>
    %cst = arith.constant 0.000000e+00 : f32
    %8 = vector.broadcast %cst : f32 to vector<8x512xf32>
    %9 = arith.maximumf %7, %8 : vector<8x512xf32>
    %c0_5 = arith.constant 0 : index
    %c0_6 = arith.constant 0 : index
    %10 = vector.load %arg4[%c0_5, %c0_6] : memref<8x8xbf16, #tpu.memory_space<vmem>>, vector<8x8xbf16>
    %11 = arith.truncf %9 : vector<8x512xf32> to vector<8x512xbf16>
    %cst_7 = arith.constant dense<0.000000e+00> : vector<8x512xf32>
    %12 = tpu.matmul %10, %11, %cst_7 {dimension_numbers = #tpu.dot_dimension_numbers<[1], [0], [0], [1], [0, 0, 1, 1], [], []>} : vector<8x8xbf16>, vector<8x512xbf16>, vector<8x512xf32> -> vector<8x512xf32>
    %13 = arith.truncf %12 : vector<8x512xf32> to vector<8x512xbf16>
    %c0_8 = arith.constant 0 : index
    %c0_9 = arith.constant 0 : index
    %14 = vector.load %arg5[%c0_8, %c0_9] : memref<8x512xbf16, #tpu.memory_space<vmem>>, vector<8x512xbf16>
    tpu.vector_store %arg5[%c0_8, %c0_9], %13 {strides = array<i32>} : memref<8x512xbf16, #tpu.memory_space<vmem>>, vector<8x512xbf16>,
    %cst_10 = arith.constant dense<0.000000e+00> : vector<8xf32>
    %15 = vector.multi_reduction <add>, %12, %cst_10 [1] : vector<8x512xf32> to vector<8xf32>
    %16 = vector.shape_cast %15 : vector<8xf32> to vector<8x1xf32>
    %17 = arith.mulf %12, %12 : vector<8x512xf32>
    %cst_11 = arith.constant dense<0.000000e+00> : vector<8xf32>
    %18 = vector.multi_reduction <add>, %17, %cst_11 [1] : vector<8x512xf32> to vector<8xf32>
    %19 = vector.shape_cast %18 : vector<8xf32> to vector<8x1xf32>
    %20 = tpu.concatenate %16, %19 in 1 : vector<8x1xf32>, vector<8x1xf32> -> vector<8x2xf32>
    %21 = vector.shape_cast %20 : vector<8x2xf32> to vector<1x8x2xf32>
    %c0_12 = arith.constant 0 : index
    %c0_13 = arith.constant 0 : index
    %c0_14 = arith.constant 0 : index
    %22 = vector.load %arg6[%c0_12, %c0_13, %c0_14] : memref<1x8x2xf32, #tpu.memory_space<vmem>>, vector<1x8x2xf32>
    tpu.vector_store %arg6[%c0_12, %c0_13, %c0_14], %21 {strides = array<i32>} : memref<1x8x2xf32, #tpu.memory_space<vmem>>, vector<1x8x2xf32>,
    return
  }
  func.func @transform_0(%arg0: i32) -> (i32, i32) {
    %c0_i32 = arith.constant 0 : i32
    %c0_i32_0 = arith.constant 0 : i32
    return %c0_i32, %arg0 : i32, i32
  }
  func.func @transform_1(%arg0: i32) -> (i32, i32) {
    %c0_i32 = arith.constant 0 : i32
    %c0_i32_0 = arith.constant 0 : i32
    %c0_i32_1 = arith.constant 0 : i32
    return %c0_i32, %c0_i32_0 : i32, i32
  }
  func.func @transform_2(%arg0: i32) -> (i32, i32) {
    %c0_i32 = arith.constant 0 : i32
    %c0_i32_0 = arith.constant 0 : i32
    %c0_i32_1 = arith.constant 0 : i32
    return %c0_i32, %c0_i32_0 : i32, i32
  }
  func.func @transform_3(%arg0: i32) -> (i32, i32) {
    %c0_i32 = arith.constant 0 : i32
    %c0_i32_0 = arith.constant 0 : i32
    %c0_i32_1 = arith.constant 0 : i32
    return %c0_i32, %c0_i32_0 : i32, i32
  }
  func.func @transform_4(%arg0: i32) -> (i32, i32) {
    %c0_i32 = arith.constant 0 : i32
    %c0_i32_0 = arith.constant 0 : i32
    return %c0_i32, %arg0 : i32, i32
  }
  func.func @transform_5(%arg0: i32) -> (i32, i32, i32) {
    %c0_i32 = arith.constant 0 : i32
    %c0_i32_0 = arith.constant 0 : i32
    %c0_i32_1 = arith.constant 0 : i32
    return %arg0, %c0_i32, %c0_i32_0 : i32, i32, i32
  }
}

module attributes {stable_mosaic.version = 11 : i64} {
  func.func @conv3x3_stats_kernel(%arg0: i32, %arg1: memref<72x128xbf16, #tpu.memory_space<vmem>>, %arg2: memref<16x72xbf16, #tpu.memory_space<vmem>>, %arg3: memref<16x128xbf16, #tpu.memory_space<vmem>>, %arg4: memref<1x16x2xf32, #tpu.memory_space<vmem>>) attributes {dimension_semantics = [#tpu.dimension_semantics<parallel>], iteration_bounds = array<i64: 1>, scalar_prefetch = 0 : i64, scratch_operands = 0 : i64, tpu.core_type = #tpu.core_type<tc>, window_params = [{transform_indices = @transform_0, window_bounds = array<i64: 72, 128>}, {pipeline_mode = #tpu.pipeline_mode<synchronous>, transform_indices = @transform_1, window_bounds = array<i64: 16, 72>}, {transform_indices = @transform_2, window_bounds = array<i64: 16, 128>}, {transform_indices = @transform_3, window_bounds = array<i64: 1, 16, 2>}]} {
    %c0 = arith.constant 0 : index
    %c0_0 = arith.constant 0 : index
    %0 = vector.load %arg2[%c0, %c0_0] : memref<16x72xbf16, #tpu.memory_space<vmem>>, vector<16x72xbf16>
    %c0_1 = arith.constant 0 : index
    %c0_2 = arith.constant 0 : index
    %1 = vector.load %arg1[%c0_1, %c0_2] : memref<72x128xbf16, #tpu.memory_space<vmem>>, vector<72x128xbf16>
    %cst = arith.constant dense<0.000000e+00> : vector<16x128xf32>
    %2 = tpu.matmul %0, %1, %cst {dimension_numbers = #tpu.dot_dimension_numbers<[1], [0], [0], [1], [0, 0, 1, 1], [], []>} : vector<16x72xbf16>, vector<72x128xbf16>, vector<16x128xf32> -> vector<16x128xf32>
    %3 = arith.truncf %2 : vector<16x128xf32> to vector<16x128xbf16>
    %c0_3 = arith.constant 0 : index
    %c0_4 = arith.constant 0 : index
    %4 = vector.load %arg3[%c0_3, %c0_4] : memref<16x128xbf16, #tpu.memory_space<vmem>>, vector<16x128xbf16>
    tpu.vector_store %arg3[%c0_3, %c0_4], %3 {strides = array<i32>} : memref<16x128xbf16, #tpu.memory_space<vmem>>, vector<16x128xbf16>,
    %cst_5 = arith.constant dense<0.000000e+00> : vector<16xf32>
    %5 = vector.multi_reduction <add>, %2, %cst_5 [1] : vector<16x128xf32> to vector<16xf32>
    %6 = vector.shape_cast %5 : vector<16xf32> to vector<16x1xf32>
    %7 = arith.mulf %2, %2 : vector<16x128xf32>
    %cst_6 = arith.constant dense<0.000000e+00> : vector<16xf32>
    %8 = vector.multi_reduction <add>, %7, %cst_6 [1] : vector<16x128xf32> to vector<16xf32>
    %9 = vector.shape_cast %8 : vector<16xf32> to vector<16x1xf32>
    %10 = tpu.concatenate %6, %9 in 1 : vector<16x1xf32>, vector<16x1xf32> -> vector<16x2xf32>
    %11 = vector.shape_cast %10 : vector<16x2xf32> to vector<1x16x2xf32>
    %c0_7 = arith.constant 0 : index
    %c0_8 = arith.constant 0 : index
    %c0_9 = arith.constant 0 : index
    %12 = vector.load %arg4[%c0_7, %c0_8, %c0_9] : memref<1x16x2xf32, #tpu.memory_space<vmem>>, vector<1x16x2xf32>
    tpu.vector_store %arg4[%c0_7, %c0_8, %c0_9], %11 {strides = array<i32>} : memref<1x16x2xf32, #tpu.memory_space<vmem>>, vector<1x16x2xf32>,
    return
  }
  func.func @transform_0(%arg0: i32) -> (i32, i32) {
    %c0_i32 = arith.constant 0 : i32
    %c0_i32_0 = arith.constant 0 : i32
    return %c0_i32, %arg0 : i32, i32
  }
  func.func @transform_1(%arg0: i32) -> (i32, i32) {
    %c0_i32 = arith.constant 0 : i32
    %c0_i32_0 = arith.constant 0 : i32
    %c0_i32_1 = arith.constant 0 : i32
    return %c0_i32, %c0_i32_0 : i32, i32
  }
  func.func @transform_2(%arg0: i32) -> (i32, i32) {
    %c0_i32 = arith.constant 0 : i32
    %c0_i32_0 = arith.constant 0 : i32
    return %c0_i32, %arg0 : i32, i32
  }
  func.func @transform_3(%arg0: i32) -> (i32, i32, i32) {
    %c0_i32 = arith.constant 0 : i32
    %c0_i32_0 = arith.constant 0 : i32
    %c0_i32_1 = arith.constant 0 : i32
    return %arg0, %c0_i32, %c0_i32_0 : i32, i32, i32
  }
}

module attributes {stable_mosaic.version = 11 : i64} {
  func.func @bn_relu_conv1x1_stats_kernel(%arg0: i32, %arg1: memref<16x128xbf16, #tpu.memory_space<vmem>>, %arg2: memref<16x1xf32, #tpu.memory_space<vmem>>, %arg3: memref<16x1xf32, #tpu.memory_space<vmem>>, %arg4: memref<16x16xbf16, #tpu.memory_space<vmem>>, %arg5: memref<16x128xbf16, #tpu.memory_space<vmem>>, %arg6: memref<1x16x2xf32, #tpu.memory_space<vmem>>) attributes {dimension_semantics = [#tpu.dimension_semantics<parallel>], iteration_bounds = array<i64: 1>, scalar_prefetch = 0 : i64, scratch_operands = 0 : i64, tpu.core_type = #tpu.core_type<tc>, window_params = [{transform_indices = @transform_0, window_bounds = array<i64: 16, 128>}, {pipeline_mode = #tpu.pipeline_mode<synchronous>, transform_indices = @transform_1, window_bounds = array<i64: 16, 1>}, {pipeline_mode = #tpu.pipeline_mode<synchronous>, transform_indices = @transform_2, window_bounds = array<i64: 16, 1>}, {pipeline_mode = #tpu.pipeline_mode<synchronous>, transform_indices = @transform_3, window_bounds = array<i64: 16, 16>}, {transform_indices = @transform_4, window_bounds = array<i64: 16, 128>}, {transform_indices = @transform_5, window_bounds = array<i64: 1, 16, 2>}]} {
    %c0 = arith.constant 0 : index
    %c0_0 = arith.constant 0 : index
    %0 = vector.load %arg1[%c0, %c0_0] : memref<16x128xbf16, #tpu.memory_space<vmem>>, vector<16x128xbf16>
    %1 = arith.extf %0 : vector<16x128xbf16> to vector<16x128xf32>
    %c0_1 = arith.constant 0 : index
    %c0_2 = arith.constant 0 : index
    %2 = vector.load %arg2[%c0_1, %c0_2] : memref<16x1xf32, #tpu.memory_space<vmem>>, vector<16x1xf32>
    %3 = vector.broadcast %2 : vector<16x1xf32> to vector<16x128xf32>
    %4 = arith.mulf %1, %3 : vector<16x128xf32>
    %c0_3 = arith.constant 0 : index
    %c0_4 = arith.constant 0 : index
    %5 = vector.load %arg3[%c0_3, %c0_4] : memref<16x1xf32, #tpu.memory_space<vmem>>, vector<16x1xf32>
    %6 = vector.broadcast %5 : vector<16x1xf32> to vector<16x128xf32>
    %7 = arith.addf %4, %6 : vector<16x128xf32>
    %cst = arith.constant 0.000000e+00 : f32
    %8 = vector.broadcast %cst : f32 to vector<16x128xf32>
    %9 = arith.maximumf %7, %8 : vector<16x128xf32>
    %c0_5 = arith.constant 0 : index
    %c0_6 = arith.constant 0 : index
    %10 = vector.load %arg4[%c0_5, %c0_6] : memref<16x16xbf16, #tpu.memory_space<vmem>>, vector<16x16xbf16>
    %11 = arith.truncf %9 : vector<16x128xf32> to vector<16x128xbf16>
    %cst_7 = arith.constant dense<0.000000e+00> : vector<16x128xf32>
    %12 = tpu.matmul %10, %11, %cst_7 {dimension_numbers = #tpu.dot_dimension_numbers<[1], [0], [0], [1], [0, 0, 1, 1], [], []>} : vector<16x16xbf16>, vector<16x128xbf16>, vector<16x128xf32> -> vector<16x128xf32>
    %13 = arith.truncf %12 : vector<16x128xf32> to vector<16x128xbf16>
    %c0_8 = arith.constant 0 : index
    %c0_9 = arith.constant 0 : index
    %14 = vector.load %arg5[%c0_8, %c0_9] : memref<16x128xbf16, #tpu.memory_space<vmem>>, vector<16x128xbf16>
    tpu.vector_store %arg5[%c0_8, %c0_9], %13 {strides = array<i32>} : memref<16x128xbf16, #tpu.memory_space<vmem>>, vector<16x128xbf16>,
    %cst_10 = arith.constant dense<0.000000e+00> : vector<16xf32>
    %15 = vector.multi_reduction <add>, %12, %cst_10 [1] : vector<16x128xf32> to vector<16xf32>
    %16 = vector.shape_cast %15 : vector<16xf32> to vector<16x1xf32>
    %17 = arith.mulf %12, %12 : vector<16x128xf32>
    %cst_11 = arith.constant dense<0.000000e+00> : vector<16xf32>
    %18 = vector.multi_reduction <add>, %17, %cst_11 [1] : vector<16x128xf32> to vector<16xf32>
    %19 = vector.shape_cast %18 : vector<16xf32> to vector<16x1xf32>
    %20 = tpu.concatenate %16, %19 in 1 : vector<16x1xf32>, vector<16x1xf32> -> vector<16x2xf32>
    %21 = vector.shape_cast %20 : vector<16x2xf32> to vector<1x16x2xf32>
    %c0_12 = arith.constant 0 : index
    %c0_13 = arith.constant 0 : index
    %c0_14 = arith.constant 0 : index
    %22 = vector.load %arg6[%c0_12, %c0_13, %c0_14] : memref<1x16x2xf32, #tpu.memory_space<vmem>>, vector<1x16x2xf32>
    tpu.vector_store %arg6[%c0_12, %c0_13, %c0_14], %21 {strides = array<i32>} : memref<1x16x2xf32, #tpu.memory_space<vmem>>, vector<1x16x2xf32>,
    return
  }
  func.func @transform_0(%arg0: i32) -> (i32, i32) {
    %c0_i32 = arith.constant 0 : i32
    %c0_i32_0 = arith.constant 0 : i32
    return %c0_i32, %arg0 : i32, i32
  }
  func.func @transform_1(%arg0: i32) -> (i32, i32) {
    %c0_i32 = arith.constant 0 : i32
    %c0_i32_0 = arith.constant 0 : i32
    %c0_i32_1 = arith.constant 0 : i32
    return %c0_i32, %c0_i32_0 : i32, i32
  }
  func.func @transform_2(%arg0: i32) -> (i32, i32) {
    %c0_i32 = arith.constant 0 : i32
    %c0_i32_0 = arith.constant 0 : i32
    %c0_i32_1 = arith.constant 0 : i32
    return %c0_i32, %c0_i32_0 : i32, i32
  }
  func.func @transform_3(%arg0: i32) -> (i32, i32) {
    %c0_i32 = arith.constant 0 : i32
    %c0_i32_0 = arith.constant 0 : i32
    %c0_i32_1 = arith.constant 0 : i32
    return %c0_i32, %c0_i32_0 : i32, i32
  }
  func.func @transform_4(%arg0: i32) -> (i32, i32) {
    %c0_i32 = arith.constant 0 : i32
    %c0_i32_0 = arith.constant 0 : i32
    return %c0_i32, %arg0 : i32, i32
  }
  func.func @transform_5(%arg0: i32) -> (i32, i32, i32) {
    %c0_i32 = arith.constant 0 : i32
    %c0_i32_0 = arith.constant 0 : i32
    %c0_i32_1 = arith.constant 0 : i32
    return %arg0, %c0_i32, %c0_i32_0 : i32, i32, i32
  }
}

module attributes {stable_mosaic.version = 11 : i64} {
  func.func @conv3x3_stats_kernel(%arg0: i32, %arg1: memref<144x128xbf16, #tpu.memory_space<vmem>>, %arg2: memref<32x144xbf16, #tpu.memory_space<vmem>>, %arg3: memref<32x128xbf16, #tpu.memory_space<vmem>>, %arg4: memref<1x32x2xf32, #tpu.memory_space<vmem>>) attributes {dimension_semantics = [#tpu.dimension_semantics<parallel>], iteration_bounds = array<i64: 1>, scalar_prefetch = 0 : i64, scratch_operands = 0 : i64, tpu.core_type = #tpu.core_type<tc>, window_params = [{transform_indices = @transform_0, window_bounds = array<i64: 144, 128>}, {pipeline_mode = #tpu.pipeline_mode<synchronous>, transform_indices = @transform_1, window_bounds = array<i64: 32, 144>}, {transform_indices = @transform_2, window_bounds = array<i64: 32, 128>}, {transform_indices = @transform_3, window_bounds = array<i64: 1, 32, 2>}]} {
    %c0 = arith.constant 0 : index
    %c0_0 = arith.constant 0 : index
    %0 = vector.load %arg2[%c0, %c0_0] : memref<32x144xbf16, #tpu.memory_space<vmem>>, vector<32x144xbf16>
    %c0_1 = arith.constant 0 : index
    %c0_2 = arith.constant 0 : index
    %1 = vector.load %arg1[%c0_1, %c0_2] : memref<144x128xbf16, #tpu.memory_space<vmem>>, vector<144x128xbf16>
    %cst = arith.constant dense<0.000000e+00> : vector<32x128xf32>
    %2 = tpu.matmul %0, %1, %cst {dimension_numbers = #tpu.dot_dimension_numbers<[1], [0], [0], [1], [0, 0, 1, 1], [], []>} : vector<32x144xbf16>, vector<144x128xbf16>, vector<32x128xf32> -> vector<32x128xf32>
    %3 = arith.truncf %2 : vector<32x128xf32> to vector<32x128xbf16>
    %c0_3 = arith.constant 0 : index
    %c0_4 = arith.constant 0 : index
    %4 = vector.load %arg3[%c0_3, %c0_4] : memref<32x128xbf16, #tpu.memory_space<vmem>>, vector<32x128xbf16>
    tpu.vector_store %arg3[%c0_3, %c0_4], %3 {strides = array<i32>} : memref<32x128xbf16, #tpu.memory_space<vmem>>, vector<32x128xbf16>,
    %cst_5 = arith.constant dense<0.000000e+00> : vector<32xf32>
    %5 = vector.multi_reduction <add>, %2, %cst_5 [1] : vector<32x128xf32> to vector<32xf32>
    %6 = vector.shape_cast %5 : vector<32xf32> to vector<32x1xf32>
    %7 = arith.mulf %2, %2 : vector<32x128xf32>
    %cst_6 = arith.constant dense<0.000000e+00> : vector<32xf32>
    %8 = vector.multi_reduction <add>, %7, %cst_6 [1] : vector<32x128xf32> to vector<32xf32>
    %9 = vector.shape_cast %8 : vector<32xf32> to vector<32x1xf32>
    %10 = tpu.concatenate %6, %9 in 1 : vector<32x1xf32>, vector<32x1xf32> -> vector<32x2xf32>
    %11 = vector.shape_cast %10 : vector<32x2xf32> to vector<1x32x2xf32>
    %c0_7 = arith.constant 0 : index
    %c0_8 = arith.constant 0 : index
    %c0_9 = arith.constant 0 : index
    %12 = vector.load %arg4[%c0_7, %c0_8, %c0_9] : memref<1x32x2xf32, #tpu.memory_space<vmem>>, vector<1x32x2xf32>
    tpu.vector_store %arg4[%c0_7, %c0_8, %c0_9], %11 {strides = array<i32>} : memref<1x32x2xf32, #tpu.memory_space<vmem>>, vector<1x32x2xf32>,
    return
  }
  func.func @transform_0(%arg0: i32) -> (i32, i32) {
    %c0_i32 = arith.constant 0 : i32
    %c0_i32_0 = arith.constant 0 : i32
    return %c0_i32, %arg0 : i32, i32
  }
  func.func @transform_1(%arg0: i32) -> (i32, i32) {
    %c0_i32 = arith.constant 0 : i32
    %c0_i32_0 = arith.constant 0 : i32
    %c0_i32_1 = arith.constant 0 : i32
    return %c0_i32, %c0_i32_0 : i32, i32
  }
  func.func @transform_2(%arg0: i32) -> (i32, i32) {
    %c0_i32 = arith.constant 0 : i32
    %c0_i32_0 = arith.constant 0 : i32
    return %c0_i32, %arg0 : i32, i32
  }
  func.func @transform_3(%arg0: i32) -> (i32, i32, i32) {
    %c0_i32 = arith.constant 0 : i32
    %c0_i32_0 = arith.constant 0 : i32
    %c0_i32_1 = arith.constant 0 : i32
    return %arg0, %c0_i32, %c0_i32_0 : i32, i32, i32
  }
}

module attributes {stable_mosaic.version = 11 : i64} {
  func.func @bn_relu_conv1x1_stats_kernel(%arg0: i32, %arg1: memref<32x128xbf16, #tpu.memory_space<vmem>>, %arg2: memref<32x1xf32, #tpu.memory_space<vmem>>, %arg3: memref<32x1xf32, #tpu.memory_space<vmem>>, %arg4: memref<32x32xbf16, #tpu.memory_space<vmem>>, %arg5: memref<32x128xbf16, #tpu.memory_space<vmem>>, %arg6: memref<1x32x2xf32, #tpu.memory_space<vmem>>) attributes {dimension_semantics = [#tpu.dimension_semantics<parallel>], iteration_bounds = array<i64: 1>, scalar_prefetch = 0 : i64, scratch_operands = 0 : i64, tpu.core_type = #tpu.core_type<tc>, window_params = [{transform_indices = @transform_0, window_bounds = array<i64: 32, 128>}, {pipeline_mode = #tpu.pipeline_mode<synchronous>, transform_indices = @transform_1, window_bounds = array<i64: 32, 1>}, {pipeline_mode = #tpu.pipeline_mode<synchronous>, transform_indices = @transform_2, window_bounds = array<i64: 32, 1>}, {pipeline_mode = #tpu.pipeline_mode<synchronous>, transform_indices = @transform_3, window_bounds = array<i64: 32, 32>}, {transform_indices = @transform_4, window_bounds = array<i64: 32, 128>}, {transform_indices = @transform_5, window_bounds = array<i64: 1, 32, 2>}]} {
    %c0 = arith.constant 0 : index
    %c0_0 = arith.constant 0 : index
    %0 = vector.load %arg1[%c0, %c0_0] : memref<32x128xbf16, #tpu.memory_space<vmem>>, vector<32x128xbf16>
    %1 = arith.extf %0 : vector<32x128xbf16> to vector<32x128xf32>
    %c0_1 = arith.constant 0 : index
    %c0_2 = arith.constant 0 : index
    %2 = vector.load %arg2[%c0_1, %c0_2] : memref<32x1xf32, #tpu.memory_space<vmem>>, vector<32x1xf32>
    %3 = vector.broadcast %2 : vector<32x1xf32> to vector<32x128xf32>
    %4 = arith.mulf %1, %3 : vector<32x128xf32>
    %c0_3 = arith.constant 0 : index
    %c0_4 = arith.constant 0 : index
    %5 = vector.load %arg3[%c0_3, %c0_4] : memref<32x1xf32, #tpu.memory_space<vmem>>, vector<32x1xf32>
    %6 = vector.broadcast %5 : vector<32x1xf32> to vector<32x128xf32>
    %7 = arith.addf %4, %6 : vector<32x128xf32>
    %cst = arith.constant 0.000000e+00 : f32
    %8 = vector.broadcast %cst : f32 to vector<32x128xf32>
    %9 = arith.maximumf %7, %8 : vector<32x128xf32>
    %10 = tpu.iota {dimensions = array<i32: 1>} : vector<32x128xi32>
    %c128_i32 = arith.constant 128 : i32
    %11 = arith.muli %arg0, %c128_i32 : i32
    %12 = vector.broadcast %11 : i32 to vector<32x128xi32>
    %13 = arith.addi %10, %12 : vector<32x128xi32>
    %c32_i32 = arith.constant 32 : i32
    %14 = vector.broadcast %c32_i32 : i32 to vector<32x128xi32>
    %15 = arith.cmpi slt, %13, %14 : vector<32x128xi32>
    %cst_5 = arith.constant 0.000000e+00 : f32
    %16 = vector.broadcast %cst_5 : f32 to vector<32x128xf32>
    %17 = arith.select %15, %9, %16 : vector<32x128xi1>, vector<32x128xf32>
    %c0_6 = arith.constant 0 : index
    %c0_7 = arith.constant 0 : index
    %18 = vector.load %arg4[%c0_6, %c0_7] : memref<32x32xbf16, #tpu.memory_space<vmem>>, vector<32x32xbf16>
    %19 = arith.truncf %17 : vector<32x128xf32> to vector<32x128xbf16>
    %cst_8 = arith.constant dense<0.000000e+00> : vector<32x128xf32>
    %20 = tpu.matmul %18, %19, %cst_8 {dimension_numbers = #tpu.dot_dimension_numbers<[1], [0], [0], [1], [0, 0, 1, 1], [], []>} : vector<32x32xbf16>, vector<32x128xbf16>, vector<32x128xf32> -> vector<32x128xf32>
    %21 = arith.truncf %20 : vector<32x128xf32> to vector<32x128xbf16>
    %c0_9 = arith.constant 0 : index
    %c0_10 = arith.constant 0 : index
    %22 = vector.load %arg5[%c0_9, %c0_10] : memref<32x128xbf16, #tpu.memory_space<vmem>>, vector<32x128xbf16>
    tpu.vector_store %arg5[%c0_9, %c0_10], %21 {strides = array<i32>} : memref<32x128xbf16, #tpu.memory_space<vmem>>, vector<32x128xbf16>,
    %cst_11 = arith.constant dense<0.000000e+00> : vector<32xf32>
    %23 = vector.multi_reduction <add>, %20, %cst_11 [1] : vector<32x128xf32> to vector<32xf32>
    %24 = vector.shape_cast %23 : vector<32xf32> to vector<32x1xf32>
    %25 = arith.mulf %20, %20 : vector<32x128xf32>
    %cst_12 = arith.constant dense<0.000000e+00> : vector<32xf32>
    %26 = vector.multi_reduction <add>, %25, %cst_12 [1] : vector<32x128xf32> to vector<32xf32>
    %27 = vector.shape_cast %26 : vector<32xf32> to vector<32x1xf32>
    %28 = tpu.concatenate %24, %27 in 1 : vector<32x1xf32>, vector<32x1xf32> -> vector<32x2xf32>
    %29 = vector.shape_cast %28 : vector<32x2xf32> to vector<1x32x2xf32>
    %c0_13 = arith.constant 0 : index
    %c0_14 = arith.constant 0 : index
    %c0_15 = arith.constant 0 : index
    %30 = vector.load %arg6[%c0_13, %c0_14, %c0_15] : memref<1x32x2xf32, #tpu.memory_space<vmem>>, vector<1x32x2xf32>
    tpu.vector_store %arg6[%c0_13, %c0_14, %c0_15], %29 {strides = array<i32>} : memref<1x32x2xf32, #tpu.memory_space<vmem>>, vector<1x32x2xf32>,
    return
  }
  func.func @transform_0(%arg0: i32) -> (i32, i32) {
    %c0_i32 = arith.constant 0 : i32
    %c0_i32_0 = arith.constant 0 : i32
    return %c0_i32, %arg0 : i32, i32
  }
  func.func @transform_1(%arg0: i32) -> (i32, i32) {
    %c0_i32 = arith.constant 0 : i32
    %c0_i32_0 = arith.constant 0 : i32
    %c0_i32_1 = arith.constant 0 : i32
    return %c0_i32, %c0_i32_0 : i32, i32
  }
  func.func @transform_2(%arg0: i32) -> (i32, i32) {
    %c0_i32 = arith.constant 0 : i32
    %c0_i32_0 = arith.constant 0 : i32
    %c0_i32_1 = arith.constant 0 : i32
    return %c0_i32, %c0_i32_0 : i32, i32
  }
  func.func @transform_3(%arg0: i32) -> (i32, i32) {
    %c0_i32 = arith.constant 0 : i32
    %c0_i32_0 = arith.constant 0 : i32
    %c0_i32_1 = arith.constant 0 : i32
    return %c0_i32, %c0_i32_0 : i32, i32
  }
  func.func @transform_4(%arg0: i32) -> (i32, i32) {
    %c0_i32 = arith.constant 0 : i32
    %c0_i32_0 = arith.constant 0 : i32
    return %c0_i32, %arg0 : i32, i32
  }
  func.func @transform_5(%arg0: i32) -> (i32, i32, i32) {
    %c0_i32 = arith.constant 0 : i32
    %c0_i32_0 = arith.constant 0 : i32
    %c0_i32_1 = arith.constant 0 : i32
    return %arg0, %c0_i32, %c0_i32_0 : i32, i32, i32
  }
}

module attributes {stable_mosaic.version = 11 : i64} {
  func.func @conv3x3_stats_kernel(%arg0: i32, %arg1: memref<432x128xbf16, #tpu.memory_space<vmem>>, %arg2: memref<16x432xbf16, #tpu.memory_space<vmem>>, %arg3: memref<16x128xbf16, #tpu.memory_space<vmem>>, %arg4: memref<1x16x2xf32, #tpu.memory_space<vmem>>) attributes {dimension_semantics = [#tpu.dimension_semantics<parallel>], iteration_bounds = array<i64: 1>, scalar_prefetch = 0 : i64, scratch_operands = 0 : i64, tpu.core_type = #tpu.core_type<tc>, window_params = [{transform_indices = @transform_0, window_bounds = array<i64: 432, 128>}, {pipeline_mode = #tpu.pipeline_mode<synchronous>, transform_indices = @transform_1, window_bounds = array<i64: 16, 432>}, {transform_indices = @transform_2, window_bounds = array<i64: 16, 128>}, {transform_indices = @transform_3, window_bounds = array<i64: 1, 16, 2>}]} {
    %c0 = arith.constant 0 : index
    %c0_0 = arith.constant 0 : index
    %0 = vector.load %arg2[%c0, %c0_0] : memref<16x432xbf16, #tpu.memory_space<vmem>>, vector<16x432xbf16>
    %c0_1 = arith.constant 0 : index
    %c0_2 = arith.constant 0 : index
    %1 = vector.load %arg1[%c0_1, %c0_2] : memref<432x128xbf16, #tpu.memory_space<vmem>>, vector<432x128xbf16>
    %cst = arith.constant dense<0.000000e+00> : vector<16x128xf32>
    %2 = tpu.matmul %0, %1, %cst {dimension_numbers = #tpu.dot_dimension_numbers<[1], [0], [0], [1], [0, 0, 1, 1], [], []>} : vector<16x432xbf16>, vector<432x128xbf16>, vector<16x128xf32> -> vector<16x128xf32>
    %3 = arith.truncf %2 : vector<16x128xf32> to vector<16x128xbf16>
    %c0_3 = arith.constant 0 : index
    %c0_4 = arith.constant 0 : index
    %4 = vector.load %arg3[%c0_3, %c0_4] : memref<16x128xbf16, #tpu.memory_space<vmem>>, vector<16x128xbf16>
    tpu.vector_store %arg3[%c0_3, %c0_4], %3 {strides = array<i32>} : memref<16x128xbf16, #tpu.memory_space<vmem>>, vector<16x128xbf16>,
    %cst_5 = arith.constant dense<0.000000e+00> : vector<16xf32>
    %5 = vector.multi_reduction <add>, %2, %cst_5 [1] : vector<16x128xf32> to vector<16xf32>
    %6 = vector.shape_cast %5 : vector<16xf32> to vector<16x1xf32>
    %7 = arith.mulf %2, %2 : vector<16x128xf32>
    %cst_6 = arith.constant dense<0.000000e+00> : vector<16xf32>
    %8 = vector.multi_reduction <add>, %7, %cst_6 [1] : vector<16x128xf32> to vector<16xf32>
    %9 = vector.shape_cast %8 : vector<16xf32> to vector<16x1xf32>
    %10 = tpu.concatenate %6, %9 in 1 : vector<16x1xf32>, vector<16x1xf32> -> vector<16x2xf32>
    %11 = vector.shape_cast %10 : vector<16x2xf32> to vector<1x16x2xf32>
    %c0_7 = arith.constant 0 : index
    %c0_8 = arith.constant 0 : index
    %c0_9 = arith.constant 0 : index
    %12 = vector.load %arg4[%c0_7, %c0_8, %c0_9] : memref<1x16x2xf32, #tpu.memory_space<vmem>>, vector<1x16x2xf32>
    tpu.vector_store %arg4[%c0_7, %c0_8, %c0_9], %11 {strides = array<i32>} : memref<1x16x2xf32, #tpu.memory_space<vmem>>, vector<1x16x2xf32>,
    return
  }
  func.func @transform_0(%arg0: i32) -> (i32, i32) {
    %c0_i32 = arith.constant 0 : i32
    %c0_i32_0 = arith.constant 0 : i32
    return %c0_i32, %arg0 : i32, i32
  }
  func.func @transform_1(%arg0: i32) -> (i32, i32) {
    %c0_i32 = arith.constant 0 : i32
    %c0_i32_0 = arith.constant 0 : i32
    %c0_i32_1 = arith.constant 0 : i32
    return %c0_i32, %c0_i32_0 : i32, i32
  }
  func.func @transform_2(%arg0: i32) -> (i32, i32) {
    %c0_i32 = arith.constant 0 : i32
    %c0_i32_0 = arith.constant 0 : i32
    return %c0_i32, %arg0 : i32, i32
  }
  func.func @transform_3(%arg0: i32) -> (i32, i32, i32) {
    %c0_i32 = arith.constant 0 : i32
    %c0_i32_0 = arith.constant 0 : i32
    %c0_i32_1 = arith.constant 0 : i32
    return %arg0, %c0_i32, %c0_i32_0 : i32, i32, i32
  }
}

module attributes {stable_mosaic.version = 11 : i64} {
  func.func @bn_apply_final_conv_kernel(%arg0: i32, %arg1: memref<8x512xbf16, #tpu.memory_space<vmem>>, %arg2: memref<8x1xf32, #tpu.memory_space<vmem>>, %arg3: memref<8x1xf32, #tpu.memory_space<vmem>>, %arg4: memref<3x8xbf16, #tpu.memory_space<vmem>>, %arg5: memref<3x1xf32, #tpu.memory_space<vmem>>, %arg6: memref<3x512xf32, #tpu.memory_space<vmem>>) attributes {dimension_semantics = [#tpu.dimension_semantics<parallel>], iteration_bounds = array<i64: 1>, scalar_prefetch = 0 : i64, scratch_operands = 0 : i64, tpu.core_type = #tpu.core_type<tc>, window_params = [{transform_indices = @transform_0, window_bounds = array<i64: 8, 512>}, {pipeline_mode = #tpu.pipeline_mode<synchronous>, transform_indices = @transform_1, window_bounds = array<i64: 8, 1>}, {pipeline_mode = #tpu.pipeline_mode<synchronous>, transform_indices = @transform_2, window_bounds = array<i64: 8, 1>}, {pipeline_mode = #tpu.pipeline_mode<synchronous>, transform_indices = @transform_3, window_bounds = array<i64: 3, 8>}, {pipeline_mode = #tpu.pipeline_mode<synchronous>, transform_indices = @transform_4, window_bounds = array<i64: 3, 1>}, {transform_indices = @transform_5, window_bounds = array<i64: 3, 512>}]} {
    %c0 = arith.constant 0 : index
    %c0_0 = arith.constant 0 : index
    %0 = vector.load %arg1[%c0, %c0_0] : memref<8x512xbf16, #tpu.memory_space<vmem>>, vector<8x512xbf16>
    %1 = arith.extf %0 : vector<8x512xbf16> to vector<8x512xf32>
    %c0_1 = arith.constant 0 : index
    %c0_2 = arith.constant 0 : index
    %2 = vector.load %arg2[%c0_1, %c0_2] : memref<8x1xf32, #tpu.memory_space<vmem>>, vector<8x1xf32>
    %3 = vector.broadcast %2 : vector<8x1xf32> to vector<8x512xf32>
    %4 = arith.mulf %1, %3 : vector<8x512xf32>
    %c0_3 = arith.constant 0 : index
    %c0_4 = arith.constant 0 : index
    %5 = vector.load %arg3[%c0_3, %c0_4] : memref<8x1xf32, #tpu.memory_space<vmem>>, vector<8x1xf32>
    %6 = vector.broadcast %5 : vector<8x1xf32> to vector<8x512xf32>
    %7 = arith.addf %4, %6 : vector<8x512xf32>
    %c0_5 = arith.constant 0 : index
    %c0_6 = arith.constant 0 : index
    %8 = vector.load %arg4[%c0_5, %c0_6] : memref<3x8xbf16, #tpu.memory_space<vmem>>, vector<3x8xbf16>
    %9 = arith.truncf %7 : vector<8x512xf32> to vector<8x512xbf16>
    %cst = arith.constant dense<0.000000e+00> : vector<3x512xf32>
    %10 = tpu.matmul %8, %9, %cst {dimension_numbers = #tpu.dot_dimension_numbers<[1], [0], [0], [1], [0, 0, 1, 1], [], []>} : vector<3x8xbf16>, vector<8x512xbf16>, vector<3x512xf32> -> vector<3x512xf32>
    %c0_7 = arith.constant 0 : index
    %c0_8 = arith.constant 0 : index
    %11 = vector.load %arg5[%c0_7, %c0_8] : memref<3x1xf32, #tpu.memory_space<vmem>>, vector<3x1xf32>
    %12 = vector.broadcast %11 : vector<3x1xf32> to vector<3x512xf32>
    %13 = arith.addf %10, %12 : vector<3x512xf32>
    %c0_9 = arith.constant 0 : index
    %c0_10 = arith.constant 0 : index
    %14 = vector.load %arg6[%c0_9, %c0_10] : memref<3x512xf32, #tpu.memory_space<vmem>>, vector<3x512xf32>
    tpu.vector_store %arg6[%c0_9, %c0_10], %13 {strides = array<i32>} : memref<3x512xf32, #tpu.memory_space<vmem>>, vector<3x512xf32>,
    return
  }
  func.func @transform_0(%arg0: i32) -> (i32, i32) {
    %c0_i32 = arith.constant 0 : i32
    %c0_i32_0 = arith.constant 0 : i32
    return %c0_i32, %arg0 : i32, i32
  }
  func.func @transform_1(%arg0: i32) -> (i32, i32) {
    %c0_i32 = arith.constant 0 : i32
    %c0_i32_0 = arith.constant 0 : i32
    %c0_i32_1 = arith.constant 0 : i32
    return %c0_i32, %c0_i32_0 : i32, i32
  }
  func.func @transform_2(%arg0: i32) -> (i32, i32) {
    %c0_i32 = arith.constant 0 : i32
    %c0_i32_0 = arith.constant 0 : i32
    %c0_i32_1 = arith.constant 0 : i32
    return %c0_i32, %c0_i32_0 : i32, i32
  }
  func.func @transform_3(%arg0: i32) -> (i32, i32) {
    %c0_i32 = arith.constant 0 : i32
    %c0_i32_0 = arith.constant 0 : i32
    %c0_i32_1 = arith.constant 0 : i32
    return %c0_i32, %c0_i32_0 : i32, i32
  }
  func.func @transform_4(%arg0: i32) -> (i32, i32) {
    %c0_i32 = arith.constant 0 : i32
    %c0_i32_0 = arith.constant 0 : i32
    %c0_i32_1 = arith.constant 0 : i32
    return %c0_i32, %c0_i32_0 : i32, i32
  }
  func.func @transform_5(%arg0: i32) -> (i32, i32) {
    %c0_i32 = arith.constant 0 : i32
    %c0_i32_0 = arith.constant 0 : i32
    return %c0_i32, %arg0 : i32, i32
  }
}

module attributes {stable_mosaic.version = 11 : i64} {
  func.func @conv3x3_stats_kernel(%arg0: i32, %arg1: memref<216x512xbf16, #tpu.memory_space<vmem>>, %arg2: memref<8x216xbf16, #tpu.memory_space<vmem>>, %arg3: memref<8x512xbf16, #tpu.memory_space<vmem>>, %arg4: memref<1x8x2xf32, #tpu.memory_space<vmem>>) attributes {dimension_semantics = [#tpu.dimension_semantics<parallel>], iteration_bounds = array<i64: 1>, scalar_prefetch = 0 : i64, scratch_operands = 0 : i64, tpu.core_type = #tpu.core_type<tc>, window_params = [{transform_indices = @transform_0, window_bounds = array<i64: 216, 512>}, {pipeline_mode = #tpu.pipeline_mode<synchronous>, transform_indices = @transform_1, window_bounds = array<i64: 8, 216>}, {transform_indices = @transform_2, window_bounds = array<i64: 8, 512>}, {transform_indices = @transform_3, window_bounds = array<i64: 1, 8, 2>}]} {
    %c0 = arith.constant 0 : index
    %c0_0 = arith.constant 0 : index
    %0 = vector.load %arg2[%c0, %c0_0] : memref<8x216xbf16, #tpu.memory_space<vmem>>, vector<8x216xbf16>
    %c0_1 = arith.constant 0 : index
    %c0_2 = arith.constant 0 : index
    %1 = vector.load %arg1[%c0_1, %c0_2] : memref<216x512xbf16, #tpu.memory_space<vmem>>, vector<216x512xbf16>
    %cst = arith.constant dense<0.000000e+00> : vector<8x512xf32>
    %2 = tpu.matmul %0, %1, %cst {dimension_numbers = #tpu.dot_dimension_numbers<[1], [0], [0], [1], [0, 0, 1, 1], [], []>} : vector<8x216xbf16>, vector<216x512xbf16>, vector<8x512xf32> -> vector<8x512xf32>
    %3 = arith.truncf %2 : vector<8x512xf32> to vector<8x512xbf16>
    %c0_3 = arith.constant 0 : index
    %c0_4 = arith.constant 0 : index
    %4 = vector.load %arg3[%c0_3, %c0_4] : memref<8x512xbf16, #tpu.memory_space<vmem>>, vector<8x512xbf16>
    tpu.vector_store %arg3[%c0_3, %c0_4], %3 {strides = array<i32>} : memref<8x512xbf16, #tpu.memory_space<vmem>>, vector<8x512xbf16>,
    %cst_5 = arith.constant dense<0.000000e+00> : vector<8xf32>
    %5 = vector.multi_reduction <add>, %2, %cst_5 [1] : vector<8x512xf32> to vector<8xf32>
    %6 = vector.shape_cast %5 : vector<8xf32> to vector<8x1xf32>
    %7 = arith.mulf %2, %2 : vector<8x512xf32>
    %cst_6 = arith.constant dense<0.000000e+00> : vector<8xf32>
    %8 = vector.multi_reduction <add>, %7, %cst_6 [1] : vector<8x512xf32> to vector<8xf32>
    %9 = vector.shape_cast %8 : vector<8xf32> to vector<8x1xf32>
    %10 = tpu.concatenate %6, %9 in 1 : vector<8x1xf32>, vector<8x1xf32> -> vector<8x2xf32>
    %11 = vector.shape_cast %10 : vector<8x2xf32> to vector<1x8x2xf32>
    %c0_7 = arith.constant 0 : index
    %c0_8 = arith.constant 0 : index
    %c0_9 = arith.constant 0 : index
    %12 = vector.load %arg4[%c0_7, %c0_8, %c0_9] : memref<1x8x2xf32, #tpu.memory_space<vmem>>, vector<1x8x2xf32>
    tpu.vector_store %arg4[%c0_7, %c0_8, %c0_9], %11 {strides = array<i32>} : memref<1x8x2xf32, #tpu.memory_space<vmem>>, vector<1x8x2xf32>,
    return
  }
  func.func @transform_0(%arg0: i32) -> (i32, i32) {
    %c0_i32 = arith.constant 0 : i32
    %c0_i32_0 = arith.constant 0 : i32
    return %c0_i32, %arg0 : i32, i32
  }
  func.func @transform_1(%arg0: i32) -> (i32, i32) {
    %c0_i32 = arith.constant 0 : i32
    %c0_i32_0 = arith.constant 0 : i32
    %c0_i32_1 = arith.constant 0 : i32
    return %c0_i32, %c0_i32_0 : i32, i32
  }
  func.func @transform_2(%arg0: i32) -> (i32, i32) {
    %c0_i32 = arith.constant 0 : i32
    %c0_i32_0 = arith.constant 0 : i32
    return %c0_i32, %arg0 : i32, i32
  }
  func.func @transform_3(%arg0: i32) -> (i32, i32, i32) {
    %c0_i32 = arith.constant 0 : i32
    %c0_i32_0 = arith.constant 0 : i32
    %c0_i32_1 = arith.constant 0 : i32
    return %arg0, %c0_i32, %c0_i32_0 : i32, i32, i32
  }
}

</mosaic_0001>

<llo_original>
// kernel: unet_forward.12
$region0: #{unet_forward.12}
  #allocation0 [shape = 'u32[]', space=smem, size = 0x4, offset = 0x4, fixed_abs, tag = 'smem constant byte address 0x4 - core index']
  #allocation1 [shape = 'u32[144,128]{1,0:T(1,128)}', space=vmem, size = 0x12000, scoped, tag = 'internal scratch']
  %s0 = inlined_call_operand.vmem [shape: bf16[8,512], index: 0, kind: input, shape index: {}]
  %s1 = inlined_call_operand.vmem [shape: f32[8,1], index: 1, kind: input, shape index: {}]
  %s2 = inlined_call_operand.vmem [shape: f32[8,1], index: 2, kind: input, shape index: {}]
  %s3 = inlined_call_operand.vmem [shape: bf16[8,8], index: 3, kind: input, shape index: {}]
  %s4 = inlined_call_operand.vmem [shape: bf16[8,512], index: 4, kind: output, shape index: {0}]
  %s5 = inlined_call_operand.vmem [shape: f32[1,8,2], index: 5, kind: output, shape index: {1}]
  %6 = xla_tuple %s4, %s5
  %s7 = sld [smem:[#allocation0]]
  $region34: #{unet_forward.12} parent=0
    _
  %s9 = ssub.s32 1, %s7
  %s10 = scalar_select 0, %s9, %s7
  // Predicated region
  $region2: #{unet_forward.12} parent=0 // pred_check
    _
  $region3: #{unet_forward.12} parent=0 // pred_check_branch
    %12 = sbr.rel (0) target = $region5
  $region4: #{unet_forward.12} parent=0 // pred_region
    _
  $region5: #{unet_forward.12} parent=0 // pred_fallthru
    _
  // Predicated region
  $region6: #{unet_forward.12} parent=0 // pred_check
    _
  $region7: #{unet_forward.12} parent=0 // pred_check_branch
    %14 = sbr.rel (0) target = $region9
  $region8: #{unet_forward.12} parent=0 // pred_region
    _
  $region9: #{unet_forward.12} parent=0 // pred_fallthru
    _
  // Predicated region
  $region10: #{unet_forward.12} parent=0 // pred_check
    _
  $region11: #{unet_forward.12} parent=0 // pred_check_branch
    %16 = sbr.rel (0) target = $region13
  $region12: #{unet_forward.12} parent=0 // pred_region
    _
  $region13: #{unet_forward.12} parent=0 // pred_fallthru
    _
  // Predicated region
  $region14: #{unet_forward.12} parent=0 // pred_check
    _
  $region15: #{unet_forward.12} parent=0 // pred_check_branch
    %18 = sbr.rel (0) target = $region17
  $region16: #{unet_forward.12} parent=0 // pred_region
    _
  $region17: #{unet_forward.12} parent=0 // pred_fallthru
    _
  %v20 = vld [vmem:[%s0] sm:$0xff]
  %v21 = vld [vmem:[%s0 + $0x8] sm:$0xff]
  %v22 = vunpack.c.l.bf16 %v20
  %v23 = vunpack.c.h.bf16 %v20
  %v24 = vunpack.c.l.bf16 %v21
  %v25 = vunpack.c.h.bf16 %v21
  %v26 = vld [vmem:[%s1] sm:$0xff]
  %28 = vset.pattern.permute.xlu0 0
  %29 = vperm.xlu0 %28, %v26
  %v30 = vpop.permute.xlu0 %29
  %v32 = vmul.f32 %v22, %v30
  %v33 = vmul.f32 %v23, %v30
  %v34 = vmul.f32 %v24, %v30
  %v35 = vmul.f32 %v25, %v30
  %v36 = vld [vmem:[%s2] sm:$0xff]
  %38 = vset.pattern.permute.xlu0 0
  %39 = vperm.xlu0 %38, %v36
  %v40 = vpop.permute.xlu0 %39
  %v42 = vadd.f32 %v32, %v40
  %v43 = vadd.f32 %v33, %v40
  %v44 = vadd.f32 %v34, %v40
  %v45 = vadd.f32 %v35, %v40
  %v46 = vmax.f32 %v42, 0.0
  %v47 = vmax.f32 %v43, 0.0
  %v48 = vmax.f32 %v44, 0.0
  %v49 = vmax.f32 %v45, 0.0
  %v50 = vld [vmem:[%s3] sm:$0xf]
  %v51 = vpack.c.bf16 %v46, %v46
  %v52 = vpack.c.bf16 %v47, %v47
  %v53 = vpack.c.bf16 %v48, %v48
  %v54 = vpack.c.bf16 %v49, %v49
  %vm55 = vcmask 64512
  %v57 = vsel %vm55, %v50, 0
  %vm59 = vcmask 1043456
  %v61 = vsel %vm59, %v51, 0
  %v64 = vsel %vm59, %v52, 0
  %v67 = vsel %vm59, %v53, 0
  %v70 = vsel %vm59, %v54, 0
  %72 = vmatprep.subr.bf16.mxu0 %v64
  %73 = vmatpush1.bf16.msra.mxu0 %v61
  %74 = vmatprep.subr.bf16.mxu0 0
  %75 = vmatpush1.bf16.msra.mxu0 0
  %76 = vmatprep.subr.bf16.mxu0 0
  %77 = vmatpush1.bf16.msra.mxu0 0
  %78 = vmatprep.subr.bf16.mxu0 0
  %79 = vmatpush1.bf16.msra.mxu0 0
  %80 = vmatprep.subr.bf16.mxu0 0
  %81 = vmatpush1.bf16.msra.mxu0 0
  %82 = vmatprep.subr.bf16.mxu0 0
  %83 = vmatpush1.bf16.msra.mxu0 0
  %84 = vmatprep.subr.bf16.mxu0 0
  %85 = vmatpush1.bf16.msra.mxu0 0
  %86 = vmatprep.subr.bf16.mxu0 0
  %87 = vmatpush1.bf16.msra.mxu0 0
  %88 = vmatprep.subr.bf16.mxu0 0
  %89 = vmatpush1.bf16.msra.mxu0 0
  %90 = vmatprep.subr.bf16.mxu0 0
  %91 = vmatpush1.bf16.msra.mxu0 0
  %92 = vmatprep.subr.bf16.mxu0 0
  %93 = vmatpush1.bf16.msra.mxu0 0
  %94 = vmatprep.subr.bf16.mxu0 0
  %95 = vmatpush1.bf16.msra.mxu0 0
  %96 = vmatprep.subr.bf16.mxu0 0
  %97 = vmatpush1.bf16.msra.mxu0 0
  %98 = vmatprep.subr.bf16.mxu0 0
  %99 = vmatpush1.bf16.msra.mxu0 0
  %100 = vmatprep.subr.bf16.mxu0 0
  %101 = vmatpush1.bf16.msra.mxu0 0
  %102 = vmatprep.subr.bf16.mxu0 0
  %103 = vmatpush1.bf16.msra.mxu0 0
  %104 = vmatprep.mubr.bf16.mxu0 0
  %105 = vmatmul.mubr.bf16.gmra.mrb[0].mxu0 %v57
  %v106 = vpop.f32.mrb[0].mxu0
  %v107 = vadd.f32 0.0, %v106
  %v108 = vpop.f32.mrb[0].mxu0
  %v109 = vadd.f32 0.0, %v108
  %v110 = vpop.f32.mrb[0].mxu0
  %v111 = vpop.f32.mrb[0].mxu0
  %112 = vdwg.mxu0
  %113 = vmatprep.subr.bf16.mxu0 %v70
  %114 = vmatpush1.bf16.msra.mxu0 %v67
  %115 = vmatprep.subr.bf16.mxu0 0
  %116 = vmatpush1.bf16.msra.mxu0 0
  %117 = vmatprep.subr.bf16.mxu0 0
  %118 = vmatpush1.bf16.msra.mxu0 0
  %119 = vmatprep.subr.bf16.mxu0 0
  %120 = vmatpush1.bf16.msra.mxu0 0
  %121 = vmatprep.subr.bf16.mxu0 0
  %122 = vmatpush1.bf16.msra.mxu0 0
  %123 = vmatprep.subr.bf16.mxu0 0
  %124 = vmatpush1.bf16.msra.mxu0 0
  %125 = vmatprep.subr.bf16.mxu0 0
  %126 = vmatpush1.bf16.msra.mxu0 0
  %127 = vmatprep.subr.bf16.mxu0 0
  %128 = vmatpush1.bf16.msra.mxu0 0
  %129 = vmatprep.subr.bf16.mxu0 0
  %130 = vmatpush1.bf16.msra.mxu0 0
  %131 = vmatprep.subr.bf16.mxu0 0
  %132 = vmatpush1.bf16.msra.mxu0 0
  %133 = vmatprep.subr.bf16.mxu0 0
  %134 = vmatpush1.bf16.msra.mxu0 0
  %135 = vmatprep.subr.bf16.mxu0 0
  %136 = vmatpush1.bf16.msra.mxu0 0
  %137 = vmatprep.subr.bf16.mxu0 0
  %138 = vmatpush1.bf16.msra.mxu0 0
  %139 = vmatprep.subr.bf16.mxu0 0
  %140 = vmatpush1.bf16.msra.mxu0 0
  %141 = vmatprep.subr.bf16.mxu0 0
  %142 = vmatpush1.bf16.msra.mxu0 0
  %143 = vmatprep.subr.bf16.mxu0 0
  %144 = vmatpush1.bf16.msra.mxu0 0
  %145 = vmatprep.mubr.bf16.mxu0 0
  %146 = vmatmul.mubr.bf16.gmra.mrb[0].mxu0 %v57
  %v147 = vpop.f32.mrb[0].mxu0
  %v148 = vadd.f32 0.0, %v147
  %v149 = vpop.f32.mrb[0].mxu0
  %v150 = vadd.f32 0.0, %v149
  %v151 = vpop.f32.mrb[0].mxu0
  %v152 = vpop.f32.mrb[0].mxu0
  %153 = vdwg.mxu0
  %v154 = vpack.c.bf16 %v107, %v107
  %v155 = vpack.c.bf16 %v109, %v109
  %v156 = vpack.c.bf16 %v148, %v148
  %v157 = vpack.c.bf16 %v150, %v150
  %v162 = vunpack.c.l.b16 %v154
  %v163 = vunpack.c.l.b16 %v155
  %v164 = vunpack.c.l.b16 %v156
  %v165 = vunpack.c.l.b16 %v157
  %v166 = vpack.c.b16 %v163, %v162
  %v167 = vpack.c.b16 %v165, %v164
  %170 = vst [vmem:[%s4] sm:$0xff] %v166
  %171 = vst [vmem:[%s4 + $0x8] sm:$0xff] %v167
  %v172 = vadd.f32 %v107, %v109
  %v173 = vadd.f32 %v172, %v148
  %v174 = vadd.f32 %v173, %v150
  %175 = vadd.xlane.f32.xlu0 %v174
  %v176 = vpop.xlane.xlu0 %175
  %v177 = vmul.f32 %v107, %v107
  %v178 = vmul.f32 %v109, %v109
  %v179 = vmul.f32 %v148, %v148
  %v180 = vmul.f32 %v150, %v150
  %v181 = vadd.f32 %v177, %v178
  %v182 = vadd.f32 %v181, %v179
  %v183 = vadd.f32 %v182, %v180
  %184 = vadd.xlane.f32.xlu0 %v183
  %v185 = vpop.xlane.xlu0 %184
  %vm186 = vcmask 7168
  %v187 = vsel %vm186, %v176, %v185
  %vm188 = vcmask 15360
  %189 = vst.msk [vmem:[%s5] sm:$0xff] %vm188, %v187
  // Predicated region
  $region18: #{unet_forward.12} parent=0 // pred_check
    _
  $region19: #{unet_forward.12} parent=0 // pred_check_branch
    %191 = sbr.rel (0) target = $region21
  $region20: #{unet_forward.12} parent=0 // pred_region
    _
  $region21: #{unet_forward.12} parent=0 // pred_fallthru
    _
  // Predicated region
  $region22: #{unet_forward.12} parent=0 // pred_check
    _
  $region23: #{unet_forward.12} parent=0 // pred_check_branch
    %193 = sbr.rel (0) target = $region25
  $region24: #{unet_forward.12} parent=0 // pred_region
    _
  $region25: #{unet_forward.12} parent=0 // pred_fallthru
    _
  // Predicated region
  $region26: #{unet_forward.12} parent=0 // pred_check
    _
  $region27: #{unet_forward.12} parent=0 // pred_check_branch
    %195 = sbr.rel (0) target = $region29
  $region28: #{unet_forward.12} parent=0 // pred_region
    _
  $region29: #{unet_forward.12} parent=0 // pred_fallthru
    _
  // Predicated region
  $region30: #{unet_forward.12} parent=0 // pred_check
    _
  $region31: #{unet_forward.12} parent=0 // pred_check_branch
    %197 = sbr.rel (0) target = $region33
  $region32: #{unet_forward.12} parent=0 // pred_region
    _
  $region33: #{unet_forward.12} parent=0 // pred_fallthru
    _

// kernel: unet_forward.11
$region0: #{unet_forward.11}
  #allocation0 [shape = 'u32[]', space=smem, size = 0x4, offset = 0x4, fixed_abs, tag = 'smem constant byte address 0x4 - core index']
  #allocation1 [shape = 'u32[144,128]{1,0:T(1,128)}', space=vmem, size = 0x12000, scoped, tag = 'internal scratch']
  %s0 = inlined_call_operand.vmem [shape: bf16[36,512], index: 0, kind: input, shape index: {}]
  %s1 = inlined_call_operand.vmem [shape: bf16[8,36], index: 1, kind: input, shape index: {}]
  %s2 = inlined_call_operand.vmem [shape: bf16[8,512], index: 2, kind: output, shape index: {0}]
  %s3 = inlined_call_operand.vmem [shape: f32[1,8,2], index: 3, kind: output, shape index: {1}]
  %4 = xla_tuple %s2, %s3
  %s5 = sld [smem:[#allocation0]]
  $region26: #{unet_forward.11} parent=0
    _
  %s7 = ssub.s32 1, %s5
  %s8 = scalar_select 0, %s7, %s5
  // Predicated region
  $region2: #{unet_forward.11} parent=0 // pred_check
    _
  $region3: #{unet_forward.11} parent=0 // pred_check_branch
    %10 = sbr.rel (0) target = $region5
  $region4: #{unet_forward.11} parent=0 // pred_region
    _
  $region5: #{unet_forward.11} parent=0 // pred_fallthru
    _
  // Predicated region
  $region6: #{unet_forward.11} parent=0 // pred_check
    _
  $region7: #{unet_forward.11} parent=0 // pred_check_branch
    %12 = sbr.rel (0) target = $region9
  $region8: #{unet_forward.11} parent=0 // pred_region
    _
  $region9: #{unet_forward.11} parent=0 // pred_fallthru
    _
  %v14 = vld [vmem:[%s1] sm:$0xf]
  %v15 = vld [vmem:[%s0] sm:$0xff]
  %v16 = vld [vmem:[%s0 + $0x8] sm:$0xff]
  %v17 = vld [vmem:[%s0 + $0x10] sm:$0xff]
  %v18 = vld [vmem:[%s0 + $0x18] sm:$0xff]
  %v19 = vld [vmem:[%s0 + $0x20] sm:$0xff]
  %v20 = vld [vmem:[%s0 + $0x28] sm:$0xff]
  %v21 = vld [vmem:[%s0 + $0x30] sm:$0xff]
  %v22 = vld [vmem:[%s0 + $0x38] sm:$0xff]
  %v23 = vld [vmem:[%s0 + $0x40] sm:$0x33]
  %v24 = vld [vmem:[%s0 + $0x48] sm:$0x33]
  %v35 = vunpack.c.l.b16 %v15
  %v36 = vunpack.c.h.b16 %v15
  %v37 = vunpack.c.l.b16 %v16
  %v38 = vunpack.c.h.b16 %v16
  %v39 = vunpack.c.l.b16 %v17
  %v40 = vunpack.c.h.b16 %v17
  %v41 = vunpack.c.l.b16 %v18
  %v42 = vunpack.c.h.b16 %v18
  %v43 = vunpack.c.l.b16 %v19
  %v44 = vunpack.c.h.b16 %v19
  %v45 = vunpack.c.l.b16 %v20
  %v46 = vunpack.c.h.b16 %v20
  %v47 = vunpack.c.l.b16 %v21
  %v48 = vunpack.c.h.b16 %v21
  %v49 = vunpack.c.l.b16 %v22
  %v50 = vunpack.c.h.b16 %v22
  %v51 = vunpack.c.l.b16 %v23
  %v52 = vunpack.c.h.b16 %v23
  %v53 = vunpack.c.l.b16 %v24
  %v54 = vunpack.c.h.b16 %v24
  %v55 = vpack.c.b16 %v39, %v35
  %v56 = vpack.c.b16 %v40, %v36
  %v57 = vpack.c.b16 %v41, %v37
  %v58 = vpack.c.b16 %v42, %v38
  %v59 = vpack.c.b16 %v47, %v43
  %v60 = vpack.c.b16 %v48, %v44
  %v61 = vpack.c.b16 %v49, %v45
  %v62 = vpack.c.b16 %v50, %v46
  %v63 = vpack.c.b16 %v51, %v51
  %v64 = vpack.c.b16 %v52, %v52
  %v65 = vpack.c.b16 %v53, %v53
  %v66 = vpack.c.b16 %v54, %v54
  %vm75 = vcmask 293888
  %v77 = vsel %vm75, %v14, 0
  %vm79 = vcmask 1041408
  %v81 = vsel %vm79, %v63, 0
  %v84 = vsel %vm79, %v64, 0
  %v87 = vsel %vm79, %v65, 0
  %v90 = vsel %vm79, %v66, 0
  %92 = vmatprep.subr.bf16.mxu0 %v56
  %93 = vmatpush1.bf16.msra.mxu0 %v55
  %94 = vmatprep.subr.bf16.mxu0 %v60
  %95 = vmatpush1.bf16.msra.mxu0 %v59
  %96 = vmatprep.subr.bf16.mxu0 %v84
  %97 = vmatpush1.bf16.msra.mxu0 %v81
  %98 = vmatprep.subr.bf16.mxu0 0
  %99 = vmatpush1.bf16.msra.mxu0 0
  %100 = vmatprep.subr.bf16.mxu0 0
  %101 = vmatpush1.bf16.msra.mxu0 0
  %102 = vmatprep.subr.bf16.mxu0 0
  %103 = vmatpush1.bf16.msra.mxu0 0
  %104 = vmatprep.subr.bf16.mxu0 0
  %105 = vmatpush1.bf16.msra.mxu0 0
  %106 = vmatprep.subr.bf16.mxu0 0
  %107 = vmatpush1.bf16.msra.mxu0 0
  %108 = vmatprep.subr.bf16.mxu0 0
  %109 = vmatpush1.bf16.msra.mxu0 0
  %110 = vmatprep.subr.bf16.mxu0 0
  %111 = vmatpush1.bf16.msra.mxu0 0
  %112 = vmatprep.subr.bf16.mxu0 0
  %113 = vmatpush1.bf16.msra.mxu0 0
  %114 = vmatprep.subr.bf16.mxu0 0
  %115 = vmatpush1.bf16.msra.mxu0 0
  %116 = vmatprep.subr.bf16.mxu0 0
  %117 = vmatpush1.bf16.msra.mxu0 0
  %118 = vmatprep.subr.bf16.mxu0 0
  %119 = vmatpush1.bf16.msra.mxu0 0
  %120 = vmatprep.subr.bf16.mxu0 0
  %121 = vmatpush1.bf16.msra.mxu0 0
  %122 = vmatprep.subr.bf16.mxu0 0
  %123 = vmatpush1.bf16.msra.mxu0 0
  %124 = vmatprep.mubr.bf16.mxu0 0
  %125 = vmatmul.mubr.bf16.gmra.mrb[0].mxu0 %v77
  %v126 = vpop.f32.mrb[0].mxu0
  %v127 = vadd.f32 0.0, %v126
  %v128 = vpop.f32.mrb[0].mxu0
  %v129 = vadd.f32 0.0, %v128
  %v130 = vpop.f32.mrb[0].mxu0
  %v131 = vpop.f32.mrb[0].mxu0
  %132 = vdwg.mxu0
  %133 = vmatprep.subr.bf16.mxu0 %v58
  %134 = vmatpush1.bf16.msra.mxu0 %v57
  %135 = vmatprep.subr.bf16.mxu0 %v62
  %136 = vmatpush1.bf16.msra.mxu0 %v61
  %137 = vmatprep.subr.bf16.mxu0 %v90
  %138 = vmatpush1.bf16.msra.mxu0 %v87
  %139 = vmatprep.subr.bf16.mxu0 0
  %140 = vmatpush1.bf16.msra.mxu0 0
  %141 = vmatprep.subr.bf16.mxu0 0
  %142 = vmatpush1.bf16.msra.mxu0 0
  %143 = vmatprep.subr.bf16.mxu0 0
  %144 = vmatpush1.bf16.msra.mxu0 0
  %145 = vmatprep.subr.bf16.mxu0 0
  %146 = vmatpush1.bf16.msra.mxu0 0
  %147 = vmatprep.subr.bf16.mxu0 0
  %148 = vmatpush1.bf16.msra.mxu0 0
  %149 = vmatprep.subr.bf16.mxu0 0
  %150 = vmatpush1.bf16.msra.mxu0 0
  %151 = vmatprep.subr.bf16.mxu0 0
  %152 = vmatpush1.bf16.msra.mxu0 0
  %153 = vmatprep.subr.bf16.mxu0 0
  %154 = vmatpush1.bf16.msra.mxu0 0
  %155 = vmatprep.subr.bf16.mxu0 0
  %156 = vmatpush1.bf16.msra.mxu0 0
  %157 = vmatprep.subr.bf16.mxu0 0
  %158 = vmatpush1.bf16.msra.mxu0 0
  %159 = vmatprep.subr.bf16.mxu0 0
  %160 = vmatpush1.bf16.msra.mxu0 0
  %161 = vmatprep.subr.bf16.mxu0 0
  %162 = vmatpush1.bf16.msra.mxu0 0
  %163 = vmatprep.subr.bf16.mxu0 0
  %164 = vmatpush1.bf16.msra.mxu0 0
  %165 = vmatprep.mubr.bf16.mxu0 0
  %166 = vmatmul.mubr.bf16.gmra.mrb[0].mxu0 %v77
  %v167 = vpop.f32.mrb[0].mxu0
  %v168 = vadd.f32 0.0, %v167
  %v169 = vpop.f32.mrb[0].mxu0
  %v170 = vadd.f32 0.0, %v169
  %v171 = vpop.f32.mrb[0].mxu0
  %v172 = vpop.f32.mrb[0].mxu0
  %173 = vdwg.mxu0
  %v174 = vpack.c.bf16 %v127, %v127
  %v175 = vpack.c.bf16 %v129, %v129
  %v176 = vpack.c.bf16 %v168, %v168
  %v177 = vpack.c.bf16 %v170, %v170
  %v182 = vunpack.c.l.b16 %v174
  %v183 = vunpack.c.l.b16 %v175
  %v184 = vunpack.c.l.b16 %v176
  %v185 = vunpack.c.l.b16 %v177
  %v186 = vpack.c.b16 %v183, %v182
  %v187 = vpack.c.b16 %v185, %v184
  %190 = vst [vmem:[%s2] sm:$0xff] %v186
  %191 = vst [vmem:[%s2 + $0x8] sm:$0xff] %v187
  %v192 = vadd.f32 %v127, %v129
  %v193 = vadd.f32 %v192, %v168
  %v194 = vadd.f32 %v193, %v170
  %195 = vadd.xlane.f32.xlu0 %v194
  %v196 = vpop.xlane.xlu0 %195
  %v197 = vmul.f32 %v127, %v127
  %v198 = vmul.f32 %v129, %v129
  %v199 = vmul.f32 %v168, %v168
  %v200 = vmul.f32 %v170, %v170
  %v201 = vadd.f32 %v197, %v198
  %v202 = vadd.f32 %v201, %v199
  %v203 = vadd.f32 %v202, %v200
  %204 = vadd.xlane.f32.xlu0 %v203
  %v205 = vpop.xlane.xlu0 %204
  %vm206 = vcmask 7168
  %v207 = vsel %vm206, %v196, %v205
  %vm208 = vcmask 15360
  %209 = vst.msk [vmem:[%s3] sm:$0xff] %vm208, %v207
  // Predicated region
  $region10: #{unet_forward.11} parent=0 // pred_check
    _
  $region11: #{unet_forward.11} parent=0 // pred_check_branch
    %211 = sbr.rel (0) target = $region13
  $region12: #{unet_forward.11} parent=0 // pred_region
    _
  $region13: #{unet_forward.11} parent=0 // pred_fallthru
    _
  // Predicated region
  $region14: #{unet_forward.11} parent=0 // pred_check
    _
  $region15: #{unet_forward.11} parent=0 // pred_check_branch
    %213 = sbr.rel (0) target = $region17
  $region16: #{unet_forward.11} parent=0 // pred_region
    _
  $region17: #{unet_forward.11} parent=0 // pred_fallthru
    _
  // Predicated region
  $region18: #{unet_forward.11} parent=0 // pred_check
    _
  $region19: #{unet_forward.11} parent=0 // pred_check_branch
    %215 = sbr.rel (0) target = $region21
  $region20: #{unet_forward.11} parent=0 // pred_region
    _
  $region21: #{unet_forward.11} parent=0 // pred_fallthru
    _
  // Predicated region
  $region22: #{unet_forward.11} parent=0 // pred_check
    _
  $region23: #{unet_forward.11} parent=0 // pred_check_branch
    %217 = sbr.rel (0) target = $region25
  $region24: #{unet_forward.11} parent=0 // pred_region
    _
  $region25: #{unet_forward.11} parent=0 // pred_fallthru
    _

// kernel: tile.20
$region0: #{tile.20}
  #allocation0 [shape = 's32[1]{0}', space=sflag, size = 0x4, scoped, tag = 'scoped memory for tile.20']
  %s0 = inlined_call_operand.vmem [shape: f32[8], index: 0, kind: input, shape index: {}]
  %s1 = inlined_call_operand.vmem [shape: f32[9,8], index: 1, kind: output, shape index: {}]
  // Predicated region
  $region2: #{tile.20} parent=0 // pred_check
    _
  $region3: #{tile.20} parent=0 // pred_check_branch
    %3 = sbr.rel (0) target = $region5
  $region4: #{tile.20} parent=0 // pred_region
    _
  $region5: #{tile.20} parent=0 // pred_fallthru
    _
  %v4 = vld [vmem:[%s0] ss:$0 sm:$0xff]
  %5 = vst [vmem:[%s1] sm:$0xff] %v4
  %s6 = scalar_lea.vmem %s1, 8
  %7 = vst [vmem:[%s6] sm:$0xff] %v4

// kernel: mul.85
$region0: #{mul.85}
  %s0 = inlined_call_operand.vmem [shape: f32[9,8], index: 0, kind: input, shape index: {}]
  %s1 = inlined_call_operand.vmem [shape: f32[72], index: 1, kind: output, shape index: {}]
  $region1: #{mul.85} parent=0
    #allocation0 [shape = 'u8[4096]{0}', space=vmem, size = 0x1000, scoped, tag = 'scoped mem for output reshape']
    %v2 = vld [vmem:[%s0] sm:$0x1]
    %vm3 = vcmask 64512
    %4 = vst.msk [vmem:[#allocation0] sm:$0x1] %vm3, %v2
    %s5 = scalar_lea.vmem %s0, 8
    %v6 = vld [vmem:[%s5] sm:$0x1]
    %7 = vrot.lane.b32.xlu0 %v6, 64
    %v8 = vpop.permute.xlu0 %7
    %vm9 = vcmask 589312
    %10 = vst.msk [vmem:[#allocation0] sm:$0x1] %vm9, %v8
    %s11 = scalar_lea.vmem %s0, 7
    %v12 = vld [vmem:[%s11] sm:$0x1]
    %13 = vrot.lane.b32.xlu0 %v12, 56
    %v14 = vpop.permute.xlu0 %13
    %vm15 = vcmask 523712
    %16 = vst.msk [vmem:[#allocation0] sm:$0x1] %vm15, %v14
    %s17 = scalar_lea.vmem %s0, 6
    %v18 = vld [vmem:[%s17] sm:$0x1]
    %19 = vrot.lane.b32.xlu0 %v18, 48
    %v20 = vpop.permute.xlu0 %19
    %vm21 = vcmask 458112
    %22 = vst.msk [vmem:[#allocation0] sm:$0x1] %vm21, %v20
    %s23 = scalar_lea.vmem %s0, 5
    %v24 = vld [vmem:[%s23] sm:$0x1]
    %25 = vrot.lane.b32.xlu0 %v24, 40
    %v26 = vpop.permute.xlu0 %25
    %vm27 = vcmask 392512
    %28 = vst.msk [vmem:[#allocation0] sm:$0x1] %vm27, %v26
    %s29 = scalar_lea.vmem %s0, 4
    %v30 = vld [vmem:[%s29] sm:$0x1]
    %31 = vrot.lane.b32.xlu0 %v30, 32
    %v32 = vpop.permute.xlu0 %31
    %vm33 = vcmask 326912
    %34 = vst.msk [vmem:[#allocation0] sm:$0x1] %vm33, %v32
    %s35 = scalar_lea.vmem %s0, 3
    %v36 = vld [vmem:[%s35] sm:$0x1]
    %37 = vrot.lane.b32.xlu0 %v36, 24
    %v38 = vpop.permute.xlu0 %37
    %vm39 = vcmask 261312
    %40 = vst.msk [vmem:[#allocation0] sm:$0x1] %vm39, %v38
    %s41 = scalar_lea.vmem %s0, 2
    %v42 = vld [vmem:[%s41] sm:$0x1]
    %43 = vrot.lane.b32.xlu0 %v42, 16
    %v44 = vpop.permute.xlu0 %43
    %vm45 = vcmask 195712
    %46 = vst.msk [vmem:[#allocation0] sm:$0x1] %vm45, %v44
    %s47 = scalar_lea.vmem %s0, 1
    %v48 = vld [vmem:[%s47] sm:$0x1]
    %49 = vrot.lane.b32.xlu0 %v48, 8
    %v50 = vpop.permute.xlu0 %49
    %vm51 = vcmask 130112
    %52 = vst.msk [vmem:[#allocation0] sm:$0x1] %vm51, %v50
    %s54 = sshllo.u32 0, 1
    %v56 = vld [vmem:[#allocation0] sm:%s54]
    %s57 = sshllo.u32 0, 1
    %58 = vst [vmem:[%s1] sm:%s57] %v56

// kernel: unet_forward.13
$region0: #{unet_forward.13}
  #allocation0 [shape = 'u32[]', space=smem, size = 0x4, offset = 0x4, fixed_abs, tag = 'smem constant byte address 0x4 - core index']
  #allocation1 [shape = 'u32[144,128]{1,0:T(1,128)}', space=vmem, size = 0x12000, scoped, tag = 'internal scratch']
  %s0 = inlined_call_operand.vmem [shape: bf16[72,128], index: 0, kind: input, shape index: {}]
  %s1 = inlined_call_operand.vmem [shape: bf16[16,72], index: 1, kind: input, shape index: {}]
  %s2 = inlined_call_operand.vmem [shape: bf16[16,128], index: 2, kind: output, shape index: {0}]
  %s3 = inlined_call_operand.vmem [shape: f32[1,16,2], index: 3, kind: output, shape index: {1}]
  %4 = xla_tuple %s2, %s3
  %s5 = sld [smem:[#allocation0]]
  $region26: #{unet_forward.13} parent=0
    _
  %s7 = ssub.s32 1, %s5
  %s8 = scalar_select 0, %s7, %s5
  // Predicated region
  $region2: #{unet_forward.13} parent=0 // pred_check
    _
  $region3: #{unet_forward.13} parent=0 // pred_check_branch
    %10 = sbr.rel (0) target = $region5
  $region4: #{unet_forward.13} parent=0 // pred_region
    _
  $region5: #{unet_forward.13} parent=0 // pred_fallthru
    _
  // Predicated region
  $region6: #{unet_forward.13} parent=0 // pred_check
    _
  $region7: #{unet_forward.13} parent=0 // pred_check_branch
    %12 = sbr.rel (0) target = $region9
  $region8: #{unet_forward.13} parent=0 // pred_region
    _
  $region9: #{unet_forward.13} parent=0 // pred_fallthru
    _
  %v14 = vld [vmem:[%s1] sm:$0xf]
  %v15 = vld [vmem:[%s1 + $0x4] sm:$0xf]
  %v16 = vld [vmem:[%s0] sm:$0xf]
  %v17 = vld [vmem:[%s0 + $0x4] sm:$0xf]
  %v18 = vld [vmem:[%s0 + $0x8] sm:$0xf]
  %v19 = vld [vmem:[%s0 + $0xc] sm:$0xf]
  %v20 = vld [vmem:[%s0 + $0x10] sm:$0xf]
  %v21 = vld [vmem:[%s0 + $0x14] sm:$0xf]
  %v22 = vld [vmem:[%s0 + $0x18] sm:$0xf]
  %v23 = vld [vmem:[%s0 + $0x1c] sm:$0xf]
  %v24 = vld [vmem:[%s0 + $0x20] sm:$0xf]
  %v27 = vunpack.c.l.b16 %v14
  %v28 = vunpack.c.l.b16 %v15
  %v29 = vpack.c.b16 %v28, %v27
  %v39 = vunpack.c.l.b16 %v16
  %v40 = vunpack.c.l.b16 %v17
  %v41 = vunpack.c.l.b16 %v18
  %v42 = vunpack.c.l.b16 %v19
  %v43 = vunpack.c.l.b16 %v20
  %v44 = vunpack.c.l.b16 %v21
  %v45 = vunpack.c.l.b16 %v22
  %v46 = vunpack.c.l.b16 %v23
  %v47 = vunpack.c.l.b16 %v24
  %v48 = vpack.c.b16 %v40, %v39
  %v49 = vpack.c.b16 %v42, %v41
  %v50 = vpack.c.b16 %v44, %v43
  %v51 = vpack.c.b16 %v46, %v45
  %v52 = vpack.c.b16 %v47, %v47
  %vm57 = vcmask 588800
  %v59 = vsel %vm57, %v29, 0
  %vm61 = vcmask 1043456
  %v63 = vsel %vm61, %v52, 0
  %65 = vmatprep.subr.bf16.mxu0 0
  %66 = vmatpush1.bf16.msra.mxu0 %v48
  %67 = vmatprep.subr.bf16.mxu0 0
  %68 = vmatpush1.bf16.msra.mxu0 %v49
  %69 = vmatprep.subr.bf16.mxu0 0
  %70 = vmatpush1.bf16.msra.mxu0 %v50
  %71 = vmatprep.subr.bf16.mxu0 0
  %72 = vmatpush1.bf16.msra.mxu0 %v51
  %73 = vmatprep.subr.bf16.mxu0 0
  %74 = vmatpush1.bf16.msra.mxu0 %v63
  %75 = vmatprep.subr.bf16.mxu0 0
  %76 = vmatpush1.bf16.msra.mxu0 0
  %77 = vmatprep.subr.bf16.mxu0 0
  %78 = vmatpush1.bf16.msra.mxu0 0
  %79 = vmatprep.subr.bf16.mxu0 0
  %80 = vmatpush1.bf16.msra.mxu0 0
  %81 = vmatprep.subr.bf16.mxu0 0
  %82 = vmatpush1.bf16.msra.mxu0 0
  %83 = vmatprep.subr.bf16.mxu0 0
  %84 = vmatpush1.bf16.msra.mxu0 0
  %85 = vmatprep.subr.bf16.mxu0 0
  %86 = vmatpush1.bf16.msra.mxu0 0
  %87 = vmatprep.subr.bf16.mxu0 0
  %88 = vmatpush1.bf16.msra.mxu0 0
  %89 = vmatprep.subr.bf16.mxu0 0
  %90 = vmatpush1.bf16.msra.mxu0 0
  %91 = vmatprep.subr.bf16.mxu0 0
  %92 = vmatpush1.bf16.msra.mxu0 0
  %93 = vmatprep.subr.bf16.mxu0 0
  %94 = vmatpush1.bf16.msra.mxu0 0
  %95 = vmatprep.subr.bf16.mxu0 0
  %96 = vmatpush1.bf16.msra.mxu0 0
  %97 = vmatprep.mubr.bf16.mxu0 0
  %98 = vmatmul.mubr.bf16.gmra.mrb[0].mxu0 %v59
  %v99 = vpop.f32.mrb[0].mxu0
  %v100 = vadd.f32 0.0, %v99
  %v101 = vpop.f32.mrb[0].mxu0
  %v102 = vpop.f32.mrb[0].mxu0
  %v103 = vadd.f32 0.0, %v102
  %v104 = vpop.f32.mrb[0].mxu0
  %105 = vdwg.mxu0
  %v106 = vpack.c.bf16 %v103, %v100
  %v108 = vunpack.c.l.b16 %v106
  %v109 = vunpack.c.h.b16 %v106
  %v110 = vpack.c.b16 %v108, %v108
  %v111 = vpack.c.b16 %v109, %v109
  %114 = vst [vmem:[%s2] sm:$0xf] %v110
  %115 = vst [vmem:[%s2 + $0x4] sm:$0xf] %v111
  %116 = vadd.xlane.f32.xlu0 %v100
  %v117 = vpop.xlane.xlu0 %116
  %118 = vadd.xlane.f32.xlu0 %v103
  %v119 = vpop.xlane.xlu0 %118
  %v120 = vmul.f32 %v100, %v100
  %v121 = vmul.f32 %v103, %v103
  %122 = vadd.xlane.f32.xlu0 %v120
  %v123 = vpop.xlane.xlu0 %122
  %124 = vadd.xlane.f32.xlu0 %v121
  %v125 = vpop.xlane.xlu0 %124
  %vm126 = vcmask 7168
  %v127 = vsel %vm126, %v117, %v123
  %v128 = vsel %vm126, %v119, %v125
  %vm129 = vcmask 15360
  %130 = vst.msk [vmem:[%s3] sm:$0xff] %vm129, %v127
  %131 = vst.msk [vmem:[%s3 + $0x8] sm:$0xff] %vm129, %v128
  // Predicated region
  $region10: #{unet_forward.13} parent=0 // pred_check
    _
  $region11: #{unet_forward.13} parent=0 // pred_check_branch
    %133 = sbr.rel (0) target = $region13
  $region12: #{unet_forward.13} parent=0 // pred_region
    _
  $region13: #{unet_forward.13} parent=0 // pred_fallthru
    _
  // Predicated region
  $region14: #{unet_forward.13} parent=0 // pred_check
    _
  $region15: #{unet_forward.13} parent=0 // pred_check_branch
    %135 = sbr.rel (0) target = $region17
  $region16: #{unet_forward.13} parent=0 // pred_region
    _
  $region17: #{unet_forward.13} parent=0 // pred_fallthru
    _
  // Predicated region
  $region18: #{unet_forward.13} parent=0 // pred_check
    _
  $region19: #{unet_forward.13} parent=0 // pred_check_branch
    %137 = sbr.rel (0) target = $region21
  $region20: #{unet_forward.13} parent=0 // pred_region
    _
  $region21: #{unet_forward.13} parent=0 // pred_fallthru
    _
  // Predicated region
  $region22: #{unet_forward.13} parent=0 // pred_check
    _
  $region23: #{unet_forward.13} parent=0 // pred_check_branch
    %139 = sbr.rel (0) target = $region25
  $region24: #{unet_forward.13} parent=0 // pred_region
    _
  $region25: #{unet_forward.13} parent=0 // pred_fallthru
    _

// kernel: unet_forward.14
$region0: #{unet_forward.14}
  #allocation0 [shape = 'u32[]', space=smem, size = 0x4, offset = 0x4, fixed_abs, tag = 'smem constant byte address 0x4 - core index']
  #allocation1 [shape = 'u32[144,128]{1,0:T(1,128)}', space=vmem, size = 0x12000, scoped, tag = 'internal scratch']
  %s0 = inlined_call_operand.vmem [shape: bf16[16,128], index: 0, kind: input, shape index: {}]
  %s1 = inlined_call_operand.vmem [shape: f32[16,1], index: 1, kind: input, shape index: {}]
  %s2 = inlined_call_operand.vmem [shape: f32[16,1], index: 2, kind: input, shape index: {}]
  %s3 = inlined_call_operand.vmem [shape: bf16[16,16], index: 3, kind: input, shape index: {}]
  %s4 = inlined_call_operand.vmem [shape: bf16[16,128], index: 4, kind: output, shape index: {0}]
  %s5 = inlined_call_operand.vmem [shape: f32[1,16,2], index: 5, kind: output, shape index: {1}]
  %6 = xla_tuple %s4, %s5
  %s7 = sld [smem:[#allocation0]]
  $region34: #{unet_forward.14} parent=0
    _
  %s9 = ssub.s32 1, %s7
  %s10 = scalar_select 0, %s9, %s7
  // Predicated region
  $region2: #{unet_forward.14} parent=0 // pred_check
    _
  $region3: #{unet_forward.14} parent=0 // pred_check_branch
    %12 = sbr.rel (0) target = $region5
  $region4: #{unet_forward.14} parent=0 // pred_region
    _
  $region5: #{unet_forward.14} parent=0 // pred_fallthru
    _
  // Predicated region
  $region6: #{unet_forward.14} parent=0 // pred_check
    _
  $region7: #{unet_forward.14} parent=0 // pred_check_branch
    %14 = sbr.rel (0) target = $region9
  $region8: #{unet_forward.14} parent=0 // pred_region
    _
  $region9: #{unet_forward.14} parent=0 // pred_fallthru
    _
  // Predicated region
  $region10: #{unet_forward.14} parent=0 // pred_check
    _
  $region11: #{unet_forward.14} parent=0 // pred_check_branch
    %16 = sbr.rel (0) target = $region13
  $region12: #{unet_forward.14} parent=0 // pred_region
    _
  $region13: #{unet_forward.14} parent=0 // pred_fallthru
    _
  // Predicated region
  $region14: #{unet_forward.14} parent=0 // pred_check
    _
  $region15: #{unet_forward.14} parent=0 // pred_check_branch
    %18 = sbr.rel (0) target = $region17
  $region16: #{unet_forward.14} parent=0 // pred_region
    _
  $region17: #{unet_forward.14} parent=0 // pred_fallthru
    _
  %v20 = vld [vmem:[%s0] sm:$0xf]
  %v21 = vld [vmem:[%s0 + $0x4] sm:$0xf]
  %v22 = vunpack.c.l.bf16 %v20
  %v23 = vunpack.c.l.bf16 %v21
  %v24 = vld [vmem:[%s1] sm:$0xff]
  %v25 = vld [vmem:[%s1 + $0x8] sm:$0xff]
  %27 = vset.pattern.permute.xlu0 0
  %28 = vperm.xlu0 %27, %v24
  %v29 = vpop.permute.xlu0 %28
  %32 = vset.pattern.permute.xlu0 0
  %33 = vperm.xlu0 %32, %v25
  %v34 = vpop.permute.xlu0 %33
  %v36 = vmul.f32 %v22, %v29
  %v37 = vmul.f32 %v23, %v34
  %v38 = vld [vmem:[%s2] sm:$0xff]
  %v39 = vld [vmem:[%s2 + $0x8] sm:$0xff]
  %41 = vset.pattern.permute.xlu0 0
  %42 = vperm.xlu0 %41, %v38
  %v43 = vpop.permute.xlu0 %42
  %46 = vset.pattern.permute.xlu0 0
  %47 = vperm.xlu0 %46, %v39
  %v48 = vpop.permute.xlu0 %47
  %v50 = vadd.f32 %v36, %v43
  %v51 = vadd.f32 %v37, %v48
  %v52 = vmax.f32 %v50, 0.0
  %v53 = vmax.f32 %v51, 0.0
  %v54 = vld [vmem:[%s3] sm:$0xf]
  %v55 = vld [vmem:[%s3 + $0x4] sm:$0xf]
  %v56 = vpack.c.bf16 %v53, %v52
  %v59 = vunpack.c.l.b16 %v54
  %v60 = vunpack.c.l.b16 %v55
  %v61 = vpack.c.b16 %v60, %v59
  %vm62 = vcmask 130048
  %v64 = vsel %vm62, %v61, 0
  %66 = vmatprep.subr.bf16.mxu0 0
  %67 = vmatpush1.bf16.msra.mxu0 %v56
  %68 = vmatprep.subr.bf16.mxu0 0
  %69 = vmatpush1.bf16.msra.mxu0 0
  %70 = vmatprep.subr.bf16.mxu0 0
  %71 = vmatpush1.bf16.msra.mxu0 0
  %72 = vmatprep.subr.bf16.mxu0 0
  %73 = vmatpush1.bf16.msra.mxu0 0
  %74 = vmatprep.subr.bf16.mxu0 0
  %75 = vmatpush1.bf16.msra.mxu0 0
  %76 = vmatprep.subr.bf16.mxu0 0
  %77 = vmatpush1.bf16.msra.mxu0 0
  %78 = vmatprep.subr.bf16.mxu0 0
  %79 = vmatpush1.bf16.msra.mxu0 0
  %80 = vmatprep.subr.bf16.mxu0 0
  %81 = vmatpush1.bf16.msra.mxu0 0
  %82 = vmatprep.subr.bf16.mxu0 0
  %83 = vmatpush1.bf16.msra.mxu0 0
  %84 = vmatprep.subr.bf16.mxu0 0
  %85 = vmatpush1.bf16.msra.mxu0 0
  %86 = vmatprep.subr.bf16.mxu0 0
  %87 = vmatpush1.bf16.msra.mxu0 0
  %88 = vmatprep.subr.bf16.mxu0 0
  %89 = vmatpush1.bf16.msra.mxu0 0
  %90 = vmatprep.subr.bf16.mxu0 0
  %91 = vmatpush1.bf16.msra.mxu0 0
  %92 = vmatprep.subr.bf16.mxu0 0
  %93 = vmatpush1.bf16.msra.mxu0 0
  %94 = vmatprep.subr.bf16.mxu0 0
  %95 = vmatpush1.bf16.msra.mxu0 0
  %96 = vmatprep.subr.bf16.mxu0 0
  %97 = vmatpush1.bf16.msra.mxu0 0
  %98 = vmatprep.mubr.bf16.mxu0 0
  %99 = vmatmul.mubr.bf16.gmra.mrb[0].mxu0 %v64
  %v100 = vpop.f32.mrb[0].mxu0
  %v101 = vadd.f32 0.0, %v100
  %v102 = vpop.f32.mrb[0].mxu0
  %v103 = vpop.f32.mrb[0].mxu0
  %v104 = vadd.f32 0.0, %v103
  %v105 = vpop.f32.mrb[0].mxu0
  %106 = vdwg.mxu0
  %v107 = vpack.c.bf16 %v104, %v101
  %v109 = vunpack.c.l.b16 %v107
  %v110 = vunpack.c.h.b16 %v107
  %v111 = vpack.c.b16 %v109, %v109
  %v112 = vpack.c.b16 %v110, %v110
  %115 = vst [vmem:[%s4] sm:$0xf] %v111
  %116 = vst [vmem:[%s4 + $0x4] sm:$0xf] %v112
  %117 = vadd.xlane.f32.xlu0 %v101
  %v118 = vpop.xlane.xlu0 %117
  %119 = vadd.xlane.f32.xlu0 %v104
  %v120 = vpop.xlane.xlu0 %119
  %v121 = vmul.f32 %v101, %v101
  %v122 = vmul.f32 %v104, %v104
  %123 = vadd.xlane.f32.xlu0 %v121
  %v124 = vpop.xlane.xlu0 %123
  %125 = vadd.xlane.f32.xlu0 %v122
  %v126 = vpop.xlane.xlu0 %125
  %vm127 = vcmask 7168
  %v128 = vsel %vm127, %v118, %v124
  %v129 = vsel %vm127, %v120, %v126
  %vm130 = vcmask 15360
  %131 = vst.msk [vmem:[%s5] sm:$0xff] %vm130, %v128
  %132 = vst.msk [vmem:[%s5 + $0x8] sm:$0xff] %vm130, %v129
  // Predicated region
  $region18: #{unet_forward.14} parent=0 // pred_check
    _
  $region19: #{unet_forward.14} parent=0 // pred_check_branch
    %134 = sbr.rel (0) target = $region21
  $region20: #{unet_forward.14} parent=0 // pred_region
    _
  $region21: #{unet_forward.14} parent=0 // pred_fallthru
    _
  // Predicated region
  $region22: #{unet_forward.14} parent=0 // pred_check
    _
  $region23: #{unet_forward.14} parent=0 // pred_check_branch
    %136 = sbr.rel (0) target = $region25
  $region24: #{unet_forward.14} parent=0 // pred_region
    _
  $region25: #{unet_forward.14} parent=0 // pred_fallthru
    _
  // Predicated region
  $region26: #{unet_forward.14} parent=0 // pred_check
    _
  $region27: #{unet_forward.14} parent=0 // pred_check_branch
    %138 = sbr.rel (0) target = $region29
  $region28: #{unet_forward.14} parent=0 // pred_region
    _
  $region29: #{unet_forward.14} parent=0 // pred_fallthru
    _
  // Predicated region
  $region30: #{unet_forward.14} parent=0 // pred_check
    _
  $region31: #{unet_forward.14} parent=0 // pred_check_branch
    %140 = sbr.rel (0) target = $region33
  $region32: #{unet_forward.14} parent=0 // pred_region
    _
  $region33: #{unet_forward.14} parent=0 // pred_fallthru
    _

// kernel: tile.24
$region0: #{tile.24}
  #allocation0 [shape = 's32[1]{0}', space=sflag, size = 0x4, scoped, tag = 'scoped memory for tile.24']
  %s0 = inlined_call_operand.vmem [shape: f32[16], index: 0, kind: input, shape index: {}]
  %s1 = inlined_call_operand.vmem [shape: f32[9,16], index: 1, kind: output, shape index: {}]
  // Predicated region
  $region2: #{tile.24} parent=0 // pred_check
    _
  $region3: #{tile.24} parent=0 // pred_check_branch
    %3 = sbr.rel (0) target = $region5
  $region4: #{tile.24} parent=0 // pred_region
    _
  $region5: #{tile.24} parent=0 // pred_fallthru
    _
  %v4 = vld [vmem:[%s0] ss:$0 sm:$0xff]
  %5 = vst [vmem:[%s1] sm:$0xff] %v4
  %s6 = scalar_lea.vmem %s1, 8
  %7 = vst [vmem:[%s6] sm:$0xff] %v4

// kernel: mul.95
$region0: #{mul.95}
  %s0 = inlined_call_operand.vmem [shape: f32[9,16], index: 0, kind: input, shape index: {}]
  %s1 = inlined_call_operand.vmem [shape: f32[144], index: 1, kind: output, shape index: {}]
  $region1: #{mul.95} parent=0
    #allocation0 [shape = 'u8[4096]{0}', space=vmem, size = 0x1000, scoped, tag = 'scoped mem for output reshape']
    %s2 = smov 3
    %v3 = vld [vmem:[%s0] ss:$8 sm:%s2]
    %vm4 = vcmask 130048
    %5 = vst.msk [vmem:[#allocation0] sm:$0x3] %vm4, %v3
    %s6 = scalar_lea.vmem %s0, 7
    %v7 = vld [vmem:[%s6] sm:$0x1]
    %8 = vrot.lane.b32.xlu0 %v7, 112
    %v9 = vpop.permute.xlu0 %8
    %vm10 = vcmask 1048448
    %11 = vst.msk [vmem:[#allocation0] sm:$0x1] %vm10, %v9
    %s12 = scalar_lea.vmem %s0, 6
    %v13 = vld [vmem:[%s12] sm:$0x1]
    %14 = vrot.lane.b32.xlu0 %v13, 96
    %v15 = vpop.permute.xlu0 %14
    %vm16 = vcmask 917248
    %17 = vst.msk [vmem:[#allocation0] sm:$0x1] %vm16, %v15
    %s18 = scalar_lea.vmem %s0, 5
    %v19 = vld [vmem:[%s18] sm:$0x1]
    %20 = vrot.lane.b32.xlu0 %v19, 80
    %v21 = vpop.permute.xlu0 %20
    %vm22 = vcmask 786048
    %23 = vst.msk [vmem:[#allocation0] sm:$0x1] %vm22, %v21
    %s24 = scalar_lea.vmem %s0, 4
    %v25 = vld [vmem:[%s24] sm:$0x1]
    %26 = vrot.lane.b32.xlu0 %v25, 64
    %v27 = vpop.permute.xlu0 %26
    %vm28 = vcmask 654848
    %29 = vst.msk [vmem:[#allocation0] sm:$0x1] %vm28, %v27
    %s30 = scalar_lea.vmem %s0, 3
    %v31 = vld [vmem:[%s30] sm:$0x1]
    %32 = vrot.lane.b32.xlu0 %v31, 48
    %v33 = vpop.permute.xlu0 %32
    %vm34 = vcmask 523648
    %35 = vst.msk [vmem:[#allocation0] sm:$0x1] %vm34, %v33
    %s36 = scalar_lea.vmem %s0, 2
    %v37 = vld [vmem:[%s36] sm:$0x1]
    %38 = vrot.lane.b32.xlu0 %v37, 32
    %v39 = vpop.permute.xlu0 %38
    %vm40 = vcmask 392448
    %41 = vst.msk [vmem:[#allocation0] sm:$0x1] %vm40, %v39
    %s42 = scalar_lea.vmem %s0, 1
    %v43 = vld [vmem:[%s42] sm:$0x1]
    %44 = vrot.lane.b32.xlu0 %v43, 16
    %v45 = vpop.permute.xlu0 %44
    %vm46 = vcmask 261248
    %47 = vst.msk [vmem:[#allocation0] sm:$0x1] %vm46, %v45
    %s49 = sshllo.u32 0, 2
    %v51 = vld [vmem:[#allocation0] sm:%s49]
    %s52 = sshllo.u32 0, 2
    %53 = vst [vmem:[%s1] sm:%s52] %v51

// kernel: tile.29
$region0: #{tile.29}
  #allocation0 [shape = 's32[1]{0}', space=sflag, size = 0x4, scoped, tag = 'scoped memory for tile.29']
  %s0 = inlined_call_operand.vmem [shape: f32[48], index: 0, kind: input, shape index: {}]
  %s1 = inlined_call_operand.vmem [shape: f32[9,48], index: 1, kind: output, shape index: {}]
  // Predicated region
  $region2: #{tile.29} parent=0 // pred_check
    _
  $region3: #{tile.29} parent=0 // pred_check_branch
    %3 = sbr.rel (0) target = $region5
  $region4: #{tile.29} parent=0 // pred_region
    _
  $region5: #{tile.29} parent=0 // pred_fallthru
    _
  %v4 = vld [vmem:[%s0] ss:$0 sm:$0xff]
  %5 = vst [vmem:[%s1] sm:$0xff] %v4
  %s6 = scalar_lea.vmem %s1, 8
  %7 = vst [vmem:[%s6] sm:$0xff] %v4

// kernel: mul.121
$region0: #{mul.121}
  %s0 = inlined_call_operand.vmem [shape: f32[9,48], index: 0, kind: input, shape index: {}]
  %s1 = inlined_call_operand.vmem [shape: f32[432], index: 1, kind: output, shape index: {}]
  $region1: #{mul.121} parent=0
    #allocation0 [shape = 'u8[4096]{0}', space=vmem, size = 0x1000, scoped, tag = 'scoped mem for output reshape']
    %s2 = smov 3
    %v3 = vld [vmem:[%s0] ss:$8 sm:%s2]
    %vm4 = vcmask 392192
    %5 = vst.msk [vmem:[#allocation0] ss:$3 sm:$0x3] %vm4, %v3
    %s6 = scalar_lea.vmem %s0, 5
    %v7 = vld [vmem:[%s6] sm:$0x1]
    %s8 = scalar_lea.vmem %s0, 5
    %v9 = vld [vmem:[%s8] sm:$0x1]
    %vm10 = vcmask 130048
    %v11 = vsel %vm10, %v9, %v7
    %12 = vrot.lane.b32.xlu0 %v11, 112
    %v13 = vpop.permute.xlu0 %12
    %vm14 = vcmask 261120
    %s15 = scalar_lea.vmem [#allocation0], 2
    %16 = vst.msk [vmem:[%s15] sm:$0x1] %vm14, %v13
    %vm17 = vcmask 1048448
    %s18 = scalar_lea.vmem [#allocation0], 1
    %19 = vst.msk [vmem:[%s18] sm:$0x1] %vm17, %v13
    %s20 = scalar_lea.vmem %s0, 2
    %v21 = vld [vmem:[%s20] sm:$0x1]
    %s22 = scalar_lea.vmem %s0, 2
    %v23 = vld [vmem:[%s22] sm:$0x1]
    %vm24 = vcmask 261120
    %v25 = vsel %vm24, %v23, %v21
    %26 = vrot.lane.b32.xlu0 %v25, 96
    %v27 = vpop.permute.xlu0 %26
    %vm28 = vcmask 130048
    %s29 = scalar_lea.vmem [#allocation0], 1
    %30 = vst.msk [vmem:[%s29] sm:$0x1] %vm28, %v27
    %vm31 = vcmask 1048320
    %32 = vst.msk [vmem:[#allocation0] sm:$0x1] %vm31, %v27
    %s33 = scalar_lea.vmem %s0, 7
    %v34 = vld [vmem:[%s33] sm:$0x1]
    %35 = vrot.lane.b32.xlu0 %v34, 80
    %v36 = vpop.permute.xlu0 %35
    %vm37 = vcmask 1048192
    %s38 = scalar_lea.vmem [#allocation0], 2
    %39 = vst.msk [vmem:[%s38] sm:$0x1] %vm37, %v36
    %s40 = scalar_lea.vmem %s0, 4
    %v41 = vld [vmem:[%s40] sm:$0x1]
    %42 = vrot.lane.b32.xlu0 %v41, 64
    %v43 = vpop.permute.xlu0 %42
    %vm44 = vcmask 916992
    %s45 = scalar_lea.vmem [#allocation0], 1
    %46 = vst.msk [vmem:[%s45] sm:$0x1] %vm44, %v43
    %s47 = scalar_lea.vmem %s0, 1
    %v48 = vld [vmem:[%s47] sm:$0x1]
    %49 = vrot.lane.b32.xlu0 %v48, 48
    %v50 = vpop.permute.xlu0 %49
    %vm51 = vcmask 785792
    %52 = vst.msk [vmem:[#allocation0] sm:$0x1] %vm51, %v50
    %s53 = scalar_lea.vmem %s0, 6
    %v54 = vld [vmem:[%s53] sm:$0x1]
    %55 = vrot.lane.b32.xlu0 %v54, 32
    %v56 = vpop.permute.xlu0 %55
    %vm57 = vcmask 654592
    %s58 = scalar_lea.vmem [#allocation0], 2
    %59 = vst.msk [vmem:[%s58] sm:$0x1] %vm57, %v56
    %s60 = scalar_lea.vmem %s0, 3
    %v61 = vld [vmem:[%s60] sm:$0x1]
    %62 = vrot.lane.b32.xlu0 %v61, 16
    %v63 = vpop.permute.xlu0 %62
    %vm64 = vcmask 523392
    %s65 = scalar_lea.vmem [#allocation0], 1
    %66 = vst.msk [vmem:[%s65] sm:$0x1] %vm64, %v63
    %s68 = sshllo.u32 0, 4
    %v70 = vld [vmem:[#allocation0] sm:%s68]
    %s71 = sshllo.u32 0, 4
    %72 = vst [vmem:[%s1] sm:%s71] %v70

// kernel: unet_forward.15
$region0: #{unet_forward.15}
  #allocation0 [shape = 'u32[]', space=smem, size = 0x4, offset = 0x4, fixed_abs, tag = 'smem constant byte address 0x4 - core index']
  #allocation1 [shape = 'u32[144,128]{1,0:T(1,128)}', space=vmem, size = 0x12000, scoped, tag = 'internal scratch']
  %s0 = inlined_call_operand.vmem [shape: bf16[144,128], index: 0, kind: input, shape index: {}]
  %s1 = inlined_call_operand.vmem [shape: bf16[32,144], index: 1, kind: input, shape index: {}]
  %s2 = inlined_call_operand.vmem [shape: bf16[32,128], index: 2, kind: output, shape index: {0}]
  %s3 = inlined_call_operand.vmem [shape: f32[1,32,2], index: 3, kind: output, shape index: {1}]
  %4 = xla_tuple %s2, %s3
  %s5 = sld [smem:[#allocation0]]
  $region26: #{unet_forward.15} parent=0
    _
  %s7 = ssub.s32 1, %s5
  %s8 = scalar_select 0, %s7, %s5
  // Predicated region
  $region2: #{unet_forward.15} parent=0 // pred_check
    _
  $region3: #{unet_forward.15} parent=0 // pred_check_branch
    %10 = sbr.rel (0) target = $region5
  $region4: #{unet_forward.15} parent=0 // pred_region
    _
  $region5: #{unet_forward.15} parent=0 // pred_fallthru
    _
  // Predicated region
  $region6: #{unet_forward.15} parent=0 // pred_check
    _
  $region7: #{unet_forward.15} parent=0 // pred_check_branch
    %12 = sbr.rel (0) target = $region9
  $region8: #{unet_forward.15} parent=0 // pred_region
    _
  $region9: #{unet_forward.15} parent=0 // pred_fallthru
    _
  %v14 = vld [vmem:[%s1] sm:$0xff]
  %v15 = vld [vmem:[%s1 + $0x8] sm:$0xff]
  %v16 = vld [vmem:[%s1 + $0x10] sm:$0xff]
  %v17 = vld [vmem:[%s1 + $0x18] sm:$0xff]
  %v18 = vld [vmem:[%s0] sm:$0xf]
  %v19 = vld [vmem:[%s0 + $0x4] sm:$0xf]
  %v20 = vld [vmem:[%s0 + $0x8] sm:$0xf]
  %v21 = vld [vmem:[%s0 + $0xc] sm:$0xf]
  %v22 = vld [vmem:[%s0 + $0x10] sm:$0xf]
  %v23 = vld [vmem:[%s0 + $0x14] sm:$0xf]
  %v24 = vld [vmem:[%s0 + $0x18] sm:$0xf]
  %v25 = vld [vmem:[%s0 + $0x1c] sm:$0xf]
  %v26 = vld [vmem:[%s0 + $0x20] sm:$0xf]
  %v27 = vld [vmem:[%s0 + $0x24] sm:$0xf]
  %v28 = vld [vmem:[%s0 + $0x28] sm:$0xf]
  %v29 = vld [vmem:[%s0 + $0x2c] sm:$0xf]
  %v30 = vld [vmem:[%s0 + $0x30] sm:$0xf]
  %v31 = vld [vmem:[%s0 + $0x34] sm:$0xf]
  %v32 = vld [vmem:[%s0 + $0x38] sm:$0xf]
  %v33 = vld [vmem:[%s0 + $0x3c] sm:$0xf]
  %v34 = vld [vmem:[%s0 + $0x40] sm:$0xf]
  %v35 = vld [vmem:[%s0 + $0x44] sm:$0xf]
  %v40 = vunpack.c.l.b16 %v14
  %v41 = vunpack.c.h.b16 %v14
  %v42 = vunpack.c.l.b16 %v15
  %v43 = vunpack.c.h.b16 %v15
  %v44 = vunpack.c.l.b16 %v16
  %v45 = vunpack.c.h.b16 %v16
  %v46 = vunpack.c.l.b16 %v17
  %v47 = vunpack.c.h.b16 %v17
  %v48 = vpack.c.b16 %v42, %v40
  %v49 = vpack.c.b16 %v43, %v41
  %v50 = vpack.c.b16 %v46, %v44
  %v51 = vpack.c.b16 %v47, %v45
  %v72 = vunpack.c.l.b16 %v18
  %v73 = vunpack.c.l.b16 %v19
  %v74 = vunpack.c.l.b16 %v20
  %v75 = vunpack.c.l.b16 %v21
  %v76 = vunpack.c.l.b16 %v22
  %v77 = vunpack.c.l.b16 %v23
  %v78 = vunpack.c.l.b16 %v24
  %v79 = vunpack.c.l.b16 %v25
  %v80 = vunpack.c.l.b16 %v26
  %v81 = vunpack.c.l.b16 %v27
  %v82 = vunpack.c.l.b16 %v28
  %v83 = vunpack.c.l.b16 %v29
  %v84 = vunpack.c.l.b16 %v30
  %v85 = vunpack.c.l.b16 %v31
  %v86 = vunpack.c.l.b16 %v32
  %v87 = vunpack.c.l.b16 %v33
  %v88 = vunpack.c.l.b16 %v34
  %v89 = vunpack.c.l.b16 %v35
  %v90 = vpack.c.b16 %v73, %v72
  %v91 = vpack.c.b16 %v75, %v74
  %v92 = vpack.c.b16 %v77, %v76
  %v93 = vpack.c.b16 %v79, %v78
  %v94 = vpack.c.b16 %v81, %v80
  %v95 = vpack.c.b16 %v83, %v82
  %v96 = vpack.c.b16 %v85, %v84
  %v97 = vpack.c.b16 %v87, %v86
  %v98 = vpack.c.b16 %v89, %v88
  %vm108 = vcmask 130048
  %v110 = vsel %vm108, %v49, 0
  %v113 = vsel %vm108, %v51, 0
  %115 = vmatprep.subr.bf16.mxu0 0
  %116 = vmatpush1.bf16.msra.mxu0 %v90
  %117 = vmatprep.subr.bf16.mxu0 0
  %118 = vmatpush1.bf16.msra.mxu0 %v91
  %119 = vmatprep.subr.bf16.mxu0 0
  %120 = vmatpush1.bf16.msra.mxu0 %v92
  %121 = vmatprep.subr.bf16.mxu0 0
  %122 = vmatpush1.bf16.msra.mxu0 %v93
  %123 = vmatprep.subr.bf16.mxu0 0
  %124 = vmatpush1.bf16.msra.mxu0 %v94
  %125 = vmatprep.subr.bf16.mxu0 0
  %126 = vmatpush1.bf16.msra.mxu0 %v95
  %127 = vmatprep.subr.bf16.mxu0 0
  %128 = vmatpush1.bf16.msra.mxu0 %v96
  %129 = vmatprep.subr.bf16.mxu0 0
  %130 = vmatpush1.bf16.msra.mxu0 %v97
  %131 = vmatprep.subr.bf16.mxu0 0
  %132 = vmatpush1.bf16.msra.mxu0 %v98
  %133 = vmatprep.subr.bf16.mxu0 0
  %134 = vmatpush1.bf16.msra.mxu0 0
  %135 = vmatprep.subr.bf16.mxu0 0
  %136 = vmatpush1.bf16.msra.mxu0 0
  %137 = vmatprep.subr.bf16.mxu0 0
  %138 = vmatpush1.bf16.msra.mxu0 0
  %139 = vmatprep.subr.bf16.mxu0 0
  %140 = vmatpush1.bf16.msra.mxu0 0
  %141 = vmatprep.subr.bf16.mxu0 0
  %142 = vmatpush1.bf16.msra.mxu0 0
  %143 = vmatprep.subr.bf16.mxu0 0
  %144 = vmatpush1.bf16.msra.mxu0 0
  %145 = vmatprep.subr.bf16.mxu0 0
  %146 = vmatpush1.bf16.msra.mxu0 0
  %147 = vmatprep.mubr.bf16.mxu0 %v110
  %148 = vmatmul.mubr.bf16.gmra.mrb[0].mxu0 %v48
  %v149 = vpop.f32.mrb[0].mxu0
  %v150 = vadd.f32 0.0, %v149
  %v151 = vpop.f32.mrb[0].mxu0
  %v152 = vpop.f32.mrb[0].mxu0
  %v153 = vadd.f32 0.0, %v152
  %v154 = vpop.f32.mrb[0].mxu0
  %155 = vmatprep.mubr.bf16.mxu0 %v113
  %156 = vmatmul.mubr.bf16.gmra.mrb[0].mxu0 %v50
  %v157 = vpop.f32.mrb[0].mxu0
  %v158 = vadd.f32 0.0, %v157
  %v159 = vpop.f32.mrb[0].mxu0
  %v160 = vpop.f32.mrb[0].mxu0
  %v161 = vadd.f32 0.0, %v160
  %v162 = vpop.f32.mrb[0].mxu0
  %163 = vdwg.mxu0
  %v164 = vpack.c.bf16 %v153, %v150
  %v165 = vpack.c.bf16 %v161, %v158
  %v168 = vunpack.c.l.b16 %v164
  %v169 = vunpack.c.h.b16 %v164
  %v170 = vunpack.c.l.b16 %v165
  %v171 = vunpack.c.h.b16 %v165
  %v172 = vpack.c.b16 %v168, %v168
  %v173 = vpack.c.b16 %v169, %v169
  %v174 = vpack.c.b16 %v170, %v170
  %v175 = vpack.c.b16 %v171, %v171
  %180 = vst [vmem:[%s2] sm:$0xf] %v172
  %181 = vst [vmem:[%s2 + $0x4] sm:$0xf] %v173
  %182 = vst [vmem:[%s2 + $0x8] sm:$0xf] %v174
  %183 = vst [vmem:[%s2 + $0xc] sm:$0xf] %v175
  %184 = vadd.xlane.f32.xlu0 %v150
  %v185 = vpop.xlane.xlu0 %184
  %186 = vadd.xlane.f32.xlu0 %v153
  %v187 = vpop.xlane.xlu0 %186
  %188 = vadd.xlane.f32.xlu0 %v158
  %v189 = vpop.xlane.xlu0 %188
  %190 = vadd.xlane.f32.xlu0 %v161
  %v191 = vpop.xlane.xlu0 %190
  %v192 = vmul.f32 %v150, %v150
  %v193 = vmul.f32 %v153, %v153
  %v194 = vmul.f32 %v158, %v158
  %v195 = vmul.f32 %v161, %v161
  %196 = vadd.xlane.f32.xlu0 %v192
  %v197 = vpop.xlane.xlu0 %196
  %198 = vadd.xlane.f32.xlu0 %v193
  %v199 = vpop.xlane.xlu0 %198
  %200 = vadd.xlane.f32.xlu0 %v194
  %v201 = vpop.xlane.xlu0 %200
  %202 = vadd.xlane.f32.xlu0 %v195
  %v203 = vpop.xlane.xlu0 %202
  %vm204 = vcmask 7168
  %v205 = vsel %vm204, %v185, %v197
  %v206 = vsel %vm204, %v187, %v199
  %v207 = vsel %vm204, %v189, %v201
  %v208 = vsel %vm204, %v191, %v203
  %vm209 = vcmask 15360
  %210 = vst.msk [vmem:[%s3] sm:$0xff] %vm209, %v205
  %211 = vst.msk [vmem:[%s3 + $0x8] sm:$0xff] %vm209, %v206
  %212 = vst.msk [vmem:[%s3 + $0x10] sm:$0xff] %vm209, %v207
  %213 = vst.msk [vmem:[%s3 + $0x18] sm:$0xff] %vm209, %v208
  // Predicated region
  $region10: #{unet_forward.15} parent=0 // pred_check
    _
  $region11: #{unet_forward.15} parent=0 // pred_check_branch
    %215 = sbr.rel (0) target = $region13
  $region12: #{unet_forward.15} parent=0 // pred_region
    _
  $region13: #{unet_forward.15} parent=0 // pred_fallthru
    _
  // Predicated region
  $region14: #{unet_forward.15} parent=0 // pred_check
    _
  $region15: #{unet_forward.15} parent=0 // pred_check_branch
    %217 = sbr.rel (0) target = $region17
  $region16: #{unet_forward.15} parent=0 // pred_region
    _
  $region17: #{unet_forward.15} parent=0 // pred_fallthru
    _
  // Predicated region
  $region18: #{unet_forward.15} parent=0 // pred_check
    _
  $region19: #{unet_forward.15} parent=0 // pred_check_branch
    %219 = sbr.rel (0) target = $region21
  $region20: #{unet_forward.15} parent=0 // pred_region
    _
  $region21: #{unet_forward.15} parent=0 // pred_fallthru
    _
  // Predicated region
  $region22: #{unet_forward.15} parent=0 // pred_check
    _
  $region23: #{unet_forward.15} parent=0 // pred_check_branch
    %221 = sbr.rel (0) target = $region25
  $region24: #{unet_forward.15} parent=0 // pred_region
    _
  $region25: #{unet_forward.15} parent=0 // pred_fallthru
    _

// kernel: unet_forward.16
$region0: #{unet_forward.16}
  #allocation0 [shape = 'u32[]', space=smem, size = 0x4, offset = 0x4, fixed_abs, tag = 'smem constant byte address 0x4 - core index']
  #allocation1 [shape = 'u32[144,128]{1,0:T(1,128)}', space=vmem, size = 0x12000, scoped, tag = 'internal scratch']
  %s0 = inlined_call_operand.vmem [shape: bf16[32,128], index: 0, kind: input, shape index: {}]
  %s1 = inlined_call_operand.vmem [shape: f32[32,1], index: 1, kind: input, shape index: {}]
  %s2 = inlined_call_operand.vmem [shape: f32[32,1], index: 2, kind: input, shape index: {}]
  %s3 = inlined_call_operand.vmem [shape: bf16[32,32], index: 3, kind: input, shape index: {}]
  %s4 = inlined_call_operand.vmem [shape: bf16[32,128], index: 4, kind: output, shape index: {0}]
  %s5 = inlined_call_operand.vmem [shape: f32[1,32,2], index: 5, kind: output, shape index: {1}]
  %6 = xla_tuple %s4, %s5
  %s7 = sld [smem:[#allocation0]]
  $region34: #{unet_forward.16} parent=0
    _
  %s9 = ssub.s32 1, %s7
  %s10 = scalar_select 0, %s9, %s7
  // Predicated region
  $region2: #{unet_forward.16} parent=0 // pred_check
    _
  $region3: #{unet_forward.16} parent=0 // pred_check_branch
    %12 = sbr.rel (0) target = $region5
  $region4: #{unet_forward.16} parent=0 // pred_region
    _
  $region5: #{unet_forward.16} parent=0 // pred_fallthru
    _
  // Predicated region
  $region6: #{unet_forward.16} parent=0 // pred_check
    _
  $region7: #{unet_forward.16} parent=0 // pred_check_branch
    %14 = sbr.rel (0) target = $region9
  $region8: #{unet_forward.16} parent=0 // pred_region
    _
  $region9: #{unet_forward.16} parent=0 // pred_fallthru
    _
  // Predicated region
  $region10: #{unet_forward.16} parent=0 // pred_check
    _
  $region11: #{unet_forward.16} parent=0 // pred_check_branch
    %16 = sbr.rel (0) target = $region13
  $region12: #{unet_forward.16} parent=0 // pred_region
    _
  $region13: #{unet_forward.16} parent=0 // pred_fallthru
    _
  // Predicated region
  $region14: #{unet_forward.16} parent=0 // pred_check
    _
  $region15: #{unet_forward.16} parent=0 // pred_check_branch
    %18 = sbr.rel (0) target = $region17
  $region16: #{unet_forward.16} parent=0 // pred_region
    _
  $region17: #{unet_forward.16} parent=0 // pred_fallthru
    _
  %v20 = vld [vmem:[%s0] sm:$0xf]
  %v21 = vld [vmem:[%s0 + $0x4] sm:$0xf]
  %v22 = vld [vmem:[%s0 + $0x8] sm:$0xf]
  %v23 = vld [vmem:[%s0 + $0xc] sm:$0xf]
  %v24 = vunpack.c.l.bf16 %v20
  %v25 = vunpack.c.l.bf16 %v21
  %v26 = vunpack.c.l.bf16 %v22
  %v27 = vunpack.c.l.bf16 %v23
  %v28 = vld [vmem:[%s1] sm:$0xff]
  %v29 = vld [vmem:[%s1 + $0x8] sm:$0xff]
  %v30 = vld [vmem:[%s1 + $0x10] sm:$0xff]
  %v31 = vld [vmem:[%s1 + $0x18] sm:$0xff]
  %33 = vset.pattern.permute.xlu0 0
  %34 = vperm.xlu0 %33, %v28
  %v35 = vpop.permute.xlu0 %34
  %38 = vset.pattern.permute.xlu0 0
  %39 = vperm.xlu0 %38, %v29
  %v40 = vpop.permute.xlu0 %39
  %43 = vset.pattern.permute.xlu0 0
  %44 = vperm.xlu0 %43, %v30
  %v45 = vpop.permute.xlu0 %44
  %48 = vset.pattern.permute.xlu0 0
  %49 = vperm.xlu0 %48, %v31
  %v50 = vpop.permute.xlu0 %49
  %v52 = vmul.f32 %v24, %v35
  %v53 = vmul.f32 %v25, %v40
  %v54 = vmul.f32 %v26, %v45
  %v55 = vmul.f32 %v27, %v50
  %v56 = vld [vmem:[%s2] sm:$0xff]
  %v57 = vld [vmem:[%s2 + $0x8] sm:$0xff]
  %v58 = vld [vmem:[%s2 + $0x10] sm:$0xff]
  %v59 = vld [vmem:[%s2 + $0x18] sm:$0xff]
  %61 = vset.pattern.permute.xlu0 0
  %62 = vperm.xlu0 %61, %v56
  %v63 = vpop.permute.xlu0 %62
  %66 = vset.pattern.permute.xlu0 0
  %67 = vperm.xlu0 %66, %v57
  %v68 = vpop.permute.xlu0 %67
  %71 = vset.pattern.permute.xlu0 0
  %72 = vperm.xlu0 %71, %v58
  %v73 = vpop.permute.xlu0 %72
  %76 = vset.pattern.permute.xlu0 0
  %77 = vperm.xlu0 %76, %v59
  %v78 = vpop.permute.xlu0 %77
  %v80 = vadd.f32 %v52, %v63
  %v81 = vadd.f32 %v53, %v68
  %v82 = vadd.f32 %v54, %v73
  %v83 = vadd.f32 %v55, %v78
  %v84 = vmax.f32 %v80, 0.0
  %v85 = vmax.f32 %v81, 0.0
  %v86 = vmax.f32 %v82, 0.0
  %v87 = vmax.f32 %v83, 0.0
  %v88 = vlaneseq
  %v89 = vand.u32 %v88, 127
  %s90 = smul.u32 0, 128
  %v91 = vstv %s90
  %v92 = vadd.s32 %v89, %v91
  %vm93 = vcmp.lt.s32.totalorder %v92, 32
  %v94 = vsel %vm93, %v84, 0.0
  %v95 = vsel %vm93, %v85, 0.0
  %v96 = vsel %vm93, %v86, 0.0
  %v97 = vsel %vm93, %v87, 0.0
  %v98 = vld [vmem:[%s3] sm:$0xf]
  %v99 = vld [vmem:[%s3 + $0x4] sm:$0xf]
  %v100 = vld [vmem:[%s3 + $0x8] sm:$0xf]
  %v101 = vld [vmem:[%s3 + $0xc] sm:$0xf]
  %v102 = vpack.c.bf16 %v95, %v94
  %v103 = vpack.c.bf16 %v97, %v96
  %v108 = vunpack.c.l.b16 %v98
  %v109 = vunpack.c.l.b16 %v99
  %v110 = vunpack.c.l.b16 %v100
  %v111 = vunpack.c.l.b16 %v101
  %v112 = vpack.c.b16 %v109, %v108
  %v113 = vpack.c.b16 %v111, %v110
  %vm114 = vcmask 261120
  %v116 = vsel %vm114, %v112, 0
  %v119 = vsel %vm114, %v113, 0
  %121 = vmatprep.subr.bf16.mxu0 0
  %122 = vmatpush1.bf16.msra.mxu0 %v102
  %123 = vmatprep.subr.bf16.mxu0 0
  %124 = vmatpush1.bf16.msra.mxu0 %v103
  %125 = vmatprep.subr.bf16.mxu0 0
  %126 = vmatpush1.bf16.msra.mxu0 0
  %127 = vmatprep.subr.bf16.mxu0 0
  %128 = vmatpush1.bf16.msra.mxu0 0
  %129 = vmatprep.subr.bf16.mxu0 0
  %130 = vmatpush1.bf16.msra.mxu0 0
  %131 = vmatprep.subr.bf16.mxu0 0
  %132 = vmatpush1.bf16.msra.mxu0 0
  %133 = vmatprep.subr.bf16.mxu0 0
  %134 = vmatpush1.bf16.msra.mxu0 0
  %135 = vmatprep.subr.bf16.mxu0 0
  %136 = vmatpush1.bf16.msra.mxu0 0
  %137 = vmatprep.subr.bf16.mxu0 0
  %138 = vmatpush1.bf16.msra.mxu0 0
  %139 = vmatprep.subr.bf16.mxu0 0
  %140 = vmatpush1.bf16.msra.mxu0 0
  %141 = vmatprep.subr.bf16.mxu0 0
  %142 = vmatpush1.bf16.msra.mxu0 0
  %143 = vmatprep.subr.bf16.mxu0 0
  %144 = vmatpush1.bf16.msra.mxu0 0
  %145 = vmatprep.subr.bf16.mxu0 0
  %146 = vmatpush1.bf16.msra.mxu0 0
  %147 = vmatprep.subr.bf16.mxu0 0
  %148 = vmatpush1.bf16.msra.mxu0 0
  %149 = vmatprep.subr.bf16.mxu0 0
  %150 = vmatpush1.bf16.msra.mxu0 0
  %151 = vmatprep.subr.bf16.mxu0 0
  %152 = vmatpush1.bf16.msra.mxu0 0
  %153 = vmatprep.mubr.bf16.mxu0 0
  %154 = vmatmul.mubr.bf16.gmra.mrb[0].mxu0 %v116
  %v155 = vpop.f32.mrb[0].mxu0
  %v156 = vadd.f32 0.0, %v155
  %v157 = vpop.f32.mrb[0].mxu0
  %v158 = vpop.f32.mrb[0].mxu0
  %v159 = vadd.f32 0.0, %v158
  %v160 = vpop.f32.mrb[0].mxu0
  %161 = vmatprep.mubr.bf16.mxu0 0
  %162 = vmatmul.mubr.bf16.gmra.mrb[0].mxu0 %v119
  %v163 = vpop.f32.mrb[0].mxu0
  %v164 = vadd.f32 0.0, %v163
  %v165 = vpop.f32.mrb[0].mxu0
  %v166 = vpop.f32.mrb[0].mxu0
  %v167 = vadd.f32 0.0, %v166
  %v168 = vpop.f32.mrb[0].mxu0
  %169 = vdwg.mxu0
  %v170 = vpack.c.bf16 %v159, %v156
  %v171 = vpack.c.bf16 %v167, %v164
  %v174 = vunpack.c.l.b16 %v170
  %v175 = vunpack.c.h.b16 %v170
  %v176 = vunpack.c.l.b16 %v171
  %v177 = vunpack.c.h.b16 %v171
  %v178 = vpack.c.b16 %v174, %v174
  %v179 = vpack.c.b16 %v175, %v175
  %v180 = vpack.c.b16 %v176, %v176
  %v181 = vpack.c.b16 %v177, %v177
  %186 = vst [vmem:[%s4] sm:$0xf] %v178
  %187 = vst [vmem:[%s4 + $0x4] sm:$0xf] %v179
  %188 = vst [vmem:[%s4 + $0x8] sm:$0xf] %v180
  %189 = vst [vmem:[%s4 + $0xc] sm:$0xf] %v181
  %190 = vadd.xlane.f32.xlu0 %v156
  %v191 = vpop.xlane.xlu0 %190
  %192 = vadd.xlane.f32.xlu0 %v159
  %v193 = vpop.xlane.xlu0 %192
  %194 = vadd.xlane.f32.xlu0 %v164
  %v195 = vpop.xlane.xlu0 %194
  %196 = vadd.xlane.f32.xlu0 %v167
  %v197 = vpop.xlane.xlu0 %196
  %v198 = vmul.f32 %v156, %v156
  %v199 = vmul.f32 %v159, %v159
  %v200 = vmul.f32 %v164, %v164
  %v201 = vmul.f32 %v167, %v167
  %202 = vadd.xlane.f32.xlu0 %v198
  %v203 = vpop.xlane.xlu0 %202
  %204 = vadd.xlane.f32.xlu0 %v199
  %v205 = vpop.xlane.xlu0 %204
  %206 = vadd.xlane.f32.xlu0 %v200
  %v207 = vpop.xlane.xlu0 %206
  %208 = vadd.xlane.f32.xlu0 %v201
  %v209 = vpop.xlane.xlu0 %208
  %vm210 = vcmask 7168
  %v211 = vsel %vm210, %v191, %v203
  %v212 = vsel %vm210, %v193, %v205
  %v213 = vsel %vm210, %v195, %v207
  %v214 = vsel %vm210, %v197, %v209
  %vm215 = vcmask 15360
  %216 = vst.msk [vmem:[%s5] sm:$0xff] %vm215, %v211
  %217 = vst.msk [vmem:[%s5 + $0x8] sm:$0xff] %vm215, %v212
  %218 = vst.msk [vmem:[%s5 + $0x10] sm:$0xff] %vm215, %v213
  %219 = vst.msk [vmem:[%s5 + $0x18] sm:$0xff] %vm215, %v214
  // Predicated region
  $region18: #{unet_forward.16} parent=0 // pred_check
    _
  $region19: #{unet_forward.16} parent=0 // pred_check_branch
    %221 = sbr.rel (0) target = $region21
  $region20: #{unet_forward.16} parent=0 // pred_region
    _
  $region21: #{unet_forward.16} parent=0 // pred_fallthru
    _
  // Predicated region
  $region22: #{unet_forward.16} parent=0 // pred_check
    _
  $region23: #{unet_forward.16} parent=0 // pred_check_branch
    %223 = sbr.rel (0) target = $region25
  $region24: #{unet_forward.16} parent=0 // pred_region
    _
  $region25: #{unet_forward.16} parent=0 // pred_fallthru
    _
  // Predicated region
  $region26: #{unet_forward.16} parent=0 // pred_check
    _
  $region27: #{unet_forward.16} parent=0 // pred_check_branch
    %225 = sbr.rel (0) target = $region29
  $region28: #{unet_forward.16} parent=0 // pred_region
    _
  $region29: #{unet_forward.16} parent=0 // pred_fallthru
    _
  // Predicated region
  $region30: #{unet_forward.16} parent=0 // pred_check
    _
  $region31: #{unet_forward.16} parent=0 // pred_check_branch
    %227 = sbr.rel (0) target = $region33
  $region32: #{unet_forward.16} parent=0 // pred_region
    _
  $region33: #{unet_forward.16} parent=0 // pred_fallthru
    _

// kernel: unet_forward.17
$region0: #{unet_forward.17}
  #allocation0 [shape = 'u32[]', space=smem, size = 0x4, offset = 0x4, fixed_abs, tag = 'smem constant byte address 0x4 - core index']
  #allocation1 [shape = 'u32[144,128]{1,0:T(1,128)}', space=vmem, size = 0x12000, scoped, tag = 'internal scratch']
  %s0 = inlined_call_operand.vmem [shape: bf16[432,128], index: 0, kind: input, shape index: {}]
  %s1 = inlined_call_operand.vmem [shape: bf16[16,432], index: 1, kind: input, shape index: {}]
  %s2 = inlined_call_operand.vmem [shape: bf16[16,128], index: 2, kind: output, shape index: {0}]
  %s3 = inlined_call_operand.vmem [shape: f32[1,16,2], index: 3, kind: output, shape index: {1}]
  %4 = xla_tuple %s2, %s3
  %s5 = sld [smem:[#allocation0]]
  $region26: #{unet_forward.17} parent=0
    _
  %s7 = ssub.s32 1, %s5
  %s8 = scalar_select 0, %s7, %s5
  // Predicated region
  $region2: #{unet_forward.17} parent=0 // pred_check
    _
  $region3: #{unet_forward.17} parent=0 // pred_check_branch
    %10 = sbr.rel (0) target = $region5
  $region4: #{unet_forward.17} parent=0 // pred_region
    _
  $region5: #{unet_forward.17} parent=0 // pred_fallthru
    _
  // Predicated region
  $region6: #{unet_forward.17} parent=0 // pred_check
    _
  $region7: #{unet_forward.17} parent=0 // pred_check_branch
    %12 = sbr.rel (0) target = $region9
  $region8: #{unet_forward.17} parent=0 // pred_region
    _
  $region9: #{unet_forward.17} parent=0 // pred_fallthru
    _
  %v14 = vld [vmem:[%s1] sm:$0xff]
  %v15 = vld [vmem:[%s1 + $0x8] sm:$0xff]
  %v16 = vld [vmem:[%s1 + $0x10] sm:$0xff]
  %v17 = vld [vmem:[%s1 + $0x18] sm:$0xff]
  %v18 = vld [vmem:[%s0] sm:$0xf]
  %v19 = vld [vmem:[%s0 + $0x4] sm:$0xf]
  %v20 = vld [vmem:[%s0 + $0x8] sm:$0xf]
  %v21 = vld [vmem:[%s0 + $0xc] sm:$0xf]
  %v22 = vld [vmem:[%s0 + $0x10] sm:$0xf]
  %v23 = vld [vmem:[%s0 + $0x14] sm:$0xf]
  %v24 = vld [vmem:[%s0 + $0x18] sm:$0xf]
  %v25 = vld [vmem:[%s0 + $0x1c] sm:$0xf]
  %v26 = vld [vmem:[%s0 + $0x20] sm:$0xf]
  %v27 = vld [vmem:[%s0 + $0x24] sm:$0xf]
  %v28 = vld [vmem:[%s0 + $0x28] sm:$0xf]
  %v29 = vld [vmem:[%s0 + $0x2c] sm:$0xf]
  %v30 = vld [vmem:[%s0 + $0x30] sm:$0xf]
  %v31 = vld [vmem:[%s0 + $0x34] sm:$0xf]
  %v32 = vld [vmem:[%s0 + $0x38] sm:$0xf]
  %v33 = vld [vmem:[%s0 + $0x3c] sm:$0xf]
  %v34 = vld [vmem:[%s0 + $0x40] sm:$0xf]
  %v35 = vld [vmem:[%s0 + $0x44] sm:$0xf]
  %v36 = vld [vmem:[%s0 + $0x48] sm:$0xf]
  %v37 = vld [vmem:[%s0 + $0x4c] sm:$0xf]
  %v38 = vld [vmem:[%s0 + $0x50] sm:$0xf]
  %v39 = vld [vmem:[%s0 + $0x54] sm:$0xf]
  %v40 = vld [vmem:[%s0 + $0x58] sm:$0xf]
  %v41 = vld [vmem:[%s0 + $0x5c] sm:$0xf]
  %v42 = vld [vmem:[%s0 + $0x60] sm:$0xf]
  %v43 = vld [vmem:[%s0 + $0x64] sm:$0xf]
  %v44 = vld [vmem:[%s0 + $0x68] sm:$0xf]
  %v45 = vld [vmem:[%s0 + $0x6c] sm:$0xf]
  %v46 = vld [vmem:[%s0 + $0x70] sm:$0xf]
  %v47 = vld [vmem:[%s0 + $0x74] sm:$0xf]
  %v48 = vld [vmem:[%s0 + $0x78] sm:$0xf]
  %v49 = vld [vmem:[%s0 + $0x7c] sm:$0xf]
  %v50 = vld [vmem:[%s0 + $0x80] sm:$0xf]
  %v51 = vld [vmem:[%s0 + $0x84] sm:$0xf]
  %v52 = vld [vmem:[%s0 + $0x88] sm:$0xf]
  %v53 = vld [vmem:[%s0 + $0x8c] sm:$0xf]
  %v54 = vld [vmem:[%s0 + $0x90] sm:$0xf]
  %v55 = vld [vmem:[%s0 + $0x94] sm:$0xf]
  %v56 = vld [vmem:[%s0 + $0x98] sm:$0xf]
  %v57 = vld [vmem:[%s0 + $0x9c] sm:$0xf]
  %v58 = vld [vmem:[%s0 + $0xa0] sm:$0xf]
  %v59 = vld [vmem:[%s0 + $0xa4] sm:$0xf]
  %v60 = vld [vmem:[%s0 + $0xa8] sm:$0xf]
  %v61 = vld [vmem:[%s0 + $0xac] sm:$0xf]
  %v62 = vld [vmem:[%s0 + $0xb0] sm:$0xf]
  %v63 = vld [vmem:[%s0 + $0xb4] sm:$0xf]
  %v64 = vld [vmem:[%s0 + $0xb8] sm:$0xf]
  %v65 = vld [vmem:[%s0 + $0xbc] sm:$0xf]
  %v66 = vld [vmem:[%s0 + $0xc0] sm:$0xf]
  %v67 = vld [vmem:[%s0 + $0xc4] sm:$0xf]
  %v68 = vld [vmem:[%s0 + $0xc8] sm:$0xf]
  %v69 = vld [vmem:[%s0 + $0xcc] sm:$0xf]
  %v70 = vld [vmem:[%s0 + $0xd0] sm:$0xf]
  %v71 = vld [vmem:[%s0 + $0xd4] sm:$0xf]
  %v76 = vunpack.c.l.b16 %v14
  %v77 = vunpack.c.h.b16 %v14
  %v78 = vunpack.c.l.b16 %v15
  %v79 = vunpack.c.h.b16 %v15
  %v80 = vunpack.c.l.b16 %v16
  %v81 = vunpack.c.h.b16 %v16
  %v82 = vunpack.c.l.b16 %v17
  %v83 = vunpack.c.h.b16 %v17
  %v84 = vpack.c.b16 %v80, %v76
  %v85 = vpack.c.b16 %v81, %v77
  %v86 = vpack.c.b16 %v82, %v78
  %v87 = vpack.c.b16 %v83, %v79
  %v145 = vunpack.c.l.b16 %v18
  %v146 = vunpack.c.l.b16 %v19
  %v147 = vunpack.c.l.b16 %v20
  %v148 = vunpack.c.l.b16 %v21
  %v149 = vunpack.c.l.b16 %v22
  %v150 = vunpack.c.l.b16 %v23
  %v151 = vunpack.c.l.b16 %v24
  %v152 = vunpack.c.l.b16 %v25
  %v153 = vunpack.c.l.b16 %v26
  %v154 = vunpack.c.l.b16 %v27
  %v155 = vunpack.c.l.b16 %v28
  %v156 = vunpack.c.l.b16 %v29
  %v157 = vunpack.c.l.b16 %v30
  %v158 = vunpack.c.l.b16 %v31
  %v159 = vunpack.c.l.b16 %v32
  %v160 = vunpack.c.l.b16 %v33
  %v161 = vunpack.c.l.b16 %v34
  %v162 = vunpack.c.l.b16 %v35
  %v163 = vunpack.c.l.b16 %v36
  %v164 = vunpack.c.l.b16 %v37
  %v165 = vunpack.c.l.b16 %v38
  %v166 = vunpack.c.l.b16 %v39
  %v167 = vunpack.c.l.b16 %v40
  %v168 = vunpack.c.l.b16 %v41
  %v169 = vunpack.c.l.b16 %v42
  %v170 = vunpack.c.l.b16 %v43
  %v171 = vunpack.c.l.b16 %v44
  %v172 = vunpack.c.l.b16 %v45
  %v173 = vunpack.c.l.b16 %v46
  %v174 = vunpack.c.l.b16 %v47
  %v175 = vunpack.c.l.b16 %v48
  %v176 = vunpack.c.l.b16 %v49
  %v177 = vunpack.c.l.b16 %v50
  %v178 = vunpack.c.l.b16 %v51
  %v179 = vunpack.c.l.b16 %v52
  %v180 = vunpack.c.l.b16 %v53
  %v181 = vunpack.c.l.b16 %v54
  %v182 = vunpack.c.l.b16 %v55
  %v183 = vunpack.c.l.b16 %v56
  %v184 = vunpack.c.l.b16 %v57
  %v185 = vunpack.c.l.b16 %v58
  %v186 = vunpack.c.l.b16 %v59
  %v187 = vunpack.c.l.b16 %v60
  %v188 = vunpack.c.l.b16 %v61
  %v189 = vunpack.c.l.b16 %v62
  %v190 = vunpack.c.l.b16 %v63
  %v191 = vunpack.c.l.b16 %v64
  %v192 = vunpack.c.l.b16 %v65
  %v193 = vunpack.c.l.b16 %v66
  %v194 = vunpack.c.l.b16 %v67
  %v195 = vunpack.c.l.b16 %v68
  %v196 = vunpack.c.l.b16 %v69
  %v197 = vunpack.c.l.b16 %v70
  %v198 = vunpack.c.l.b16 %v71
  %v199 = vpack.c.b16 %v146, %v145
  %v200 = vpack.c.b16 %v148, %v147
  %v201 = vpack.c.b16 %v150, %v149
  %v202 = vpack.c.b16 %v152, %v151
  %v203 = vpack.c.b16 %v154, %v153
  %v204 = vpack.c.b16 %v156, %v155
  %v205 = vpack.c.b16 %v158, %v157
  %v206 = vpack.c.b16 %v160, %v159
  %v207 = vpack.c.b16 %v162, %v161
  %v208 = vpack.c.b16 %v164, %v163
  %v209 = vpack.c.b16 %v166, %v165
  %v210 = vpack.c.b16 %v168, %v167
  %v211 = vpack.c.b16 %v170, %v169
  %v212 = vpack.c.b16 %v172, %v171
  %v213 = vpack.c.b16 %v174, %v173
  %v214 = vpack.c.b16 %v176, %v175
  %v215 = vpack.c.b16 %v178, %v177
  %v216 = vpack.c.b16 %v180, %v179
  %v217 = vpack.c.b16 %v182, %v181
  %v218 = vpack.c.b16 %v184, %v183
  %v219 = vpack.c.b16 %v186, %v185
  %v220 = vpack.c.b16 %v188, %v187
  %v221 = vpack.c.b16 %v190, %v189
  %v222 = vpack.c.b16 %v192, %v191
  %v223 = vpack.c.b16 %v194, %v193
  %v224 = vpack.c.b16 %v196, %v195
  %v225 = vpack.c.b16 %v198, %v197
  %vm253 = vcmask 392192
  %v255 = vsel %vm253, %v87, 0
  %257 = vmatprep.subr.bf16.mxu0 0
  %258 = vmatpush1.bf16.msra.mxu0 %v199
  %259 = vmatprep.subr.bf16.mxu0 0
  %260 = vmatpush1.bf16.msra.mxu0 %v200
  %261 = vmatprep.subr.bf16.mxu0 0
  %262 = vmatpush1.bf16.msra.mxu0 %v201
  %263 = vmatprep.subr.bf16.mxu0 0
  %264 = vmatpush1.bf16.msra.mxu0 %v202
  %265 = vmatprep.subr.bf16.mxu0 0
  %266 = vmatpush1.bf16.msra.mxu0 %v203
  %267 = vmatprep.subr.bf16.mxu0 0
  %268 = vmatpush1.bf16.msra.mxu0 %v204
  %269 = vmatprep.subr.bf16.mxu0 0
  %270 = vmatpush1.bf16.msra.mxu0 %v205
  %271 = vmatprep.subr.bf16.mxu0 0
  %272 = vmatpush1.bf16.msra.mxu0 %v206
  %273 = vmatprep.subr.bf16.mxu0 0
  %274 = vmatpush1.bf16.msra.mxu0 %v207
  %275 = vmatprep.subr.bf16.mxu0 0
  %276 = vmatpush1.bf16.msra.mxu0 %v208
  %277 = vmatprep.subr.bf16.mxu0 0
  %278 = vmatpush1.bf16.msra.mxu0 %v209
  %279 = vmatprep.subr.bf16.mxu0 0
  %280 = vmatpush1.bf16.msra.mxu0 %v210
  %281 = vmatprep.subr.bf16.mxu0 0
  %282 = vmatpush1.bf16.msra.mxu0 %v211
  %283 = vmatprep.subr.bf16.mxu0 0
  %284 = vmatpush1.bf16.msra.mxu0 %v212
  %285 = vmatprep.subr.bf16.mxu0 0
  %286 = vmatpush1.bf16.msra.mxu0 %v213
  %287 = vmatprep.subr.bf16.mxu0 0
  %288 = vmatpush1.bf16.msra.mxu0 %v214
  %289 = vmatprep.mubr.bf16.mxu0 %v85
  %290 = vmatmul.mubr.bf16.gmra.mrb[0].mxu0 %v84
  %v291 = vpop.f32.mrb[0].mxu0
  %v292 = vadd.f32 0.0, %v291
  %v293 = vpop.f32.mrb[0].mxu0
  %v294 = vpop.f32.mrb[0].mxu0
  %v295 = vadd.f32 0.0, %v294
  %v296 = vpop.f32.mrb[0].mxu0
  %297 = vdwg.mxu0
  %298 = vmatprep.subr.bf16.mxu0 0
  %299 = vmatpush1.bf16.msra.mxu0 %v215
  %300 = vmatprep.subr.bf16.mxu0 0
  %301 = vmatpush1.bf16.msra.mxu0 %v216
  %302 = vmatprep.subr.bf16.mxu0 0
  %303 = vmatpush1.bf16.msra.mxu0 %v217
  %304 = vmatprep.subr.bf16.mxu0 0
  %305 = vmatpush1.bf16.msra.mxu0 %v218
  %306 = vmatprep.subr.bf16.mxu0 0
  %307 = vmatpush1.bf16.msra.mxu0 %v219
  %308 = vmatprep.subr.bf16.mxu0 0
  %309 = vmatpush1.bf16.msra.mxu0 %v220
  %310 = vmatprep.subr.bf16.mxu0 0
  %311 = vmatpush1.bf16.msra.mxu0 %v221
  %312 = vmatprep.subr.bf16.mxu0 0
  %313 = vmatpush1.bf16.msra.mxu0 %v222
  %314 = vmatprep.subr.bf16.mxu0 0
  %315 = vmatpush1.bf16.msra.mxu0 %v223
  %316 = vmatprep.subr.bf16.mxu0 0
  %317 = vmatpush1.bf16.msra.mxu0 %v224
  %318 = vmatprep.subr.bf16.mxu0 0
  %319 = vmatpush1.bf16.msra.mxu0 %v225
  %320 = vmatprep.subr.bf16.mxu0 0
  %321 = vmatpush1.bf16.msra.mxu0 0
  %322 = vmatprep.subr.bf16.mxu0 0
  %323 = vmatpush1.bf16.msra.mxu0 0
  %324 = vmatprep.subr.bf16.mxu0 0
  %325 = vmatpush1.bf16.msra.mxu0 0
  %326 = vmatprep.subr.bf16.mxu0 0
  %327 = vmatpush1.bf16.msra.mxu0 0
  %328 = vmatprep.subr.bf16.mxu0 0
  %329 = vmatpush1.bf16.msra.mxu0 0
  %330 = vmatprep.mubr.bf16.mxu0 %v255
  %331 = vmatmul.mubr.bf16.gmra.mrb[0].mxu0 %v86
  %v332 = vpop.f32.mrb[0].mxu0
  %v333 = vadd.f32 %v292, %v332
  %v334 = vpop.f32.mrb[0].mxu0
  %v335 = vpop.f32.mrb[0].mxu0
  %v336 = vadd.f32 %v295, %v335
  %v337 = vpop.f32.mrb[0].mxu0
  %338 = vdwg.mxu0
  %v339 = vpack.c.bf16 %v336, %v333
  %v341 = vunpack.c.l.b16 %v339
  %v342 = vunpack.c.h.b16 %v339
  %v343 = vpack.c.b16 %v341, %v341
  %v344 = vpack.c.b16 %v342, %v342
  %347 = vst [vmem:[%s2] sm:$0xf] %v343
  %348 = vst [vmem:[%s2 + $0x4] sm:$0xf] %v344
  %349 = vadd.xlane.f32.xlu0 %v333
  %v350 = vpop.xlane.xlu0 %349
  %351 = vadd.xlane.f32.xlu0 %v336
  %v352 = vpop.xlane.xlu0 %351
  %v353 = vmul.f32 %v333, %v333
  %v354 = vmul.f32 %v336, %v336
  %355 = vadd.xlane.f32.xlu0 %v353
  %v356 = vpop.xlane.xlu0 %355
  %357 = vadd.xlane.f32.xlu0 %v354
  %v358 = vpop.xlane.xlu0 %357
  %vm359 = vcmask 7168
  %v360 = vsel %vm359, %v350, %v356
  %v361 = vsel %vm359, %v352, %v358
  %vm362 = vcmask 15360
  %363 = vst.msk [vmem:[%s3] sm:$0xff] %vm362, %v360
  %364 = vst.msk [vmem:[%s3 + $0x8] sm:$0xff] %vm362, %v361
  // Predicated region
  $region10: #{unet_forward.17} parent=0 // pred_check
    _
  $region11: #{unet_forward.17} parent=0 // pred_check_branch
    %366 = sbr.rel (0) target = $region13
  $region12: #{unet_forward.17} parent=0 // pred_region
    _
  $region13: #{unet_forward.17} parent=0 // pred_fallthru
    _
  // Predicated region
  $region14: #{unet_forward.17} parent=0 // pred_check
    _
  $region15: #{unet_forward.17} parent=0 // pred_check_branch
    %368 = sbr.rel (0) target = $region17
  $region16: #{unet_forward.17} parent=0 // pred_region
    _
  $region17: #{unet_forward.17} parent=0 // pred_fallthru
    _
  // Predicated region
  $region18: #{unet_forward.17} parent=0 // pred_check
    _
  $region19: #{unet_forward.17} parent=0 // pred_check_branch
    %370 = sbr.rel (0) target = $region21
  $region20: #{unet_forward.17} parent=0 // pred_region
    _
  $region21: #{unet_forward.17} parent=0 // pred_fallthru
    _
  // Predicated region
  $region22: #{unet_forward.17} parent=0 // pred_check
    _
  $region23: #{unet_forward.17} parent=0 // pred_check_branch
    %372 = sbr.rel (0) target = $region25
  $region24: #{unet_forward.17} parent=0 // pred_region
    _
  $region25: #{unet_forward.17} parent=0 // pred_fallthru
    _

// kernel: tile.34
$region0: #{tile.34}
  #allocation0 [shape = 's32[1]{0}', space=sflag, size = 0x4, scoped, tag = 'scoped memory for tile.34']
  %s0 = inlined_call_operand.vmem [shape: f32[24], index: 0, kind: input, shape index: {}]
  %s1 = inlined_call_operand.vmem [shape: f32[9,24], index: 1, kind: output, shape index: {}]
  // Predicated region
  $region2: #{tile.34} parent=0 // pred_check
    _
  $region3: #{tile.34} parent=0 // pred_check_branch
    %3 = sbr.rel (0) target = $region5
  $region4: #{tile.34} parent=0 // pred_region
    _
  $region5: #{tile.34} parent=0 // pred_fallthru
    _
  %v4 = vld [vmem:[%s0] ss:$0 sm:$0xff]
  %5 = vst [vmem:[%s1] sm:$0xff] %v4
  %s6 = scalar_lea.vmem %s1, 8
  %7 = vst [vmem:[%s6] sm:$0xff] %v4

// kernel: mul.147
$region0: #{mul.147}
  %s0 = inlined_call_operand.vmem [shape: f32[9,24], index: 0, kind: input, shape index: {}]
  %s1 = inlined_call_operand.vmem [shape: f32[216], index: 1, kind: output, shape index: {}]
  $region1: #{mul.147} parent=0
    #allocation0 [shape = 'u8[4096]{0}', space=vmem, size = 0x1000, scoped, tag = 'scoped mem for output reshape']
    %v2 = vld [vmem:[%s0] sm:$0x1]
    %vm3 = vcmask 195584
    %4 = vst.msk [vmem:[#allocation0] sm:$0x1] %vm3, %v2
    %s5 = scalar_lea.vmem %s0, 5
    %v6 = vld [vmem:[%s5] sm:$0x1]
    %s7 = scalar_lea.vmem %s0, 5
    %v8 = vld [vmem:[%s7] sm:$0x1]
    %vm9 = vcmask 64512
    %v10 = vsel %vm9, %v8, %v6
    %11 = vrot.lane.b32.xlu0 %v10, 120
    %v12 = vpop.permute.xlu0 %11
    %vm13 = vcmask 130048
    %s14 = scalar_lea.vmem [#allocation0], 1
    %15 = vst.msk [vmem:[%s14] sm:$0x1] %vm13, %v12
    %vm16 = vcmask 1048512
    %17 = vst.msk [vmem:[#allocation0] sm:$0x1] %vm16, %v12
    %s18 = scalar_lea.vmem %s0, 4
    %v19 = vld [vmem:[%s18] sm:$0x1]
    %20 = vrot.lane.b32.xlu0 %v19, 96
    %v21 = vpop.permute.xlu0 %20
    %vm22 = vcmask 982784
    %23 = vst.msk [vmem:[#allocation0] sm:$0x1] %vm22, %v21
    %s24 = scalar_lea.vmem %s0, 3
    %v25 = vld [vmem:[%s24] sm:$0x1]
    %26 = vrot.lane.b32.xlu0 %v25, 72
    %v27 = vpop.permute.xlu0 %26
    %vm28 = vcmask 785984
    %29 = vst.msk [vmem:[#allocation0] sm:$0x1] %vm28, %v27
    %s30 = scalar_lea.vmem %s0, 8
    %v31 = vld [vmem:[%s30] sm:$0x1]
    %32 = vrot.lane.b32.xlu0 %v31, 64
    %v33 = vpop.permute.xlu0 %32
    %vm34 = vcmask 720384
    %s35 = scalar_lea.vmem [#allocation0], 1
    %36 = vst.msk [vmem:[%s35] sm:$0x1] %vm34, %v33
    %s37 = scalar_lea.vmem %s0, 2
    %v38 = vld [vmem:[%s37] sm:$0x1]
    %39 = vrot.lane.b32.xlu0 %v38, 48
    %v40 = vpop.permute.xlu0 %39
    %vm41 = vcmask 589184
    %42 = vst.msk [vmem:[#allocation0] sm:$0x1] %vm41, %v40
    %s43 = scalar_lea.vmem %s0, 7
    %v44 = vld [vmem:[%s43] sm:$0x1]
    %45 = vrot.lane.b32.xlu0 %v44, 40
    %v46 = vpop.permute.xlu0 %45
    %vm47 = vcmask 523584
    %s48 = scalar_lea.vmem [#allocation0], 1
    %49 = vst.msk [vmem:[%s48] sm:$0x1] %vm47, %v46
    %s50 = scalar_lea.vmem %s0, 1
    %v51 = vld [vmem:[%s50] sm:$0x1]
    %52 = vrot.lane.b32.xlu0 %v51, 24
    %v53 = vpop.permute.xlu0 %52
    %vm54 = vcmask 392384
    %55 = vst.msk [vmem:[#allocation0] sm:$0x1] %vm54, %v53
    %s56 = scalar_lea.vmem %s0, 6
    %v57 = vld [vmem:[%s56] sm:$0x1]
    %58 = vrot.lane.b32.xlu0 %v57, 16
    %v59 = vpop.permute.xlu0 %58
    %vm60 = vcmask 326784
    %s61 = scalar_lea.vmem [#allocation0], 1
    %62 = vst.msk [vmem:[%s61] sm:$0x1] %vm60, %v59
    %s64 = sshllo.u32 0, 2
    %v66 = vld [vmem:[#allocation0] sm:%s64]
    %s67 = sshllo.u32 0, 2
    %68 = vst [vmem:[%s1] sm:%s67] %v66

// kernel: unet_forward.21
$region0: #{unet_forward.21}
  #allocation0 [shape = 'u32[]', space=smem, size = 0x4, offset = 0x4, fixed_abs, tag = 'smem constant byte address 0x4 - core index']
  #allocation1 [shape = 'u32[144,128]{1,0:T(1,128)}', space=vmem, size = 0x12000, scoped, tag = 'internal scratch']
  %s0 = inlined_call_operand.vmem [shape: bf16[8,512], index: 0, kind: input, shape index: {}]
  %s1 = inlined_call_operand.vmem [shape: f32[8,1], index: 1, kind: input, shape index: {}]
  %s2 = inlined_call_operand.vmem [shape: f32[8,1], index: 2, kind: input, shape index: {}]
  %s3 = inlined_call_operand.vmem [shape: bf16[3,8], index: 3, kind: input, shape index: {}]
  %s4 = inlined_call_operand.vmem [shape: f32[3,1], index: 4, kind: input, shape index: {}]
  %s5 = inlined_call_operand.vmem [shape: f32[3,512], index: 5, kind: output, shape index: {}]
  %s6 = sld [smem:[#allocation0]]
  $region30: #{unet_forward.21} parent=0
    _
  %s8 = ssub.s32 1, %s6
  %s9 = scalar_select 0, %s8, %s6
  // Predicated region
  $region2: #{unet_forward.21} parent=0 // pred_check
    _
  $region3: #{unet_forward.21} parent=0 // pred_check_branch
    %11 = sbr.rel (0) target = $region5
  $region4: #{unet_forward.21} parent=0 // pred_region
    _
  $region5: #{unet_forward.21} parent=0 // pred_fallthru
    _
  // Predicated region
  $region6: #{unet_forward.21} parent=0 // pred_check
    _
  $region7: #{unet_forward.21} parent=0 // pred_check_branch
    %13 = sbr.rel (0) target = $region9
  $region8: #{unet_forward.21} parent=0 // pred_region
    _
  $region9: #{unet_forward.21} parent=0 // pred_fallthru
    _
  // Predicated region
  $region10: #{unet_forward.21} parent=0 // pred_check
    _
  $region11: #{unet_forward.21} parent=0 // pred_check_branch
    %15 = sbr.rel (0) target = $region13
  $region12: #{unet_forward.21} parent=0 // pred_region
    _
  $region13: #{unet_forward.21} parent=0 // pred_fallthru
    _
  // Predicated region
  $region14: #{unet_forward.21} parent=0 // pred_check
    _
  $region15: #{unet_forward.21} parent=0 // pred_check_branch
    %17 = sbr.rel (0) target = $region17
  $region16: #{unet_forward.21} parent=0 // pred_region
    _
  $region17: #{unet_forward.21} parent=0 // pred_fallthru
    _
  // Predicated region
  $region18: #{unet_forward.21} parent=0 // pred_check
    _
  $region19: #{unet_forward.21} parent=0 // pred_check_branch
    %19 = sbr.rel (0) target = $region21
  $region20: #{unet_forward.21} parent=0 // pred_region
    _
  $region21: #{unet_forward.21} parent=0 // pred_fallthru
    _
  %v21 = vld [vmem:[%s0] sm:$0xff]
  %v22 = vld [vmem:[%s0 + $0x8] sm:$0xff]
  %v23 = vunpack.c.l.bf16 %v21
  %v24 = vunpack.c.h.bf16 %v21
  %v25 = vunpack.c.l.bf16 %v22
  %v26 = vunpack.c.h.bf16 %v22
  %v27 = vld [vmem:[%s1] sm:$0xff]
  %29 = vset.pattern.permute.xlu0 0
  %30 = vperm.xlu0 %29, %v27
  %v31 = vpop.permute.xlu0 %30
  %v33 = vmul.f32 %v23, %v31
  %v34 = vmul.f32 %v24, %v31
  %v35 = vmul.f32 %v25, %v31
  %v36 = vmul.f32 %v26, %v31
  %v37 = vld [vmem:[%s2] sm:$0xff]
  %39 = vset.pattern.permute.xlu0 0
  %40 = vperm.xlu0 %39, %v37
  %v41 = vpop.permute.xlu0 %40
  %v43 = vadd.f32 %v33, %v41
  %v44 = vadd.f32 %v34, %v41
  %v45 = vadd.f32 %v35, %v41
  %v46 = vadd.f32 %v36, %v41
  %v47 = vld [vmem:[%s3] sm:$0x3]
  %v48 = vpack.c.bf16 %v43, %v43
  %v49 = vpack.c.bf16 %v44, %v44
  %v50 = vpack.c.bf16 %v45, %v45
  %v51 = vpack.c.bf16 %v46, %v46
  %v52 = vld [vmem:[%s4] sm:$0x7]
  %54 = vset.pattern.permute.xlu0 0
  %55 = vperm.xlu0 %54, %v52
  %v56 = vpop.permute.xlu0 %55
  %vm58 = vcmask 64512
  %v60 = vsel %vm58, %v47, 0
  %vm62 = vcmask 1043456
  %v64 = vsel %vm62, %v48, 0
  %v67 = vsel %vm62, %v49, 0
  %v70 = vsel %vm62, %v50, 0
  %v73 = vsel %vm62, %v51, 0
  %75 = vmatprep.subr.bf16.mxu0 %v67
  %76 = vmatpush1.bf16.msra.mxu0 %v64
  %77 = vmatprep.subr.bf16.mxu0 0
  %78 = vmatpush1.bf16.msra.mxu0 0
  %79 = vmatprep.subr.bf16.mxu0 0
  %80 = vmatpush1.bf16.msra.mxu0 0
  %81 = vmatprep.subr.bf16.mxu0 0
  %82 = vmatpush1.bf16.msra.mxu0 0
  %83 = vmatprep.subr.bf16.mxu0 0
  %84 = vmatpush1.bf16.msra.mxu0 0
  %85 = vmatprep.subr.bf16.mxu0 0
  %86 = vmatpush1.bf16.msra.mxu0 0
  %87 = vmatprep.subr.bf16.mxu0 0
  %88 = vmatpush1.bf16.msra.mxu0 0
  %89 = vmatprep.subr.bf16.mxu0 0
  %90 = vmatpush1.bf16.msra.mxu0 0
  %91 = vmatprep.subr.bf16.mxu0 0
  %92 = vmatpush1.bf16.msra.mxu0 0
  %93 = vmatprep.subr.bf16.mxu0 0
  %94 = vmatpush1.bf16.msra.mxu0 0
  %95 = vmatprep.subr.bf16.mxu0 0
  %96 = vmatpush1.bf16.msra.mxu0 0
  %97 = vmatprep.subr.bf16.mxu0 0
  %98 = vmatpush1.bf16.msra.mxu0 0
  %99 = vmatprep.subr.bf16.mxu0 0
  %100 = vmatpush1.bf16.msra.mxu0 0
  %101 = vmatprep.subr.bf16.mxu0 0
  %102 = vmatpush1.bf16.msra.mxu0 0
  %103 = vmatprep.subr.bf16.mxu0 0
  %104 = vmatpush1.bf16.msra.mxu0 0
  %105 = vmatprep.subr.bf16.mxu0 0
  %106 = vmatpush1.bf16.msra.mxu0 0
  %107 = vmatprep.mubr.bf16.mxu0 0
  %108 = vmatmul.mubr.bf16.gmra.mrb[0].mxu0 %v60
  %v109 = vpop.f32.mrb[0].mxu0
  %v110 = vadd.f32 %v56, %v109
  %v111 = vpop.f32.mrb[0].mxu0
  %v112 = vadd.f32 %v56, %v111
  %v113 = vpop.f32.mrb[0].mxu0
  %v114 = vpop.f32.mrb[0].mxu0
  %115 = vdwg.mxu0
  %116 = vmatprep.subr.bf16.mxu0 %v73
  %117 = vmatpush1.bf16.msra.mxu0 %v70
  %118 = vmatprep.subr.bf16.mxu0 0
  %119 = vmatpush1.bf16.msra.mxu0 0
  %120 = vmatprep.subr.bf16.mxu0 0
  %121 = vmatpush1.bf16.msra.mxu0 0
  %122 = vmatprep.subr.bf16.mxu0 0
  %123 = vmatpush1.bf16.msra.mxu0 0
  %124 = vmatprep.subr.bf16.mxu0 0
  %125 = vmatpush1.bf16.msra.mxu0 0
  %126 = vmatprep.subr.bf16.mxu0 0
  %127 = vmatpush1.bf16.msra.mxu0 0
  %128 = vmatprep.subr.bf16.mxu0 0
  %129 = vmatpush1.bf16.msra.mxu0 0
  %130 = vmatprep.subr.bf16.mxu0 0
  %131 = vmatpush1.bf16.msra.mxu0 0
  %132 = vmatprep.subr.bf16.mxu0 0
  %133 = vmatpush1.bf16.msra.mxu0 0
  %134 = vmatprep.subr.bf16.mxu0 0
  %135 = vmatpush1.bf16.msra.mxu0 0
  %136 = vmatprep.subr.bf16.mxu0 0
  %137 = vmatpush1.bf16.msra.mxu0 0
  %138 = vmatprep.subr.bf16.mxu0 0
  %139 = vmatpush1.bf16.msra.mxu0 0
  %140 = vmatprep.subr.bf16.mxu0 0
  %141 = vmatpush1.bf16.msra.mxu0 0
  %142 = vmatprep.subr.bf16.mxu0 0
  %143 = vmatpush1.bf16.msra.mxu0 0
  %144 = vmatprep.subr.bf16.mxu0 0
  %145 = vmatpush1.bf16.msra.mxu0 0
  %146 = vmatprep.subr.bf16.mxu0 0
  %147 = vmatpush1.bf16.msra.mxu0 0
  %148 = vmatprep.mubr.bf16.mxu0 0
  %149 = vmatmul.mubr.bf16.gmra.mrb[0].mxu0 %v60
  %v150 = vpop.f32.mrb[0].mxu0
  %v151 = vadd.f32 %v56, %v150
  %v152 = vpop.f32.mrb[0].mxu0
  %v153 = vadd.f32 %v56, %v152
  %v154 = vpop.f32.mrb[0].mxu0
  %v155 = vpop.f32.mrb[0].mxu0
  %156 = vdwg.mxu0
  %v161 = vcombine.low %v110, %v112
  %v162 = vcombine.low %v151, %v153
  %165 = vst [vmem:[%s5] sm:$0x77] %v161
  %166 = vst [vmem:[%s5 + $0x8] sm:$0x77] %v162
  // Predicated region
  $region22: #{unet_forward.21} parent=0 // pred_check
    _
  $region23: #{unet_forward.21} parent=0 // pred_check_branch
    %168 = sbr.rel (0) target = $region25
  $region24: #{unet_forward.21} parent=0 // pred_region
    _
  $region25: #{unet_forward.21} parent=0 // pred_fallthru
    _
  // Predicated region
  $region26: #{unet_forward.21} parent=0 // pred_check
    _
  $region27: #{unet_forward.21} parent=0 // pred_check_branch
    %170 = sbr.rel (0) target = $region29
  $region28: #{unet_forward.21} parent=0 // pred_region
    _
  $region29: #{unet_forward.21} parent=0 // pred_fallthru
    _

// kernel: unet_forward.19
$region0: #{unet_forward.19}
  #allocation0 [shape = 'u32[]', space=smem, size = 0x4, offset = 0x4, fixed_abs, tag = 'smem constant byte address 0x4 - core index']
  #allocation1 [shape = 'u32[144,128]{1,0:T(1,128)}', space=vmem, size = 0x12000, scoped, tag = 'internal scratch']
  %s0 = inlined_call_operand.vmem [shape: bf16[216,512], index: 0, kind: input, shape index: {}]
  %s1 = inlined_call_operand.vmem [shape: bf16[8,216], index: 1, kind: input, shape index: {}]
  %s2 = inlined_call_operand.vmem [shape: bf16[8,512], index: 2, kind: output, shape index: {0}]
  %s3 = inlined_call_operand.vmem [shape: f32[1,8,2], index: 3, kind: output, shape index: {1}]
  %4 = xla_tuple %s2, %s3
  %s5 = sld [smem:[#allocation0]]
  $region26: #{unet_forward.19} parent=0
    _
  %s7 = ssub.s32 1, %s5
  %s8 = scalar_select 0, %s7, %s5
  // Predicated region
  $region2: #{unet_forward.19} parent=0 // pred_check
    _
  $region3: #{unet_forward.19} parent=0 // pred_check_branch
    %10 = sbr.rel (0) target = $region5
  $region4: #{unet_forward.19} parent=0 // pred_region
    _
  $region5: #{unet_forward.19} parent=0 // pred_fallthru
    _
  // Predicated region
  $region6: #{unet_forward.19} parent=0 // pred_check
    _
  $region7: #{unet_forward.19} parent=0 // pred_check_branch
    %12 = sbr.rel (0) target = $region9
  $region8: #{unet_forward.19} parent=0 // pred_region
    _
  $region9: #{unet_forward.19} parent=0 // pred_fallthru
    _
  %v14 = vld [vmem:[%s1] sm:$0xff]
  %v15 = vld [vmem:[%s0] sm:$0xff]
  %v16 = vld [vmem:[%s0 + $0x8] sm:$0xff]
  %v17 = vld [vmem:[%s0 + $0x10] sm:$0xff]
  %v18 = vld [vmem:[%s0 + $0x18] sm:$0xff]
  %v19 = vld [vmem:[%s0 + $0x20] sm:$0xff]
  %v20 = vld [vmem:[%s0 + $0x28] sm:$0xff]
  %v21 = vld [vmem:[%s0 + $0x30] sm:$0xff]
  %v22 = vld [vmem:[%s0 + $0x38] sm:$0xff]
  %v23 = vld [vmem:[%s0 + $0x40] sm:$0xff]
  %v24 = vld [vmem:[%s0 + $0x48] sm:$0xff]
  %v25 = vld [vmem:[%s0 + $0x50] sm:$0xff]
  %v26 = vld [vmem:[%s0 + $0x58] sm:$0xff]
  %v27 = vld [vmem:[%s0 + $0x60] sm:$0xff]
  %v28 = vld [vmem:[%s0 + $0x68] sm:$0xff]
  %v29 = vld [vmem:[%s0 + $0x70] sm:$0xff]
  %v30 = vld [vmem:[%s0 + $0x78] sm:$0xff]
  %v31 = vld [vmem:[%s0 + $0x80] sm:$0xff]
  %v32 = vld [vmem:[%s0 + $0x88] sm:$0xff]
  %v33 = vld [vmem:[%s0 + $0x90] sm:$0xff]
  %v34 = vld [vmem:[%s0 + $0x98] sm:$0xff]
  %v35 = vld [vmem:[%s0 + $0xa0] sm:$0xff]
  %v36 = vld [vmem:[%s0 + $0xa8] sm:$0xff]
  %v37 = vld [vmem:[%s0 + $0xb0] sm:$0xff]
  %v38 = vld [vmem:[%s0 + $0xb8] sm:$0xff]
  %v39 = vld [vmem:[%s0 + $0xc0] sm:$0xff]
  %v40 = vld [vmem:[%s0 + $0xc8] sm:$0xff]
  %v41 = vld [vmem:[%s0 + $0xd0] sm:$0xff]
  %v42 = vld [vmem:[%s0 + $0xd8] sm:$0xff]
  %v43 = vld [vmem:[%s0 + $0xe0] sm:$0xff]
  %v44 = vld [vmem:[%s0 + $0xe8] sm:$0xff]
  %v45 = vld [vmem:[%s0 + $0xf0] sm:$0xff]
  %v46 = vld [vmem:[%s0 + $0xf8] sm:$0xff]
  %v47 = vld [vmem:[%s0 + $0x100] sm:$0xff]
  %v48 = vld [vmem:[%s0 + $0x108] sm:$0xff]
  %v49 = vld [vmem:[%s0 + $0x110] sm:$0xff]
  %v50 = vld [vmem:[%s0 + $0x118] sm:$0xff]
  %v51 = vld [vmem:[%s0 + $0x120] sm:$0xff]
  %v52 = vld [vmem:[%s0 + $0x128] sm:$0xff]
  %v53 = vld [vmem:[%s0 + $0x130] sm:$0xff]
  %v54 = vld [vmem:[%s0 + $0x138] sm:$0xff]
  %v55 = vld [vmem:[%s0 + $0x140] sm:$0xff]
  %v56 = vld [vmem:[%s0 + $0x148] sm:$0xff]
  %v57 = vld [vmem:[%s0 + $0x150] sm:$0xff]
  %v58 = vld [vmem:[%s0 + $0x158] sm:$0xff]
  %v59 = vld [vmem:[%s0 + $0x160] sm:$0xff]
  %v60 = vld [vmem:[%s0 + $0x168] sm:$0xff]
  %v61 = vld [vmem:[%s0 + $0x170] sm:$0xff]
  %v62 = vld [vmem:[%s0 + $0x178] sm:$0xff]
  %v63 = vld [vmem:[%s0 + $0x180] sm:$0xff]
  %v64 = vld [vmem:[%s0 + $0x188] sm:$0xff]
  %v65 = vld [vmem:[%s0 + $0x190] sm:$0xff]
  %v66 = vld [vmem:[%s0 + $0x198] sm:$0xff]
  %v67 = vld [vmem:[%s0 + $0x1a0] sm:$0xff]
  %v68 = vld [vmem:[%s0 + $0x1a8] sm:$0xff]
  %v70 = vunpack.c.l.b16 %v14
  %v71 = vunpack.c.h.b16 %v14
  %v72 = vpack.c.b16 %v70, %v70
  %v73 = vpack.c.b16 %v71, %v71
  %v129 = vunpack.c.l.b16 %v15
  %v130 = vunpack.c.h.b16 %v15
  %v131 = vunpack.c.l.b16 %v16
  %v132 = vunpack.c.h.b16 %v16
  %v133 = vunpack.c.l.b16 %v17
  %v134 = vunpack.c.h.b16 %v17
  %v135 = vunpack.c.l.b16 %v18
  %v136 = vunpack.c.h.b16 %v18
  %v137 = vunpack.c.l.b16 %v19
  %v138 = vunpack.c.h.b16 %v19
  %v139 = vunpack.c.l.b16 %v20
  %v140 = vunpack.c.h.b16 %v20
  %v141 = vunpack.c.l.b16 %v21
  %v142 = vunpack.c.h.b16 %v21
  %v143 = vunpack.c.l.b16 %v22
  %v144 = vunpack.c.h.b16 %v22
  %v145 = vunpack.c.l.b16 %v23
  %v146 = vunpack.c.h.b16 %v23
  %v147 = vunpack.c.l.b16 %v24
  %v148 = vunpack.c.h.b16 %v24
  %v149 = vunpack.c.l.b16 %v25
  %v150 = vunpack.c.h.b16 %v25
  %v151 = vunpack.c.l.b16 %v26
  %v152 = vunpack.c.h.b16 %v26
  %v153 = vunpack.c.l.b16 %v27
  %v154 = vunpack.c.h.b16 %v27
  %v155 = vunpack.c.l.b16 %v28
  %v156 = vunpack.c.h.b16 %v28
  %v157 = vunpack.c.l.b16 %v29
  %v158 = vunpack.c.h.b16 %v29
  %v159 = vunpack.c.l.b16 %v30
  %v160 = vunpack.c.h.b16 %v30
  %v161 = vunpack.c.l.b16 %v31
  %v162 = vunpack.c.h.b16 %v31
  %v163 = vunpack.c.l.b16 %v32
  %v164 = vunpack.c.h.b16 %v32
  %v165 = vunpack.c.l.b16 %v33
  %v166 = vunpack.c.h.b16 %v33
  %v167 = vunpack.c.l.b16 %v34
  %v168 = vunpack.c.h.b16 %v34
  %v169 = vunpack.c.l.b16 %v35
  %v170 = vunpack.c.h.b16 %v35
  %v171 = vunpack.c.l.b16 %v36
  %v172 = vunpack.c.h.b16 %v36
  %v173 = vunpack.c.l.b16 %v37
  %v174 = vunpack.c.h.b16 %v37
  %v175 = vunpack.c.l.b16 %v38
  %v176 = vunpack.c.h.b16 %v38
  %v177 = vunpack.c.l.b16 %v39
  %v178 = vunpack.c.h.b16 %v39
  %v179 = vunpack.c.l.b16 %v40
  %v180 = vunpack.c.h.b16 %v40
  %v181 = vunpack.c.l.b16 %v41
  %v182 = vunpack.c.h.b16 %v41
  %v183 = vunpack.c.l.b16 %v42
  %v184 = vunpack.c.h.b16 %v42
  %v185 = vunpack.c.l.b16 %v43
  %v186 = vunpack.c.h.b16 %v43
  %v187 = vunpack.c.l.b16 %v44
  %v188 = vunpack.c.h.b16 %v44
  %v189 = vunpack.c.l.b16 %v45
  %v190 = vunpack.c.h.b16 %v45
  %v191 = vunpack.c.l.b16 %v46
  %v192 = vunpack.c.h.b16 %v46
  %v193 = vunpack.c.l.b16 %v47
  %v194 = vunpack.c.h.b16 %v47
  %v195 = vunpack.c.l.b16 %v48
  %v196 = vunpack.c.h.b16 %v48
  %v197 = vunpack.c.l.b16 %v49
  %v198 = vunpack.c.h.b16 %v49
  %v199 = vunpack.c.l.b16 %v50
  %v200 = vunpack.c.h.b16 %v50
  %v201 = vunpack.c.l.b16 %v51
  %v202 = vunpack.c.h.b16 %v51
  %v203 = vunpack.c.l.b16 %v52
  %v204 = vunpack.c.h.b16 %v52
  %v205 = vunpack.c.l.b16 %v53
  %v206 = vunpack.c.h.b16 %v53
  %v207 = vunpack.c.l.b16 %v54
  %v208 = vunpack.c.h.b16 %v54
  %v209 = vunpack.c.l.b16 %v55
  %v210 = vunpack.c.h.b16 %v55
  %v211 = vunpack.c.l.b16 %v56
  %v212 = vunpack.c.h.b16 %v56
  %v213 = vunpack.c.l.b16 %v57
  %v214 = vunpack.c.h.b16 %v57
  %v215 = vunpack.c.l.b16 %v58
  %v216 = vunpack.c.h.b16 %v58
  %v217 = vunpack.c.l.b16 %v59
  %v218 = vunpack.c.h.b16 %v59
  %v219 = vunpack.c.l.b16 %v60
  %v220 = vunpack.c.h.b16 %v60
  %v221 = vunpack.c.l.b16 %v61
  %v222 = vunpack.c.h.b16 %v61
  %v223 = vunpack.c.l.b16 %v62
  %v224 = vunpack.c.h.b16 %v62
  %v225 = vunpack.c.l.b16 %v63
  %v226 = vunpack.c.h.b16 %v63
  %v227 = vunpack.c.l.b16 %v64
  %v228 = vunpack.c.h.b16 %v64
  %v229 = vunpack.c.l.b16 %v65
  %v230 = vunpack.c.h.b16 %v65
  %v231 = vunpack.c.l.b16 %v66
  %v232 = vunpack.c.h.b16 %v66
  %v233 = vunpack.c.l.b16 %v67
  %v234 = vunpack.c.h.b16 %v67
  %v235 = vunpack.c.l.b16 %v68
  %v236 = vunpack.c.h.b16 %v68
  %v237 = vpack.c.b16 %v133, %v129
  %v238 = vpack.c.b16 %v134, %v130
  %v239 = vpack.c.b16 %v135, %v131
  %v240 = vpack.c.b16 %v136, %v132
  %v241 = vpack.c.b16 %v141, %v137
  %v242 = vpack.c.b16 %v142, %v138
  %v243 = vpack.c.b16 %v143, %v139
  %v244 = vpack.c.b16 %v144, %v140
  %v245 = vpack.c.b16 %v149, %v145
  %v246 = vpack.c.b16 %v150, %v146
  %v247 = vpack.c.b16 %v151, %v147
  %v248 = vpack.c.b16 %v152, %v148
  %v249 = vpack.c.b16 %v157, %v153
  %v250 = vpack.c.b16 %v158, %v154
  %v251 = vpack.c.b16 %v159, %v155
  %v252 = vpack.c.b16 %v160, %v156
  %v253 = vpack.c.b16 %v165, %v161
  %v254 = vpack.c.b16 %v166, %v162
  %v255 = vpack.c.b16 %v167, %v163
  %v256 = vpack.c.b16 %v168, %v164
  %v257 = vpack.c.b16 %v173, %v169
  %v258 = vpack.c.b16 %v174, %v170
  %v259 = vpack.c.b16 %v175, %v171
  %v260 = vpack.c.b16 %v176, %v172
  %v261 = vpack.c.b16 %v181, %v177
  %v262 = vpack.c.b16 %v182, %v178
  %v263 = vpack.c.b16 %v183, %v179
  %v264 = vpack.c.b16 %v184, %v180
  %v265 = vpack.c.b16 %v189, %v185
  %v266 = vpack.c.b16 %v190, %v186
  %v267 = vpack.c.b16 %v191, %v187
  %v268 = vpack.c.b16 %v192, %v188
  %v269 = vpack.c.b16 %v197, %v193
  %v270 = vpack.c.b16 %v198, %v194
  %v271 = vpack.c.b16 %v199, %v195
  %v272 = vpack.c.b16 %v200, %v196
  %v273 = vpack.c.b16 %v205, %v201
  %v274 = vpack.c.b16 %v206, %v202
  %v275 = vpack.c.b16 %v207, %v203
  %v276 = vpack.c.b16 %v208, %v204
  %v277 = vpack.c.b16 %v213, %v209
  %v278 = vpack.c.b16 %v214, %v210
  %v279 = vpack.c.b16 %v215, %v211
  %v280 = vpack.c.b16 %v216, %v212
  %v281 = vpack.c.b16 %v221, %v217
  %v282 = vpack.c.b16 %v222, %v218
  %v283 = vpack.c.b16 %v223, %v219
  %v284 = vpack.c.b16 %v224, %v220
  %v285 = vpack.c.b16 %v229, %v225
  %v286 = vpack.c.b16 %v230, %v226
  %v287 = vpack.c.b16 %v231, %v227
  %v288 = vpack.c.b16 %v232, %v228
  %v289 = vpack.c.b16 %v233, %v233
  %v290 = vpack.c.b16 %v234, %v234
  %v291 = vpack.c.b16 %v235, %v235
  %v292 = vpack.c.b16 %v236, %v236
  %vm345 = vcmask 719872
  %v347 = vsel %vm345, %v73, 0
  %vm349 = vcmask 1043456
  %v351 = vsel %vm349, %v289, 0
  %v354 = vsel %vm349, %v290, 0
  %v357 = vsel %vm349, %v291, 0
  %v360 = vsel %vm349, %v292, 0
  %362 = vmatprep.subr.bf16.mxu0 %v238
  %363 = vmatpush1.bf16.msra.mxu0 %v237
  %364 = vmatprep.subr.bf16.mxu0 %v242
  %365 = vmatpush1.bf16.msra.mxu0 %v241
  %366 = vmatprep.subr.bf16.mxu0 %v246
  %367 = vmatpush1.bf16.msra.mxu0 %v245
  %368 = vmatprep.subr.bf16.mxu0 %v250
  %369 = vmatpush1.bf16.msra.mxu0 %v249
  %370 = vmatprep.subr.bf16.mxu0 %v254
  %371 = vmatpush1.bf16.msra.mxu0 %v253
  %372 = vmatprep.subr.bf16.mxu0 %v258
  %373 = vmatpush1.bf16.msra.mxu0 %v257
  %374 = vmatprep.subr.bf16.mxu0 %v262
  %375 = vmatpush1.bf16.msra.mxu0 %v261
  %376 = vmatprep.subr.bf16.mxu0 %v266
  %377 = vmatpush1.bf16.msra.mxu0 %v265
  %378 = vmatprep.subr.bf16.mxu0 %v270
  %379 = vmatpush1.bf16.msra.mxu0 %v269
  %380 = vmatprep.subr.bf16.mxu0 %v274
  %381 = vmatpush1.bf16.msra.mxu0 %v273
  %382 = vmatprep.subr.bf16.mxu0 %v278
  %383 = vmatpush1.bf16.msra.mxu0 %v277
  %384 = vmatprep.subr.bf16.mxu0 %v282
  %385 = vmatpush1.bf16.msra.mxu0 %v281
  %386 = vmatprep.subr.bf16.mxu0 %v286
  %387 = vmatpush1.bf16.msra.mxu0 %v285
  %388 = vmatprep.subr.bf16.mxu0 %v354
  %389 = vmatpush1.bf16.msra.mxu0 %v351
  %390 = vmatprep.subr.bf16.mxu0 0
  %391 = vmatpush1.bf16.msra.mxu0 0
  %392 = vmatprep.subr.bf16.mxu0 0
  %393 = vmatpush1.bf16.msra.mxu0 0
  %394 = vmatprep.mubr.bf16.mxu0 %v347
  %395 = vmatmul.mubr.bf16.gmra.mrb[0].mxu0 %v72
  %v396 = vpop.f32.mrb[0].mxu0
  %v397 = vadd.f32 0.0, %v396
  %v398 = vpop.f32.mrb[0].mxu0
  %v399 = vadd.f32 0.0, %v398
  %v400 = vpop.f32.mrb[0].mxu0
  %v401 = vpop.f32.mrb[0].mxu0
  %402 = vdwg.mxu0
  %403 = vmatprep.subr.bf16.mxu0 %v240
  %404 = vmatpush1.bf16.msra.mxu0 %v239
  %405 = vmatprep.subr.bf16.mxu0 %v244
  %406 = vmatpush1.bf16.msra.mxu0 %v243
  %407 = vmatprep.subr.bf16.mxu0 %v248
  %408 = vmatpush1.bf16.msra.mxu0 %v247
  %409 = vmatprep.subr.bf16.mxu0 %v252
  %410 = vmatpush1.bf16.msra.mxu0 %v251
  %411 = vmatprep.subr.bf16.mxu0 %v256
  %412 = vmatpush1.bf16.msra.mxu0 %v255
  %413 = vmatprep.subr.bf16.mxu0 %v260
  %414 = vmatpush1.bf16.msra.mxu0 %v259
  %415 = vmatprep.subr.bf16.mxu0 %v264
  %416 = vmatpush1.bf16.msra.mxu0 %v263
  %417 = vmatprep.subr.bf16.mxu0 %v268
  %418 = vmatpush1.bf16.msra.mxu0 %v267
  %419 = vmatprep.subr.bf16.mxu0 %v272
  %420 = vmatpush1.bf16.msra.mxu0 %v271
  %421 = vmatprep.subr.bf16.mxu0 %v276
  %422 = vmatpush1.bf16.msra.mxu0 %v275
  %423 = vmatprep.subr.bf16.mxu0 %v280
  %424 = vmatpush1.bf16.msra.mxu0 %v279
  %425 = vmatprep.subr.bf16.mxu0 %v284
  %426 = vmatpush1.bf16.msra.mxu0 %v283
  %427 = vmatprep.subr.bf16.mxu0 %v288
  %428 = vmatpush1.bf16.msra.mxu0 %v287
  %429 = vmatprep.subr.bf16.mxu0 %v360
  %430 = vmatpush1.bf16.msra.mxu0 %v357
  %431 = vmatprep.subr.bf16.mxu0 0
  %432 = vmatpush1.bf16.msra.mxu0 0
  %433 = vmatprep.subr.bf16.mxu0 0
  %434 = vmatpush1.bf16.msra.mxu0 0
  %435 = vmatprep.mubr.bf16.mxu0 %v347
  %436 = vmatmul.mubr.bf16.gmra.mrb[0].mxu0 %v72
  %v437 = vpop.f32.mrb[0].mxu0
  %v438 = vadd.f32 0.0, %v437
  %v439 = vpop.f32.mrb[0].mxu0
  %v440 = vadd.f32 0.0, %v439
  %v441 = vpop.f32.mrb[0].mxu0
  %v442 = vpop.f32.mrb[0].mxu0
  %443 = vdwg.mxu0
  %v444 = vpack.c.bf16 %v397, %v397
  %v445 = vpack.c.bf16 %v399, %v399
  %v446 = vpack.c.bf16 %v438, %v438
  %v447 = vpack.c.bf16 %v440, %v440
  %v452 = vunpack.c.l.b16 %v444
  %v453 = vunpack.c.l.b16 %v445
  %v454 = vunpack.c.l.b16 %v446
  %v455 = vunpack.c.l.b16 %v447
  %v456 = vpack.c.b16 %v453, %v452
  %v457 = vpack.c.b16 %v455, %v454
  %460 = vst [vmem:[%s2] sm:$0xff] %v456
  %461 = vst [vmem:[%s2 + $0x8] sm:$0xff] %v457
  %v462 = vadd.f32 %v397, %v399
  %v463 = vadd.f32 %v462, %v438
  %v464 = vadd.f32 %v463, %v440
  %465 = vadd.xlane.f32.xlu0 %v464
  %v466 = vpop.xlane.xlu0 %465
  %v467 = vmul.f32 %v397, %v397
  %v468 = vmul.f32 %v399, %v399
  %v469 = vmul.f32 %v438, %v438
  %v470 = vmul.f32 %v440, %v440
  %v471 = vadd.f32 %v467, %v468
  %v472 = vadd.f32 %v471, %v469
  %v473 = vadd.f32 %v472, %v470
  %474 = vadd.xlane.f32.xlu0 %v473
  %v475 = vpop.xlane.xlu0 %474
  %vm476 = vcmask 7168
  %v477 = vsel %vm476, %v466, %v475
  %vm478 = vcmask 15360
  %479 = vst.msk [vmem:[%s3] sm:$0xff] %vm478, %v477
  // Predicated region
  $region10: #{unet_forward.19} parent=0 // pred_check
    _
  $region11: #{unet_forward.19} parent=0 // pred_check_branch
    %481 = sbr.rel (0) target = $region13
  $region12: #{unet_forward.19} parent=0 // pred_region
    _
  $region13: #{unet_forward.19} parent=0 // pred_fallthru
    _
  // Predicated region
  $region14: #{unet_forward.19} parent=0 // pred_check
    _
  $region15: #{unet_forward.19} parent=0 // pred_check_branch
    %483 = sbr.rel (0) target = $region17
  $region16: #{unet_forward.19} parent=0 // pred_region
    _
  $region17: #{unet_forward.19} parent=0 // pred_fallthru
    _
  // Predicated region
  $region18: #{unet_forward.19} parent=0 // pred_check
    _
  $region19: #{unet_forward.19} parent=0 // pred_check_branch
    %485 = sbr.rel (0) target = $region21
  $region20: #{unet_forward.19} parent=0 // pred_region
    _
  $region21: #{unet_forward.19} parent=0 // pred_fallthru
    _
  // Predicated region
  $region22: #{unet_forward.19} parent=0 // pred_check
    _
  $region23: #{unet_forward.19} parent=0 // pred_check_branch
    %487 = sbr.rel (0) target = $region25
  $region24: #{unet_forward.19} parent=0 // pred_region
    _
  $region25: #{unet_forward.19} parent=0 // pred_fallthru
    _

</llo_original>
